<compile_context>
chip_gen: v5e
topology: v5e:2x2
jax: 0.10.0
libtpu: 0.0.40
codegen_flags: <defaults>
</compile_context>

<pallas_src>
import jax
import jax.numpy as jnp
from jax.experimental import pallas as pl
from jax.experimental.pallas import tpu as pltpu

PREC = jax.lax.Precision.HIGHEST


def rnn_textcls_kernel(
    ids_ref,    # (T*B, 1) int32  time-major token ids
    table_ref,  # (V, H)   f32    embedding table (row 0 zeroed -> padding_idx=0)
    h0_ref,     # (L, B, H) f32   initial hidden states
    wih_ref,    # (L, H, H) f32   input->hidden weights, stored (in, out): x @ W
    whh_ref,    # (L, H, H) f32   hidden->hidden weights, stored (in, out)
    b_ref,      # (L, 1, H) f32   folded b_ih + b_hh
    w1_ref,     # (H, 2H)  f32    fc1 weight, stored (in, out)
    b1_ref,     # (1, 2H)  f32    fc1 bias
    w2_ref,     # (1, 2H)  f32    fc2 weight as a row vector
    b2_ref,     # (1, 1)   f32    fc2 bias (SMEM scalar)
    out_ref,    # (B, 1)   f32    sigmoid scores
    seq_ref,    # scratch: (T*B, H) f32 time-major layer-output sequence
):
    L, B, H = h0_ref.shape
    V = table_ref.shape[0]
    TB = ids_ref.shape[0]
    T = TB // B

    # --- Embedding lookup fused as one-hot @ table (exact; table row 0 is
    #     zero, so padding_idx=0 matches nn.Embedding semantics). -----------
    ids = ids_ref[...]                                           # (T*B, 1)
    cols = jax.lax.broadcasted_iota(jnp.int32, (TB, V), 1)       # (T*B, V)
    onehot = (ids == cols).astype(jnp.float32)
    emb = jnp.dot(onehot, table_ref[...],
                  preferred_element_type=jnp.float32, precision=PREC)

    # --- Stacked Elman RNN: h_t = tanh(x_t @ Wih + b + h_{t-1} @ Whh). -----
    h = h0_ref[0]
    for l in range(L):
        src = emb if l == 0 else seq_ref[...]                    # (T*B, H)
        # Time-invariant input projection hoisted out of the recurrence:
        # one big MXU matmul per layer; folded bias added once.
        xproj = (jnp.dot(src, wih_ref[l],
                         preferred_element_type=jnp.float32, precision=PREC)
                 + b_ref[l])                                      # (T*B, H)
        whh = whh_ref[l]                                          # (H, H)
        h = h0_ref[l]                                             # (B, H)
        for t in range(T):
            h = jnp.tanh(xproj[t * B:(t + 1) * B, :]
                         + jnp.dot(h, whh,
                                   preferred_element_type=jnp.float32,
                                   precision=PREC))
            if l < L - 1:  # final layer only needs its last hidden state
                seq_ref[t * B:(t + 1) * B, :] = h                 # contiguous slab

    # --- Classifier head on the last timestep (dropout = identity in eval).
    z1 = (jnp.dot(h, w1_ref[...],
                  preferred_element_type=jnp.float32, precision=PREC)
          + b1_ref[...])
    z1 = jnp.maximum(z1, 0.0)                                     # relu, (B, 2H)
    # fc2 with N=1: VPU multiply + XLU lane reduction instead of an MXU matmul.
    z2 = jnp.sum(z1 * w2_ref[...], axis=-1, keepdims=True) + b2_ref[0, 0]
    out_ref[...] = jax.nn.sigmoid(z2)


def rnn_text_classification(x_ids, params):
    """x_ids: (B, T) int32 token ids.  Returns (B, 1) f32 sigmoid scores."""
    emb_table = params["embedding"]                  # (V, H), row 0 zeroed
    h0 = params["h0"]                                # (L, B, H)
    wih, whh = params["wih"], params["whh"]          # (L, H, H) each
    b = params["bih"] + params["bhh"]                # fold biases -> (L, 1, H)
    w1, b1 = params["w1"], params["b1"]              # (H, 2H), (1, 2H)
    w2_row = params["w2"].reshape(1, -1)             # (1, 2H)
    b2 = params["b2"]                                # (1, 1)

    B, T = x_ids.shape
    V, H = emb_table.shape

    # Time-major, flattened ids: element (t, b) -> row t*B + b.
    ids_tb = x_ids.T.reshape(T * B, 1).astype(jnp.int32)

    vmem = pl.BlockSpec(memory_space=pltpu.MemorySpace.VMEM)
    smem = pl.BlockSpec(memory_space=pltpu.MemorySpace.SMEM)

    return pl.pallas_call(
        rnn_textcls_kernel,
        out_shape=jax.ShapeDtypeStruct((B, 1), jnp.float32),
        in_specs=[vmem] * 9 + [smem],
        out_specs=vmem,
        scratch_shapes=[pltpu.VMEM((T * B, H), jnp.float32)],
    )(ids_tb, emb_table, h0, wih, whh, b, w1, b1, w2_row, b2)


def make_params(key, *, max_words, hidden_dim, num_layer, batch):
    """Deterministic synthetic parameters matching the module's shapes."""
    H, L, B, V = hidden_dim, num_layer, batch, max_words
    ks = jax.random.split(key, 12)

    # Embedding ~ N(0,1), padding_idx=0 row zeroed (PyTorch default init).
    emb = jax.random.normal(ks[0], (V, H), jnp.float32)
    emb = emb.at[0].set(0.0)

    # h0: xavier_normal on a (L, B, H) tensor:
    #   fan_in = B*H, fan_out = L*H, std = sqrt(2 / (fan_in + fan_out))
    # TODO(synk): torch's xavier_normal_ uses torch's global RNG; reproduced
    # here deterministically with JAX PRNG (same distribution, fixed seed).
    std_h0 = (2.0 / (B * H + L * H)) ** 0.5
    h0 = std_h0 * jax.random.normal(ks[1], (L, B, H), jnp.float32)

    # RNN weights: uniform(-1/sqrt(H), 1/sqrt(H)); stored pre-transposed (in, out).
    k = 1.0 / (H ** 0.5)
    wih = jax.random.uniform(ks[2], (L, H, H), jnp.float32, -k, k)
    whh = jax.random.uniform(ks[3], (L, H, H), jnp.float32, -k, k)
    bih = jax.random.uniform(ks[4], (L, 1, H), jnp.float32, -k, k)
    bhh = jax.random.uniform(ks[5], (L, 1, H), jnp.float32, -k, k)

    # fc1: H -> 2H, fc2: 2H -> 1; stored pre-transposed (in, out).
    k1 = 1.0 / (H ** 0.5)
    w1 = jax.random.uniform(ks[6], (H, 2 * H), jnp.float32, -k1, k1)
    b1 = jax.random.uniform(ks[7], (1, 2 * H), jnp.float32, -k1, k1)
    k2 = 1.0 / ((2 * H) ** 0.5)
    w2 = jax.random.uniform(ks[8], (2 * H, 1), jnp.float32, -k2, k2)
    b2 = jax.random.uniform(ks[9], (1, 1), jnp.float32, -k2, k2)

    return dict(embedding=emb, h0=h0, wih=wih, whh=whh, bih=bih, bhh=bhh,
                w1=w1, b1=b1, w2=w2, b2=b2)


def reference_forward(x_ids, params):
    """Pure-JAX reference for verification (uses an exact gather)."""
    dot = lambda a, b: jnp.dot(a, b, precision=PREC)
    emb = params["embedding"][x_ids]                 # (B, T, H)
    L = params["h0"].shape[0]
    T = emb.shape[1]
    seq = emb
    for l in range(L):
        h = params["h0"][l]
        outs = []
        for t in range(T):
            h = jnp.tanh(dot(seq[:, t, :], params["wih"][l])
                         + dot(h, params["whh"][l])
                         + params["bih"][l] + params["bhh"][l])
            outs.append(h)
        seq = jnp.stack(outs, axis=1)
    last = seq[:, -1, :]
    z1 = jnp.maximum(dot(last, params["w1"]) + params["b1"], 0.0)
    return jax.nn.sigmoid(dot(z1, params["w2"]) + params["b2"])


if __name__ == "__main__":
    # Small, module-consistent shapes.
    MAX_WORDS = 50     # args.max_words (vocab size)
    HIDDEN = 32        # args.hidden_dim
    NUM_LAYER = 2      # args.num_layer
    BATCH = 8
    SEQ = 8

    key = jax.random.PRNGKey(0)
    k_ids, k_params = jax.random.split(key)

    params = make_params(k_params, max_words=MAX_WORDS, hidden_dim=HIDDEN,
                         num_layer=NUM_LAYER, batch=BATCH)
    # Token ids in [0, MAX_WORDS); includes some padding (0) tokens.
    x_ids = jax.random.randint(k_ids, (BATCH, SEQ), 0, MAX_WORDS, dtype=jnp.int32)

    out = rnn_text_classification(x_ids, params)
    out = jax.block_until_ready(out)

    ref = reference_forward(x_ids, params)
    assert out.shape == (BATCH, 1)
    assert jnp.allclose(out, ref, atol=1e-4, rtol=1e-4), "mismatch vs reference"

    print("KERNEL_OK")
</pallas_src>

<mosaic_0001>
module attributes {stable_mosaic.version = 11 : i64} {
  func.func @rnn_textcls_kernel(%arg0: memref<64x1xi32, #tpu.memory_space<vmem>>, %arg1: memref<50x32xf32, #tpu.memory_space<vmem>>, %arg2: memref<2x8x32xf32, #tpu.memory_space<vmem>>, %arg3: memref<2x32x32xf32, #tpu.memory_space<vmem>>, %arg4: memref<2x32x32xf32, #tpu.memory_space<vmem>>, %arg5: memref<2x1x32xf32, #tpu.memory_space<vmem>>, %arg6: memref<32x64xf32, #tpu.memory_space<vmem>>, %arg7: memref<1x64xf32, #tpu.memory_space<vmem>>, %arg8: memref<1x64xf32, #tpu.memory_space<vmem>>, %arg9: memref<1x1xf32, #tpu.memory_space<smem>>, %arg10: memref<8x1xf32, #tpu.memory_space<vmem>>, %arg11: memref<64x32xf32, #tpu.memory_space<vmem>>) attributes {dimension_semantics = [], scalar_prefetch = 0 : i64, scratch_operands = 1 : i64, tpu.core_type = #tpu.core_type<tc>} {
    %c0 = arith.constant 0 : index
    %c0_0 = arith.constant 0 : index
    %0 = vector.load %arg0[%c0, %c0_0] : memref<64x1xi32, #tpu.memory_space<vmem>>, vector<64x1xi32>
    %1 = tpu.iota {dimensions = array<i32: 1>} : vector<64x50xi32>
    %2 = vector.broadcast %0 : vector<64x1xi32> to vector<64x50xi32>
    %3 = arith.cmpi eq, %2, %1 : vector<64x50xi32>
    %4 = arith.extui %3 : vector<64x50xi1> to vector<64x50xi32>
    %5 = arith.sitofp %4 : vector<64x50xi32> to vector<64x50xf32>
    %c0_1 = arith.constant 0 : index
    %c0_2 = arith.constant 0 : index
    %6 = vector.load %arg1[%c0_1, %c0_2] : memref<50x32xf32, #tpu.memory_space<vmem>>, vector<50x32xf32>
    %cst = arith.constant dense<0.000000e+00> : vector<64x32xf32>
    %7 = tpu.matmul %5, %6, %cst {dimension_numbers = #tpu.dot_dimension_numbers<[1], [0], [0], [1], [0, 0, 1, 1], [], []>, precision = #tpu.contract_precision<fp32>} : vector<64x50xf32>, vector<50x32xf32>, vector<64x32xf32> -> vector<64x32xf32>
    %c0_3 = arith.constant 0 : index
    %c0_4 = arith.constant 0 : index
    %c0_5 = arith.constant 0 : index
    %8 = vector.load %arg3[%c0_3, %c0_4, %c0_5] : memref<2x32x32xf32, #tpu.memory_space<vmem>>, vector<1x32x32xf32>
    %9 = vector.shape_cast %8 : vector<1x32x32xf32> to vector<32x32xf32>
    %cst_6 = arith.constant dense<0.000000e+00> : vector<64x32xf32>
    %10 = tpu.matmul %7, %9, %cst_6 {dimension_numbers = #tpu.dot_dimension_numbers<[1], [0], [0], [1], [0, 0, 1, 1], [], []>, precision = #tpu.contract_precision<fp32>} : vector<64x32xf32>, vector<32x32xf32>, vector<64x32xf32> -> vector<64x32xf32>
    %c0_7 = arith.constant 0 : index
    %c0_8 = arith.constant 0 : index
    %c0_9 = arith.constant 0 : index
    %11 = vector.load %arg5[%c0_7, %c0_8, %c0_9] : memref<2x1x32xf32, #tpu.memory_space<vmem>>, vector<1x1x32xf32>
    %12 = vector.shape_cast %11 : vector<1x1x32xf32> to vector<1x32xf32>
    %13 = vector.broadcast %12 : vector<1x32xf32> to vector<64x32xf32>
    %14 = arith.addf %10, %13 : vector<64x32xf32>
    %c0_10 = arith.constant 0 : index
    %c0_11 = arith.constant 0 : index
    %c0_12 = arith.constant 0 : index
    %15 = vector.load %arg4[%c0_10, %c0_11, %c0_12] : memref<2x32x32xf32, #tpu.memory_space<vmem>>, vector<1x32x32xf32>
    %16 = vector.shape_cast %15 : vector<1x32x32xf32> to vector<32x32xf32>
    %c0_13 = arith.constant 0 : index
    %c0_14 = arith.constant 0 : index
    %c0_15 = arith.constant 0 : index
    %17 = vector.load %arg2[%c0_13, %c0_14, %c0_15] : memref<2x8x32xf32, #tpu.memory_space<vmem>>, vector<1x8x32xf32>
    %18 = vector.shape_cast %17 : vector<1x8x32xf32> to vector<8x32xf32>
    %19 = vector.extract_strided_slice %14 {offsets = [0, 0], sizes = [8, 32], strides = [1, 1]} : vector<64x32xf32> to vector<8x32xf32>
    %cst_16 = arith.constant dense<0.000000e+00> : vector<8x32xf32>
    %20 = tpu.matmul %18, %16, %cst_16 {dimension_numbers = #tpu.dot_dimension_numbers<[1], [0], [0], [1], [0, 0, 1, 1], [], []>, precision = #tpu.contract_precision<fp32>} : vector<8x32xf32>, vector<32x32xf32>, vector<8x32xf32> -> vector<8x32xf32>
    %21 = arith.addf %19, %20 : vector<8x32xf32>
    %22 = math.tanh %21 : vector<8x32xf32>
    %c0_17 = arith.constant 0 : index
    %c0_18 = arith.constant 0 : index
    %23 = vector.load %arg11[%c0_17, %c0_18] : memref<64x32xf32, #tpu.memory_space<vmem>>, vector<8x32xf32>
    tpu.vector_store %arg11[%c0_17, %c0_18], %22 {strides = array<i32>} : memref<64x32xf32, #tpu.memory_space<vmem>>, vector<8x32xf32>,
    %24 = vector.extract_strided_slice %14 {offsets = [8, 0], sizes = [8, 32], strides = [1, 1]} : vector<64x32xf32> to vector<8x32xf32>
    %cst_19 = arith.constant dense<0.000000e+00> : vector<8x32xf32>
    %25 = tpu.matmul %22, %16, %cst_19 {dimension_numbers = #tpu.dot_dimension_numbers<[1], [0], [0], [1], [0, 0, 1, 1], [], []>, precision = #tpu.contract_precision<fp32>} : vector<8x32xf32>, vector<32x32xf32>, vector<8x32xf32> -> vector<8x32xf32>
    %26 = arith.addf %24, %25 : vector<8x32xf32>
    %27 = math.tanh %26 : vector<8x32xf32>
    %c8 = arith.constant 8 : index
    %c0_20 = arith.constant 0 : index
    %28 = vector.load %arg11[%c8, %c0_20] : memref<64x32xf32, #tpu.memory_space<vmem>>, vector<8x32xf32>
    tpu.vector_store %arg11[%c8, %c0_20], %27 {strides = array<i32>} : memref<64x32xf32, #tpu.memory_space<vmem>>, vector<8x32xf32>,
    %29 = vector.extract_strided_slice %14 {offsets = [16, 0], sizes = [8, 32], strides = [1, 1]} : vector<64x32xf32> to vector<8x32xf32>
    %cst_21 = arith.constant dense<0.000000e+00> : vector<8x32xf32>
    %30 = tpu.matmul %27, %16, %cst_21 {dimension_numbers = #tpu.dot_dimension_numbers<[1], [0], [0], [1], [0, 0, 1, 1], [], []>, precision = #tpu.contract_precision<fp32>} : vector<8x32xf32>, vector<32x32xf32>, vector<8x32xf32> -> vector<8x32xf32>
    %31 = arith.addf %29, %30 : vector<8x32xf32>
    %32 = math.tanh %31 : vector<8x32xf32>
    %c16 = arith.constant 16 : index
    %c0_22 = arith.constant 0 : index
    %33 = vector.load %arg11[%c16, %c0_22] : memref<64x32xf32, #tpu.memory_space<vmem>>, vector<8x32xf32>
    tpu.vector_store %arg11[%c16, %c0_22], %32 {strides = array<i32>} : memref<64x32xf32, #tpu.memory_space<vmem>>, vector<8x32xf32>,
    %34 = vector.extract_strided_slice %14 {offsets = [24, 0], sizes = [8, 32], strides = [1, 1]} : vector<64x32xf32> to vector<8x32xf32>
    %cst_23 = arith.constant dense<0.000000e+00> : vector<8x32xf32>
    %35 = tpu.matmul %32, %16, %cst_23 {dimension_numbers = #tpu.dot_dimension_numbers<[1], [0], [0], [1], [0, 0, 1, 1], [], []>, precision = #tpu.contract_precision<fp32>} : vector<8x32xf32>, vector<32x32xf32>, vector<8x32xf32> -> vector<8x32xf32>
    %36 = arith.addf %34, %35 : vector<8x32xf32>
    %37 = math.tanh %36 : vector<8x32xf32>
    %c24 = arith.constant 24 : index
    %c0_24 = arith.constant 0 : index
    %38 = vector.load %arg11[%c24, %c0_24] : memref<64x32xf32, #tpu.memory_space<vmem>>, vector<8x32xf32>
    tpu.vector_store %arg11[%c24, %c0_24], %37 {strides = array<i32>} : memref<64x32xf32, #tpu.memory_space<vmem>>, vector<8x32xf32>,
    %39 = vector.extract_strided_slice %14 {offsets = [32, 0], sizes = [8, 32], strides = [1, 1]} : vector<64x32xf32> to vector<8x32xf32>
    %cst_25 = arith.constant dense<0.000000e+00> : vector<8x32xf32>
    %40 = tpu.matmul %37, %16, %cst_25 {dimension_numbers = #tpu.dot_dimension_numbers<[1], [0], [0], [1], [0, 0, 1, 1], [], []>, precision = #tpu.contract_precision<fp32>} : vector<8x32xf32>, vector<32x32xf32>, vector<8x32xf32> -> vector<8x32xf32>
    %41 = arith.addf %39, %40 : vector<8x32xf32>
    %42 = math.tanh %41 : vector<8x32xf32>
    %c32 = arith.constant 32 : index
    %c0_26 = arith.constant 0 : index
    %43 = vector.load %arg11[%c32, %c0_26] : memref<64x32xf32, #tpu.memory_space<vmem>>, vector<8x32xf32>
    tpu.vector_store %arg11[%c32, %c0_26], %42 {strides = array<i32>} : memref<64x32xf32, #tpu.memory_space<vmem>>, vector<8x32xf32>,
    %44 = vector.extract_strided_slice %14 {offsets = [40, 0], sizes = [8, 32], strides = [1, 1]} : vector<64x32xf32> to vector<8x32xf32>
    %cst_27 = arith.constant dense<0.000000e+00> : vector<8x32xf32>
    %45 = tpu.matmul %42, %16, %cst_27 {dimension_numbers = #tpu.dot_dimension_numbers<[1], [0], [0], [1], [0, 0, 1, 1], [], []>, precision = #tpu.contract_precision<fp32>} : vector<8x32xf32>, vector<32x32xf32>, vector<8x32xf32> -> vector<8x32xf32>
    %46 = arith.addf %44, %45 : vector<8x32xf32>
    %47 = math.tanh %46 : vector<8x32xf32>
    %c40 = arith.constant 40 : index
    %c0_28 = arith.constant 0 : index
    %48 = vector.load %arg11[%c40, %c0_28] : memref<64x32xf32, #tpu.memory_space<vmem>>, vector<8x32xf32>
    tpu.vector_store %arg11[%c40, %c0_28], %47 {strides = array<i32>} : memref<64x32xf32, #tpu.memory_space<vmem>>, vector<8x32xf32>,
    %49 = vector.extract_strided_slice %14 {offsets = [48, 0], sizes = [8, 32], strides = [1, 1]} : vector<64x32xf32> to vector<8x32xf32>
    %cst_29 = arith.constant dense<0.000000e+00> : vector<8x32xf32>
    %50 = tpu.matmul %47, %16, %cst_29 {dimension_numbers = #tpu.dot_dimension_numbers<[1], [0], [0], [1], [0, 0, 1, 1], [], []>, precision = #tpu.contract_precision<fp32>} : vector<8x32xf32>, vector<32x32xf32>, vector<8x32xf32> -> vector<8x32xf32>
    %51 = arith.addf %49, %50 : vector<8x32xf32>
    %52 = math.tanh %51 : vector<8x32xf32>
    %c48 = arith.constant 48 : index
    %c0_30 = arith.constant 0 : index
    %53 = vector.load %arg11[%c48, %c0_30] : memref<64x32xf32, #tpu.memory_space<vmem>>, vector<8x32xf32>
    tpu.vector_store %arg11[%c48, %c0_30], %52 {strides = array<i32>} : memref<64x32xf32, #tpu.memory_space<vmem>>, vector<8x32xf32>,
    %54 = vector.extract_strided_slice %14 {offsets = [56, 0], sizes = [8, 32], strides = [1, 1]} : vector<64x32xf32> to vector<8x32xf32>
    %cst_31 = arith.constant dense<0.000000e+00> : vector<8x32xf32>
    %55 = tpu.matmul %52, %16, %cst_31 {dimension_numbers = #tpu.dot_dimension_numbers<[1], [0], [0], [1], [0, 0, 1, 1], [], []>, precision = #tpu.contract_precision<fp32>} : vector<8x32xf32>, vector<32x32xf32>, vector<8x32xf32> -> vector<8x32xf32>
    %56 = arith.addf %54, %55 : vector<8x32xf32>
    %57 = math.tanh %56 : vector<8x32xf32>
    %c56 = arith.constant 56 : index
    %c0_32 = arith.constant 0 : index
    %58 = vector.load %arg11[%c56, %c0_32] : memref<64x32xf32, #tpu.memory_space<vmem>>, vector<8x32xf32>
    tpu.vector_store %arg11[%c56, %c0_32], %57 {strides = array<i32>} : memref<64x32xf32, #tpu.memory_space<vmem>>, vector<8x32xf32>,
    %c0_33 = arith.constant 0 : index
    %c0_34 = arith.constant 0 : index
    %59 = vector.load %arg11[%c0_33, %c0_34] : memref<64x32xf32, #tpu.memory_space<vmem>>, vector<64x32xf32>
    %c1 = arith.constant 1 : index
    %c0_35 = arith.constant 0 : index
    %c0_36 = arith.constant 0 : index
    %60 = vector.load %arg3[%c1, %c0_35, %c0_36] : memref<2x32x32xf32, #tpu.memory_space<vmem>>, vector<1x32x32xf32>
    %61 = vector.shape_cast %60 : vector<1x32x32xf32> to vector<32x32xf32>
    %cst_37 = arith.constant dense<0.000000e+00> : vector<64x32xf32>
    %62 = tpu.matmul %59, %61, %cst_37 {dimension_numbers = #tpu.dot_dimension_numbers<[1], [0], [0], [1], [0, 0, 1, 1], [], []>, precision = #tpu.contract_precision<fp32>} : vector<64x32xf32>, vector<32x32xf32>, vector<64x32xf32> -> vector<64x32xf32>
    %c1_38 = arith.constant 1 : index
    %c0_39 = arith.constant 0 : index
    %c0_40 = arith.constant 0 : index
    %63 = vector.load %arg5[%c1_38, %c0_39, %c0_40] : memref<2x1x32xf32, #tpu.memory_space<vmem>>, vector<1x1x32xf32>
    %64 = vector.shape_cast %63 : vector<1x1x32xf32> to vector<1x32xf32>
    %65 = vector.broadcast %64 : vector<1x32xf32> to vector<64x32xf32>
    %66 = arith.addf %62, %65 : vector<64x32xf32>
    %c1_41 = arith.constant 1 : index
    %c0_42 = arith.constant 0 : index
    %c0_43 = arith.constant 0 : index
    %67 = vector.load %arg4[%c1_41, %c0_42, %c0_43] : memref<2x32x32xf32, #tpu.memory_space<vmem>>, vector<1x32x32xf32>
    %68 = vector.shape_cast %67 : vector<1x32x32xf32> to vector<32x32xf32>
    %c1_44 = arith.constant 1 : index
    %c0_45 = arith.constant 0 : index
    %c0_46 = arith.constant 0 : index
    %69 = vector.load %arg2[%c1_44, %c0_45, %c0_46] : memref<2x8x32xf32, #tpu.memory_space<vmem>>, vector<1x8x32xf32>
    %70 = vector.shape_cast %69 : vector<1x8x32xf32> to vector<8x32xf32>
    %71 = vector.extract_strided_slice %66 {offsets = [0, 0], sizes = [8, 32], strides = [1, 1]} : vector<64x32xf32> to vector<8x32xf32>
    %cst_47 = arith.constant dense<0.000000e+00> : vector<8x32xf32>
    %72 = tpu.matmul %70, %68, %cst_47 {dimension_numbers = #tpu.dot_dimension_numbers<[1], [0], [0], [1], [0, 0, 1, 1], [], []>, precision = #tpu.contract_precision<fp32>} : vector<8x32xf32>, vector<32x32xf32>, vector<8x32xf32> -> vector<8x32xf32>
    %73 = arith.addf %71, %72 : vector<8x32xf32>
    %74 = math.tanh %73 : vector<8x32xf32>
    %75 = vector.extract_strided_slice %66 {offsets = [8, 0], sizes = [8, 32], strides = [1, 1]} : vector<64x32xf32> to vector<8x32xf32>
    %cst_48 = arith.constant dense<0.000000e+00> : vector<8x32xf32>
    %76 = tpu.matmul %74, %68, %cst_48 {dimension_numbers = #tpu.dot_dimension_numbers<[1], [0], [0], [1], [0, 0, 1, 1], [], []>, precision = #tpu.contract_precision<fp32>} : vector<8x32xf32>, vector<32x32xf32>, vector<8x32xf32> -> vector<8x32xf32>
    %77 = arith.addf %75, %76 : vector<8x32xf32>
    %78 = math.tanh %77 : vector<8x32xf32>
    %79 = vector.extract_strided_slice %66 {offsets = [16, 0], sizes = [8, 32], strides = [1, 1]} : vector<64x32xf32> to vector<8x32xf32>
    %cst_49 = arith.constant dense<0.000000e+00> : vector<8x32xf32>
    %80 = tpu.matmul %78, %68, %cst_49 {dimension_numbers = #tpu.dot_dimension_numbers<[1], [0], [0], [1], [0, 0, 1, 1], [], []>, precision = #tpu.contract_precision<fp32>} : vector<8x32xf32>, vector<32x32xf32>, vector<8x32xf32> -> vector<8x32xf32>
    %81 = arith.addf %79, %80 : vector<8x32xf32>
    %82 = math.tanh %81 : vector<8x32xf32>
    %83 = vector.extract_strided_slice %66 {offsets = [24, 0], sizes = [8, 32], strides = [1, 1]} : vector<64x32xf32> to vector<8x32xf32>
    %cst_50 = arith.constant dense<0.000000e+00> : vector<8x32xf32>
    %84 = tpu.matmul %82, %68, %cst_50 {dimension_numbers = #tpu.dot_dimension_numbers<[1], [0], [0], [1], [0, 0, 1, 1], [], []>, precision = #tpu.contract_precision<fp32>} : vector<8x32xf32>, vector<32x32xf32>, vector<8x32xf32> -> vector<8x32xf32>
    %85 = arith.addf %83, %84 : vector<8x32xf32>
    %86 = math.tanh %85 : vector<8x32xf32>
    %87 = vector.extract_strided_slice %66 {offsets = [32, 0], sizes = [8, 32], strides = [1, 1]} : vector<64x32xf32> to vector<8x32xf32>
    %cst_51 = arith.constant dense<0.000000e+00> : vector<8x32xf32>
    %88 = tpu.matmul %86, %68, %cst_51 {dimension_numbers = #tpu.dot_dimension_numbers<[1], [0], [0], [1], [0, 0, 1, 1], [], []>, precision = #tpu.contract_precision<fp32>} : vector<8x32xf32>, vector<32x32xf32>, vector<8x32xf32> -> vector<8x32xf32>
    %89 = arith.addf %87, %88 : vector<8x32xf32>
    %90 = math.tanh %89 : vector<8x32xf32>
    %91 = vector.extract_strided_slice %66 {offsets = [40, 0], sizes = [8, 32], strides = [1, 1]} : vector<64x32xf32> to vector<8x32xf32>
    %cst_52 = arith.constant dense<0.000000e+00> : vector<8x32xf32>
    %92 = tpu.matmul %90, %68, %cst_52 {dimension_numbers = #tpu.dot_dimension_numbers<[1], [0], [0], [1], [0, 0, 1, 1], [], []>, precision = #tpu.contract_precision<fp32>} : vector<8x32xf32>, vector<32x32xf32>, vector<8x32xf32> -> vector<8x32xf32>
    %93 = arith.addf %91, %92 : vector<8x32xf32>
    %94 = math.tanh %93 : vector<8x32xf32>
    %95 = vector.extract_strided_slice %66 {offsets = [48, 0], sizes = [8, 32], strides = [1, 1]} : vector<64x32xf32> to vector<8x32xf32>
    %cst_53 = arith.constant dense<0.000000e+00> : vector<8x32xf32>
    %96 = tpu.matmul %94, %68, %cst_53 {dimension_numbers = #tpu.dot_dimension_numbers<[1], [0], [0], [1], [0, 0, 1, 1], [], []>, precision = #tpu.contract_precision<fp32>} : vector<8x32xf32>, vector<32x32xf32>, vector<8x32xf32> -> vector<8x32xf32>
    %97 = arith.addf %95, %96 : vector<8x32xf32>
    %98 = math.tanh %97 : vector<8x32xf32>
    %99 = vector.extract_strided_slice %66 {offsets = [56, 0], sizes = [8, 32], strides = [1, 1]} : vector<64x32xf32> to vector<8x32xf32>
    %cst_54 = arith.constant dense<0.000000e+00> : vector<8x32xf32>
    %100 = tpu.matmul %98, %68, %cst_54 {dimension_numbers = #tpu.dot_dimension_numbers<[1], [0], [0], [1], [0, 0, 1, 1], [], []>, precision = #tpu.contract_precision<fp32>} : vector<8x32xf32>, vector<32x32xf32>, vector<8x32xf32> -> vector<8x32xf32>
    %101 = arith.addf %99, %100 : vector<8x32xf32>
    %102 = math.tanh %101 : vector<8x32xf32>
    %c0_55 = arith.constant 0 : index
    %c0_56 = arith.constant 0 : index
    %103 = vector.load %arg6[%c0_55, %c0_56] : memref<32x64xf32, #tpu.memory_space<vmem>>, vector<32x64xf32>
    %cst_57 = arith.constant dense<0.000000e+00> : vector<8x64xf32>
    %104 = tpu.matmul %102, %103, %cst_57 {dimension_numbers = #tpu.dot_dimension_numbers<[1], [0], [0], [1], [0, 0, 1, 1], [], []>, precision = #tpu.contract_precision<fp32>} : vector<8x32xf32>, vector<32x64xf32>, vector<8x64xf32> -> vector<8x64xf32>
    %c0_58 = arith.constant 0 : index
    %c0_59 = arith.constant 0 : index
    %105 = vector.load %arg7[%c0_58, %c0_59] : memref<1x64xf32, #tpu.memory_space<vmem>>, vector<1x64xf32>
    %106 = vector.broadcast %105 : vector<1x64xf32> to vector<8x64xf32>
    %107 = arith.addf %104, %106 : vector<8x64xf32>
    %cst_60 = arith.constant 0.000000e+00 : f32
    %108 = vector.broadcast %cst_60 : f32 to vector<8x64xf32>
    %109 = arith.maximumf %107, %108 : vector<8x64xf32>
    %c0_61 = arith.constant 0 : index
    %c0_62 = arith.constant 0 : index
    %110 = vector.load %arg8[%c0_61, %c0_62] : memref<1x64xf32, #tpu.memory_space<vmem>>, vector<1x64xf32>
    %111 = vector.broadcast %110 : vector<1x64xf32> to vector<8x64xf32>
    %112 = arith.mulf %109, %111 : vector<8x64xf32>
    %cst_63 = arith.constant dense<0.000000e+00> : vector<8xf32>
    %113 = vector.multi_reduction <add>, %112, %cst_63 [1] : vector<8x64xf32> to vector<8xf32>
    %114 = vector.shape_cast %113 : vector<8xf32> to vector<8x1xf32>
    %c0_64 = arith.constant 0 : index
    %c0_65 = arith.constant 0 : index
    %115 = memref.load %arg9[%c0_64, %c0_65] : memref<1x1xf32, #tpu.memory_space<smem>>
    %116 = vector.broadcast %115 : f32 to vector<8x1xf32>
    %117 = arith.addf %114, %116 : vector<8x1xf32>
    %118 = arith.negf %117 : vector<8x1xf32>
    %119 = math.exp %118 : vector<8x1xf32>
    %cst_66 = arith.constant 1.000000e+00 : f32
    %120 = vector.broadcast %cst_66 : f32 to vector<8x1xf32>
    %121 = arith.addf %120, %119 : vector<8x1xf32>
    %122 = arith.divf %120, %121 : vector<8x1xf32>
    %c0_67 = arith.constant 0 : index
    %c0_68 = arith.constant 0 : index
    %123 = vector.load %arg10[%c0_67, %c0_68] : memref<8x1xf32, #tpu.memory_space<vmem>>, vector<8x1xf32>
    tpu.vector_store %arg10[%c0_67, %c0_68], %122 {strides = array<i32>} : memref<8x1xf32, #tpu.memory_space<vmem>>, vector<8x1xf32>,
    return
  }
}

</mosaic_0001>

<llo_original>
// kernel: tpu_custom_call.1
$region0: #{tpu_custom_call.1}
  #allocation0 [shape = 'u32[]', space=smem, size = 0x4, offset = 0x4, fixed_abs, tag = 'smem constant byte address 0x4 - core index']
  #allocation1 [shape = 'u32[72,128]{1,0:T(1,128)}', space=vmem, size = 0x9000, scoped, tag = 'internal scratch']
  #allocation2 [shape = 'f32[64,32]{1,0:T(8,128)}', space=vmem, size = 0x8000, scoped, tag = 'scratch operand']
  #allocation3 [shape = 'f32[1,1]{1,0:T(1,128)S(6)}', space=smem, size = 0x200, scoped, tag = 'scoped memory for tpu_custom_call.1']
  %s0 = inlined_call_operand.vmem [shape: s32[64,1], index: 0, kind: input, shape index: {}]
  %s1 = inlined_call_operand.vmem [shape: f32[50,32], index: 1, kind: input, shape index: {}]
  %s2 = inlined_call_operand.vmem [shape: f32[2,8,32], index: 2, kind: input, shape index: {}]
  %s3 = inlined_call_operand.vmem [shape: f32[2,32,32], index: 3, kind: input, shape index: {}]
  %s4 = inlined_call_operand.vmem [shape: f32[2,32,32], index: 4, kind: input, shape index: {}]
  %s5 = inlined_call_operand.vmem [shape: f32[2,1,32], index: 5, kind: input, shape index: {}]
  %s6 = inlined_call_operand.hbm [shape: f32[32,64], index: 6, kind: input, shape index: {}]
  %s7 = inlined_call_operand.vmem [shape: f32[1,64], index: 7, kind: input, shape index: {}]
  %s8 = inlined_call_operand.vmem [shape: f32[1,64], index: 8, kind: input, shape index: {}]
  %s9 = inlined_call_operand.<no memory space> [shape: f32[1,1], index: 9, kind: input, shape index: {}]
  %s10 = inlined_call_operand.vmem [shape: f32[8,1], index: 10, kind: output, shape index: {}]
  %s11 = sld [smem:[#allocation0]]
  $region54: #{tpu_custom_call.1} parent=0
    _
  %s13 = ssub.s32 1, %s11
  %s14 = scalar_select 0, %s13, %s11
  %15 = sst [smem:[#allocation3]] %s9
  $region1: #{tpu_custom_call.1} parent=0
    #allocation4 [shape = 'u8[16384]{0}', space=vmem, size = 0x4000, scoped, tag = 'input window, operand 6, single buffered']
    #allocation5 [shape = 's32[1]{0}', space=sflag, size = 0x4, scoped, tag = 'scoped memory for tpu_custom_call.1']
    %16 = vsyncpa [#allocation5], 0
    // Predicated region
    $region2: #{tpu_custom_call.1} parent=1 // pred_check
      _
    $region3: #{tpu_custom_call.1} parent=1 // pred_check_branch
      %18 = sbr.rel (0) target = $region5
    $region4: #{tpu_custom_call.1} parent=1 // pred_region
      _
    $region5: #{tpu_custom_call.1} parent=1 // pred_fallthru
      _
    // Predicated region
    $region6: #{tpu_custom_call.1} parent=1 // pred_check
      _
    $region7: #{tpu_custom_call.1} parent=1 // pred_check_branch
      %20 = sbr.rel (0) target = $region9
    $region8: #{tpu_custom_call.1} parent=1 // pred_region
      _
    $region9: #{tpu_custom_call.1} parent=1 // pred_fallthru
      _
    // Predicated region
    $region10: #{tpu_custom_call.1} parent=1 // pred_check
      _
    $region11: #{tpu_custom_call.1} parent=1 // pred_check_branch
      %22 = sbr.rel (0) target = $region13
    $region12: #{tpu_custom_call.1} parent=1 // pred_region
      _
    $region13: #{tpu_custom_call.1} parent=1 // pred_fallthru
      _
    // Predicated region
    $region14: #{tpu_custom_call.1} parent=1 // pred_check
      _
    $region15: #{tpu_custom_call.1} parent=1 // pred_check_branch
      %24 = sbr.rel (0) target = $region17
    $region16: #{tpu_custom_call.1} parent=1 // pred_region
      _
    $region17: #{tpu_custom_call.1} parent=1 // pred_fallthru
      _
    // Predicated region
    $region18: #{tpu_custom_call.1} parent=1 // pred_check
      _
    $region19: #{tpu_custom_call.1} parent=1 // pred_check_branch
      %26 = sbr.rel (0) target = $region21
    $region20: #{tpu_custom_call.1} parent=1 // pred_region
      _
    $region21: #{tpu_custom_call.1} parent=1 // pred_fallthru
      _
    // Predicated region
    $region22: #{tpu_custom_call.1} parent=1 // pred_check
      _
    $region23: #{tpu_custom_call.1} parent=1 // pred_check_branch
      %28 = sbr.rel (0) target = $region25
    $region24: #{tpu_custom_call.1} parent=1 // pred_region
      _
    $region25: #{tpu_custom_call.1} parent=1 // pred_fallthru
      _
    // Predicated region
    $region26: #{tpu_custom_call.1} parent=1 // pred_check
      _
    $region27: #{tpu_custom_call.1} parent=1 // pred_check_branch
      %30 = sbr.rel (0) target = $region29
    $region28: #{tpu_custom_call.1} parent=1 // pred_region
      %32 = vsyncadd [#allocation5], 0
      %s33 = sshll.u32 %s6, 4
      %s34 = int_to_ptr.hbm [resolvable:$true] %s33
      %s35 = sshll.u32 [#allocation4], 4
      %s36 = int_to_ptr.vmem [resolvable:$true] %s35
      %41 = dma.hbm_to_vmem [thread:$0]  %s34, 512, %s36, [#allocation5], 128, 128, 8
    $region29: #{tpu_custom_call.1} parent=1 // pred_fallthru
      _
    // Predicated region
    $region30: #{tpu_custom_call.1} parent=1 // pred_check
      _
    $region31: #{tpu_custom_call.1} parent=1 // pred_check_branch
      %43 = sbr.rel (0) target = $region33
    $region32: #{tpu_custom_call.1} parent=1 // pred_region
      _
    $region33: #{tpu_custom_call.1} parent=1 // pred_fallthru
      _
    // Predicated region
    $region34: #{tpu_custom_call.1} parent=1 // pred_check
      _
    $region35: #{tpu_custom_call.1} parent=1 // pred_check_branch
      %45 = sbr.rel (0) target = $region37
    $region36: #{tpu_custom_call.1} parent=1 // pred_region
      _
    $region37: #{tpu_custom_call.1} parent=1 // pred_fallthru
      _
    // Predicated region
    $region38: #{tpu_custom_call.1} parent=1 // pred_check
      _
    $region39: #{tpu_custom_call.1} parent=1 // pred_check_branch
      %47 = sbr.rel (0) target = $region41
    $region40: #{tpu_custom_call.1} parent=1 // pred_region
      _
    $region41: #{tpu_custom_call.1} parent=1 // pred_fallthru
      _
    // Predicated region
    $region42: #{tpu_custom_call.1} parent=1 // pred_check
      _
    $region43: #{tpu_custom_call.1} parent=1 // pred_check_branch
      %49 = sbr.rel (0) target = $region45
    $region44: #{tpu_custom_call.1} parent=1 // pred_region
      %51 = dma.done [#allocation5], 512
    $region45: #{tpu_custom_call.1} parent=1 // pred_fallthru
      _
    %v52 = vld [vmem:[%s0] sm:$0xff]
    %v53 = vld [vmem:[%s0 + $0x8] sm:$0xff]
    %v54 = vld [vmem:[%s0 + $0x10] sm:$0xff]
    %v55 = vld [vmem:[%s0 + $0x18] sm:$0xff]
    %v56 = vld [vmem:[%s0 + $0x20] sm:$0xff]
    %v57 = vld [vmem:[%s0 + $0x28] sm:$0xff]
    %v58 = vld [vmem:[%s0 + $0x30] sm:$0xff]
    %v59 = vld [vmem:[%s0 + $0x38] sm:$0xff]
    %v60 = vlaneseq
    %v61 = vand.u32 %v60, 127
    %62 = vset.pattern.permute.xlu0 0
    %63 = vperm.xlu0 %62, %v52
    %v64 = vpop.permute.xlu0 %63
    %65 = vset.pattern.permute.xlu0 0
    %66 = vperm.xlu0 %65, %v53
    %v67 = vpop.permute.xlu0 %66
    %68 = vset.pattern.permute.xlu0 0
    %69 = vperm.xlu0 %68, %v54
    %v70 = vpop.permute.xlu0 %69
    %71 = vset.pattern.permute.xlu0 0
    %72 = vperm.xlu0 %71, %v55
    %v73 = vpop.permute.xlu0 %72
    %74 = vset.pattern.permute.xlu0 0
    %75 = vperm.xlu0 %74, %v56
    %v76 = vpop.permute.xlu0 %75
    %77 = vset.pattern.permute.xlu0 0
    %78 = vperm.xlu0 %77, %v57
    %v79 = vpop.permute.xlu0 %78
    %80 = vset.pattern.permute.xlu0 0
    %81 = vperm.xlu0 %80, %v58
    %v82 = vpop.permute.xlu0 %81
    %83 = vset.pattern.permute.xlu0 0
    %84 = vperm.xlu0 %83, %v59
    %v85 = vpop.permute.xlu0 %84
    %vm86 = vcmp.eq.s32.totalorder %v64, %v61
    %vm87 = vcmp.eq.s32.totalorder %v67, %v61
    %vm88 = vcmp.eq.s32.totalorder %v70, %v61
    %vm89 = vcmp.eq.s32.totalorder %v73, %v61
    %vm90 = vcmp.eq.s32.totalorder %v76, %v61
    %vm91 = vcmp.eq.s32.totalorder %v79, %v61
    %vm92 = vcmp.eq.s32.totalorder %v82, %v61
    %vm93 = vcmp.eq.s32.totalorder %v85, %v61
    %v94 = vsel %vm86, 1, 0
    %v95 = vsel %vm87, 1, 0
    %v96 = vsel %vm88, 1, 0
    %v97 = vsel %vm89, 1, 0
    %v98 = vsel %vm90, 1, 0
    %v99 = vsel %vm91, 1, 0
    %v100 = vsel %vm92, 1, 0
    %v101 = vsel %vm93, 1, 0
    %v102 = vcvt.s32.f32 %v94
    %v103 = vcvt.s32.f32 %v95
    %v104 = vcvt.s32.f32 %v96
    %v105 = vcvt.s32.f32 %v97
    %v106 = vcvt.s32.f32 %v98
    %v107 = vcvt.s32.f32 %v99
    %v108 = vcvt.s32.f32 %v100
    %v109 = vcvt.s32.f32 %v101
    %v110 = vld [vmem:[%s1] sm:$0xff]
    %v111 = vld [vmem:[%s1 + $0x8] sm:$0xff]
    %v112 = vld [vmem:[%s1 + $0x10] sm:$0xff]
    %v113 = vld [vmem:[%s1 + $0x18] sm:$0xff]
    %v114 = vld [vmem:[%s1 + $0x20] sm:$0xff]
    %v115 = vld [vmem:[%s1 + $0x28] sm:$0xff]
    %v116 = vld [vmem:[%s1 + $0x30] sm:$0x3]
    %vm117 = vcmask 408576
    %v119 = vsel %vm117, %v102, 0
    %v122 = vsel %vm117, %v103, 0
    %v125 = vsel %vm117, %v104, 0
    %v128 = vsel %vm117, %v105, 0
    %v131 = vsel %vm117, %v106, 0
    %v134 = vsel %vm117, %v107, 0
    %v137 = vsel %vm117, %v108, 0
    %v140 = vsel %vm117, %v109, 0
    %vm142 = vcmask 1041408
    %v144 = vsel %vm142, %v116, 0
    %146 = vmatpush.msra.mxu0 0.0
    %147 = vmatpush.msra.mxu0 0.0
    %148 = vmatpush.msra.mxu0 0.0
    %149 = vmatpush.msra.mxu0 0.0
    %150 = vmatpush.msra.mxu0 0.0
    %151 = vmatpush.msra.mxu0 0.0
    %152 = vmatpush.msra.mxu0 0.0
    %153 = vmatpush.msra.mxu0 0.0
    %154 = vmatpush.msra.mxu0 0.0
    %v155 = vand.u32 %v144, 4294901760
    %156 = vmatpush.msra.mxu0 %v155
    %v157 = vand.u32 %v115, 4294901760
    %158 = vmatpush.msra.mxu0 %v157
    %v159 = vand.u32 %v114, 4294901760
    %160 = vmatpush.msra.mxu0 %v159
    %v161 = vand.u32 %v113, 4294901760
    %162 = vmatpush.msra.mxu0 %v161
    %v163 = vand.u32 %v112, 4294901760
    %164 = vmatpush.msra.mxu0 %v163
    %v165 = vand.u32 %v111, 4294901760
    %166 = vmatpush.msra.mxu0 %v165
    %v167 = vand.u32 %v110, 4294901760
    %168 = vmatpush.msra.mxu0 %v167
    %v169 = vand.u32 %v119, 4294901760
    %v170 = vsub.f32 %v119, %v169
    %v171 = vand.u32 %v170, 4294901760
    %v172 = vsub.f32 %v170, %v171
    %v173 = vand.u32 %v172, 4294901760
    %174 = vmatmul.f32.gmra.mxu0 %v173
    %v175 = vpop.f32.mrf.mxu0
    %v176 = vadd.f32 0.0, %v175
    %v177 = vand.u32 %v122, 4294901760
    %v178 = vsub.f32 %v122, %v177
    %v179 = vand.u32 %v178, 4294901760
    %v180 = vsub.f32 %v178, %v179
    %v181 = vand.u32 %v180, 4294901760
    %182 = vmatmul.f32.gmra.mxu0 %v181
    %v183 = vpop.f32.mrf.mxu0
    %v184 = vadd.f32 0.0, %v183
    %v185 = vand.u32 %v125, 4294901760
    %v186 = vsub.f32 %v125, %v185
    %v187 = vand.u32 %v186, 4294901760
    %v188 = vsub.f32 %v186, %v187
    %v189 = vand.u32 %v188, 4294901760
    %190 = vmatmul.f32.gmra.mxu0 %v189
    %v191 = vpop.f32.mrf.mxu0
    %v192 = vadd.f32 0.0, %v191
    %v193 = vand.u32 %v128, 4294901760
    %v194 = vsub.f32 %v128, %v193
    %v195 = vand.u32 %v194, 4294901760
    %v196 = vsub.f32 %v194, %v195
    %v197 = vand.u32 %v196, 4294901760
    %198 = vmatmul.f32.gmra.mxu0 %v197
    %v199 = vpop.f32.mrf.mxu0
    %v200 = vadd.f32 0.0, %v199
    %v201 = vand.u32 %v131, 4294901760
    %v202 = vsub.f32 %v131, %v201
    %v203 = vand.u32 %v202, 4294901760
    %v204 = vsub.f32 %v202, %v203
    %v205 = vand.u32 %v204, 4294901760
    %206 = vmatmul.f32.gmra.mxu0 %v205
    %v207 = vpop.f32.mrf.mxu0
    %v208 = vadd.f32 0.0, %v207
    %v209 = vand.u32 %v134, 4294901760
    %v210 = vsub.f32 %v134, %v209
    %v211 = vand.u32 %v210, 4294901760
    %v212 = vsub.f32 %v210, %v211
    %v213 = vand.u32 %v212, 4294901760
    %214 = vmatmul.f32.gmra.mxu0 %v213
    %v215 = vpop.f32.mrf.mxu0
    %v216 = vadd.f32 0.0, %v215
    %v217 = vand.u32 %v137, 4294901760
    %v218 = vsub.f32 %v137, %v217
    %v219 = vand.u32 %v218, 4294901760
    %v220 = vsub.f32 %v218, %v219
    %v221 = vand.u32 %v220, 4294901760
    %222 = vmatmul.f32.gmra.mxu0 %v221
    %v223 = vpop.f32.mrf.mxu0
    %v224 = vadd.f32 0.0, %v223
    %v225 = vand.u32 %v140, 4294901760
    %v226 = vsub.f32 %v140, %v225
    %v227 = vand.u32 %v226, 4294901760
    %v228 = vsub.f32 %v226, %v227
    %v229 = vand.u32 %v228, 4294901760
    %230 = vmatmul.f32.gmra.mxu0 %v229
    %v231 = vpop.f32.mrf.mxu0
    %v232 = vadd.f32 0.0, %v231
    %233 = vdwg.mxu0
    %234 = vmatpush.msra.mxu0 0.0
    %235 = vmatpush.msra.mxu0 0.0
    %236 = vmatpush.msra.mxu0 0.0
    %237 = vmatpush.msra.mxu0 0.0
    %238 = vmatpush.msra.mxu0 0.0
    %239 = vmatpush.msra.mxu0 0.0
    %240 = vmatpush.msra.mxu0 0.0
    %241 = vmatpush.msra.mxu0 0.0
    %242 = vmatpush.msra.mxu0 0.0
    %v243 = vand.u32 %v144, 4294901760
    %v244 = vsub.f32 %v144, %v243
    %v245 = vand.u32 %v244, 4294901760
    %v246 = vsub.f32 %v244, %v245
    %v247 = vand.u32 %v246, 4294901760
    %248 = vmatpush.msra.mxu0 %v247
    %v249 = vand.u32 %v115, 4294901760
    %v250 = vsub.f32 %v115, %v249
    %v251 = vand.u32 %v250, 4294901760
    %v252 = vsub.f32 %v250, %v251
    %v253 = vand.u32 %v252, 4294901760
    %254 = vmatpush.msra.mxu0 %v253
    %v255 = vand.u32 %v114, 4294901760
    %v256 = vsub.f32 %v114, %v255
    %v257 = vand.u32 %v256, 4294901760
    %v258 = vsub.f32 %v256, %v257
    %v259 = vand.u32 %v258, 4294901760
    %260 = vmatpush.msra.mxu0 %v259
    %v261 = vand.u32 %v113, 4294901760
    %v262 = vsub.f32 %v113, %v261
    %v263 = vand.u32 %v262, 4294901760
    %v264 = vsub.f32 %v262, %v263
    %v265 = vand.u32 %v264, 4294901760
    %266 = vmatpush.msra.mxu0 %v265
    %v267 = vand.u32 %v112, 4294901760
    %v268 = vsub.f32 %v112, %v267
    %v269 = vand.u32 %v268, 4294901760
    %v270 = vsub.f32 %v268, %v269
    %v271 = vand.u32 %v270, 4294901760
    %272 = vmatpush.msra.mxu0 %v271
    %v273 = vand.u32 %v111, 4294901760
    %v274 = vsub.f32 %v111, %v273
    %v275 = vand.u32 %v274, 4294901760
    %v276 = vsub.f32 %v274, %v275
    %v277 = vand.u32 %v276, 4294901760
    %278 = vmatpush.msra.mxu0 %v277
    %v279 = vand.u32 %v110, 4294901760
    %v280 = vsub.f32 %v110, %v279
    %v281 = vand.u32 %v280, 4294901760
    %v282 = vsub.f32 %v280, %v281
    %v283 = vand.u32 %v282, 4294901760
    %284 = vmatpush.msra.mxu0 %v283
    %v285 = vand.u32 %v119, 4294901760
    %286 = vmatmul.f32.gmra.mxu0 %v285
    %v287 = vpop.f32.mrf.mxu0
    %v288 = vadd.f32 %v176, %v287
    %v289 = vand.u32 %v122, 4294901760
    %290 = vmatmul.f32.gmra.mxu0 %v289
    %v291 = vpop.f32.mrf.mxu0
    %v292 = vadd.f32 %v184, %v291
    %v293 = vand.u32 %v125, 4294901760
    %294 = vmatmul.f32.gmra.mxu0 %v293
    %v295 = vpop.f32.mrf.mxu0
    %v296 = vadd.f32 %v192, %v295
    %v297 = vand.u32 %v128, 4294901760
    %298 = vmatmul.f32.gmra.mxu0 %v297
    %v299 = vpop.f32.mrf.mxu0
    %v300 = vadd.f32 %v200, %v299
    %v301 = vand.u32 %v131, 4294901760
    %302 = vmatmul.f32.gmra.mxu0 %v301
    %v303 = vpop.f32.mrf.mxu0
    %v304 = vadd.f32 %v208, %v303
    %v305 = vand.u32 %v134, 4294901760
    %306 = vmatmul.f32.gmra.mxu0 %v305
    %v307 = vpop.f32.mrf.mxu0
    %v308 = vadd.f32 %v216, %v307
    %v309 = vand.u32 %v137, 4294901760
    %310 = vmatmul.f32.gmra.mxu0 %v309
    %v311 = vpop.f32.mrf.mxu0
    %v312 = vadd.f32 %v224, %v311
    %v313 = vand.u32 %v140, 4294901760
    %314 = vmatmul.f32.gmra.mxu0 %v313
    %v315 = vpop.f32.mrf.mxu0
    %v316 = vadd.f32 %v232, %v315
    %317 = vdwg.mxu0
    %318 = vmatpush.msra.mxu0 0.0
    %319 = vmatpush.msra.mxu0 0.0
    %320 = vmatpush.msra.mxu0 0.0
    %321 = vmatpush.msra.mxu0 0.0
    %322 = vmatpush.msra.mxu0 0.0
    %323 = vmatpush.msra.mxu0 0.0
    %324 = vmatpush.msra.mxu0 0.0
    %325 = vmatpush.msra.mxu0 0.0
    %326 = vmatpush.msra.mxu0 0.0
    %v327 = vand.u32 %v144, 4294901760
    %v328 = vsub.f32 %v144, %v327
    %329 = vmatpush.msra.mxu0 %v328
    %v330 = vand.u32 %v115, 4294901760
    %v331 = vsub.f32 %v115, %v330
    %332 = vmatpush.msra.mxu0 %v331
    %v333 = vand.u32 %v114, 4294901760
    %v334 = vsub.f32 %v114, %v333
    %335 = vmatpush.msra.mxu0 %v334
    %v336 = vand.u32 %v113, 4294901760
    %v337 = vsub.f32 %v113, %v336
    %338 = vmatpush.msra.mxu0 %v337
    %v339 = vand.u32 %v112, 4294901760
    %v340 = vsub.f32 %v112, %v339
    %341 = vmatpush.msra.mxu0 %v340
    %v342 = vand.u32 %v111, 4294901760
    %v343 = vsub.f32 %v111, %v342
    %344 = vmatpush.msra.mxu0 %v343
    %v345 = vand.u32 %v110, 4294901760
    %v346 = vsub.f32 %v110, %v345
    %347 = vmatpush.msra.mxu0 %v346
    %v348 = vand.u32 %v119, 4294901760
    %v349 = vsub.f32 %v119, %v348
    %350 = vmatmul.f32.gmra.mxu0 %v349
    %v351 = vpop.f32.mrf.mxu0
    %v352 = vadd.f32 %v288, %v351
    %v353 = vand.u32 %v122, 4294901760
    %v354 = vsub.f32 %v122, %v353
    %355 = vmatmul.f32.gmra.mxu0 %v354
    %v356 = vpop.f32.mrf.mxu0
    %v357 = vadd.f32 %v292, %v356
    %v358 = vand.u32 %v125, 4294901760
    %v359 = vsub.f32 %v125, %v358
    %360 = vmatmul.f32.gmra.mxu0 %v359
    %v361 = vpop.f32.mrf.mxu0
    %v362 = vadd.f32 %v296, %v361
    %v363 = vand.u32 %v128, 4294901760
    %v364 = vsub.f32 %v128, %v363
    %365 = vmatmul.f32.gmra.mxu0 %v364
    %v366 = vpop.f32.mrf.mxu0
    %v367 = vadd.f32 %v300, %v366
    %v368 = vand.u32 %v131, 4294901760
    %v369 = vsub.f32 %v131, %v368
    %370 = vmatmul.f32.gmra.mxu0 %v369
    %v371 = vpop.f32.mrf.mxu0
    %v372 = vadd.f32 %v304, %v371
    %v373 = vand.u32 %v134, 4294901760
    %v374 = vsub.f32 %v134, %v373
    %375 = vmatmul.f32.gmra.mxu0 %v374
    %v376 = vpop.f32.mrf.mxu0
    %v377 = vadd.f32 %v308, %v376
    %v378 = vand.u32 %v137, 4294901760
    %v379 = vsub.f32 %v137, %v378
    %380 = vmatmul.f32.gmra.mxu0 %v379
    %v381 = vpop.f32.mrf.mxu0
    %v382 = vadd.f32 %v312, %v381
    %v383 = vand.u32 %v140, 4294901760
    %v384 = vsub.f32 %v140, %v383
    %385 = vmatmul.f32.gmra.mxu0 %v384
    %v386 = vpop.f32.mrf.mxu0
    %v387 = vadd.f32 %v316, %v386
    %388 = vdwg.mxu0
    %389 = vmatpush.msra.mxu0 0.0
    %390 = vmatpush.msra.mxu0 0.0
    %391 = vmatpush.msra.mxu0 0.0
    %392 = vmatpush.msra.mxu0 0.0
    %393 = vmatpush.msra.mxu0 0.0
    %394 = vmatpush.msra.mxu0 0.0
    %395 = vmatpush.msra.mxu0 0.0
    %396 = vmatpush.msra.mxu0 0.0
    %397 = vmatpush.msra.mxu0 0.0
    %v398 = vand.u32 %v144, 4294901760
    %399 = vmatpush.msra.mxu0 %v398
    %v400 = vand.u32 %v115, 4294901760
    %401 = vmatpush.msra.mxu0 %v400
    %v402 = vand.u32 %v114, 4294901760
    %403 = vmatpush.msra.mxu0 %v402
    %v404 = vand.u32 %v113, 4294901760
    %405 = vmatpush.msra.mxu0 %v404
    %v406 = vand.u32 %v112, 4294901760
    %407 = vmatpush.msra.mxu0 %v406
    %v408 = vand.u32 %v111, 4294901760
    %409 = vmatpush.msra.mxu0 %v408
    %v410 = vand.u32 %v110, 4294901760
    %411 = vmatpush.msra.mxu0 %v410
    %v412 = vand.u32 %v119, 4294901760
    %v413 = vsub.f32 %v119, %v412
    %v414 = vand.u32 %v413, 4294901760
    %415 = vmatmul.f32.gmra.mxu0 %v414
    %v416 = vpop.f32.mrf.mxu0
    %v417 = vadd.f32 %v352, %v416
    %v418 = vand.u32 %v122, 4294901760
    %v419 = vsub.f32 %v122, %v418
    %v420 = vand.u32 %v419, 4294901760
    %421 = vmatmul.f32.gmra.mxu0 %v420
    %v422 = vpop.f32.mrf.mxu0
    %v423 = vadd.f32 %v357, %v422
    %v424 = vand.u32 %v125, 4294901760
    %v425 = vsub.f32 %v125, %v424
    %v426 = vand.u32 %v425, 4294901760
    %427 = vmatmul.f32.gmra.mxu0 %v426
    %v428 = vpop.f32.mrf.mxu0
    %v429 = vadd.f32 %v362, %v428
    %v430 = vand.u32 %v128, 4294901760
    %v431 = vsub.f32 %v128, %v430
    %v432 = vand.u32 %v431, 4294901760
    %433 = vmatmul.f32.gmra.mxu0 %v432
    %v434 = vpop.f32.mrf.mxu0
    %v435 = vadd.f32 %v367, %v434
    %v436 = vand.u32 %v131, 4294901760
    %v437 = vsub.f32 %v131, %v436
    %v438 = vand.u32 %v437, 4294901760
    %439 = vmatmul.f32.gmra.mxu0 %v438
    %v440 = vpop.f32.mrf.mxu0
    %v441 = vadd.f32 %v372, %v440
    %v442 = vand.u32 %v134, 4294901760
    %v443 = vsub.f32 %v134, %v442
    %v444 = vand.u32 %v443, 4294901760
    %445 = vmatmul.f32.gmra.mxu0 %v444
    %v446 = vpop.f32.mrf.mxu0
    %v447 = vadd.f32 %v377, %v446
    %v448 = vand.u32 %v137, 4294901760
    %v449 = vsub.f32 %v137, %v448
    %v450 = vand.u32 %v449, 4294901760
    %451 = vmatmul.f32.gmra.mxu0 %v450
    %v452 = vpop.f32.mrf.mxu0
    %v453 = vadd.f32 %v382, %v452
    %v454 = vand.u32 %v140, 4294901760
    %v455 = vsub.f32 %v140, %v454
    %v456 = vand.u32 %v455, 4294901760
    %457 = vmatmul.f32.gmra.mxu0 %v456
    %v458 = vpop.f32.mrf.mxu0
    %v459 = vadd.f32 %v387, %v458
    %460 = vdwg.mxu0
    %461 = vmatpush.msra.mxu0 0.0
    %462 = vmatpush.msra.mxu0 0.0
    %463 = vmatpush.msra.mxu0 0.0
    %464 = vmatpush.msra.mxu0 0.0
    %465 = vmatpush.msra.mxu0 0.0
    %466 = vmatpush.msra.mxu0 0.0
    %467 = vmatpush.msra.mxu0 0.0
    %468 = vmatpush.msra.mxu0 0.0
    %469 = vmatpush.msra.mxu0 0.0
    %v470 = vand.u32 %v144, 4294901760
    %v471 = vsub.f32 %v144, %v470
    %v472 = vand.u32 %v471, 4294901760
    %473 = vmatpush.msra.mxu0 %v472
    %v474 = vand.u32 %v115, 4294901760
    %v475 = vsub.f32 %v115, %v474
    %v476 = vand.u32 %v475, 4294901760
    %477 = vmatpush.msra.mxu0 %v476
    %v478 = vand.u32 %v114, 4294901760
    %v479 = vsub.f32 %v114, %v478
    %v480 = vand.u32 %v479, 4294901760
    %481 = vmatpush.msra.mxu0 %v480
    %v482 = vand.u32 %v113, 4294901760
    %v483 = vsub.f32 %v113, %v482
    %v484 = vand.u32 %v483, 4294901760
    %485 = vmatpush.msra.mxu0 %v484
    %v486 = vand.u32 %v112, 4294901760
    %v487 = vsub.f32 %v112, %v486
    %v488 = vand.u32 %v487, 4294901760
    %489 = vmatpush.msra.mxu0 %v488
    %v490 = vand.u32 %v111, 4294901760
    %v491 = vsub.f32 %v111, %v490
    %v492 = vand.u32 %v491, 4294901760
    %493 = vmatpush.msra.mxu0 %v492
    %v494 = vand.u32 %v110, 4294901760
    %v495 = vsub.f32 %v110, %v494
    %v496 = vand.u32 %v495, 4294901760
    %497 = vmatpush.msra.mxu0 %v496
    %v498 = vand.u32 %v119, 4294901760
    %499 = vmatmul.f32.gmra.mxu0 %v498
    %v500 = vpop.f32.mrf.mxu0
    %v501 = vadd.f32 %v417, %v500
    %v502 = vand.u32 %v122, 4294901760
    %503 = vmatmul.f32.gmra.mxu0 %v502
    %v504 = vpop.f32.mrf.mxu0
    %v505 = vadd.f32 %v423, %v504
    %v506 = vand.u32 %v125, 4294901760
    %507 = vmatmul.f32.gmra.mxu0 %v506
    %v508 = vpop.f32.mrf.mxu0
    %v509 = vadd.f32 %v429, %v508
    %v510 = vand.u32 %v128, 4294901760
    %511 = vmatmul.f32.gmra.mxu0 %v510
    %v512 = vpop.f32.mrf.mxu0
    %v513 = vadd.f32 %v435, %v512
    %v514 = vand.u32 %v131, 4294901760
    %515 = vmatmul.f32.gmra.mxu0 %v514
    %v516 = vpop.f32.mrf.mxu0
    %v517 = vadd.f32 %v441, %v516
    %v518 = vand.u32 %v134, 4294901760
    %519 = vmatmul.f32.gmra.mxu0 %v518
    %v520 = vpop.f32.mrf.mxu0
    %v521 = vadd.f32 %v447, %v520
    %v522 = vand.u32 %v137, 4294901760
    %523 = vmatmul.f32.gmra.mxu0 %v522
    %v524 = vpop.f32.mrf.mxu0
    %v525 = vadd.f32 %v453, %v524
    %v526 = vand.u32 %v140, 4294901760
    %527 = vmatmul.f32.gmra.mxu0 %v526
    %v528 = vpop.f32.mrf.mxu0
    %v529 = vadd.f32 %v459, %v528
    %530 = vdwg.mxu0
    %531 = vmatpush.msra.mxu0 0.0
    %532 = vmatpush.msra.mxu0 0.0
    %533 = vmatpush.msra.mxu0 0.0
    %534 = vmatpush.msra.mxu0 0.0
    %535 = vmatpush.msra.mxu0 0.0
    %536 = vmatpush.msra.mxu0 0.0
    %537 = vmatpush.msra.mxu0 0.0
    %538 = vmatpush.msra.mxu0 0.0
    %539 = vmatpush.msra.mxu0 0.0
    %v540 = vand.u32 %v144, 4294901760
    %541 = vmatpush.msra.mxu0 %v540
    %v542 = vand.u32 %v115, 4294901760
    %543 = vmatpush.msra.mxu0 %v542
    %v544 = vand.u32 %v114, 4294901760
    %545 = vmatpush.msra.mxu0 %v544
    %v546 = vand.u32 %v113, 4294901760
    %547 = vmatpush.msra.mxu0 %v546
    %v548 = vand.u32 %v112, 4294901760
    %549 = vmatpush.msra.mxu0 %v548
    %v550 = vand.u32 %v111, 4294901760
    %551 = vmatpush.msra.mxu0 %v550
    %v552 = vand.u32 %v110, 4294901760
    %553 = vmatpush.msra.mxu0 %v552
    %v554 = vand.u32 %v119, 4294901760
    %555 = vmatmul.f32.gmra.mxu0 %v554
    %v556 = vpop.f32.mrf.mxu0
    %v557 = vadd.f32 %v501, %v556
    %v558 = vand.u32 %v122, 4294901760
    %559 = vmatmul.f32.gmra.mxu0 %v558
    %v560 = vpop.f32.mrf.mxu0
    %v561 = vadd.f32 %v505, %v560
    %v562 = vand.u32 %v125, 4294901760
    %563 = vmatmul.f32.gmra.mxu0 %v562
    %v564 = vpop.f32.mrf.mxu0
    %v565 = vadd.f32 %v509, %v564
    %v566 = vand.u32 %v128, 4294901760
    %567 = vmatmul.f32.gmra.mxu0 %v566
    %v568 = vpop.f32.mrf.mxu0
    %v569 = vadd.f32 %v513, %v568
    %v570 = vand.u32 %v131, 4294901760
    %571 = vmatmul.f32.gmra.mxu0 %v570
    %v572 = vpop.f32.mrf.mxu0
    %v573 = vadd.f32 %v517, %v572
    %v574 = vand.u32 %v134, 4294901760
    %575 = vmatmul.f32.gmra.mxu0 %v574
    %v576 = vpop.f32.mrf.mxu0
    %v577 = vadd.f32 %v521, %v576
    %v578 = vand.u32 %v137, 4294901760
    %579 = vmatmul.f32.gmra.mxu0 %v578
    %v580 = vpop.f32.mrf.mxu0
    %v581 = vadd.f32 %v525, %v580
    %v582 = vand.u32 %v140, 4294901760
    %583 = vmatmul.f32.gmra.mxu0 %v582
    %v584 = vpop.f32.mrf.mxu0
    %v585 = vadd.f32 %v529, %v584
    %586 = vdwg.mxu0
    %v587 = vld [vmem:[%s3] sm:$0xff]
    %v588 = vld [vmem:[%s3 + $0x8] sm:$0xff]
    %v589 = vld [vmem:[%s3 + $0x10] sm:$0xff]
    %v590 = vld [vmem:[%s3 + $0x18] sm:$0xff]
    %v591 = vld [vmem:[%s5] sm:$0x1]
    %v593 = vperm.slane %v591, 0
    %vm595 = vcmask 261120
    %v597 = vsel %vm595, %v557, 0
    %v600 = vsel %vm595, %v561, 0
    %v603 = vsel %vm595, %v565, 0
    %v606 = vsel %vm595, %v569, 0
    %v609 = vsel %vm595, %v573, 0
    %v612 = vsel %vm595, %v577, 0
    %v615 = vsel %vm595, %v581, 0
    %v618 = vsel %vm595, %v585, 0
    %620 = vmatpush.msra.mxu0 0.0
    %621 = vmatpush.msra.mxu0 0.0
    %622 = vmatpush.msra.mxu0 0.0
    %623 = vmatpush.msra.mxu0 0.0
    %624 = vmatpush.msra.mxu0 0.0
    %625 = vmatpush.msra.mxu0 0.0
    %626 = vmatpush.msra.mxu0 0.0
    %627 = vmatpush.msra.mxu0 0.0
    %628 = vmatpush.msra.mxu0 0.0
    %629 = vmatpush.msra.mxu0 0.0
    %630 = vmatpush.msra.mxu0 0.0
    %631 = vmatpush.msra.mxu0 0.0
    %v632 = vand.u32 %v590, 4294901760
    %633 = vmatpush.msra.mxu0 %v632
    %v634 = vand.u32 %v589, 4294901760
    %635 = vmatpush.msra.mxu0 %v634
    %v636 = vand.u32 %v588, 4294901760
    %637 = vmatpush.msra.mxu0 %v636
    %v638 = vand.u32 %v587, 4294901760
    %639 = vmatpush.msra.mxu0 %v638
    %v640 = vand.u32 %v597, 4294901760
    %v641 = vsub.f32 %v597, %v640
    %v642 = vand.u32 %v641, 4294901760
    %v643 = vsub.f32 %v641, %v642
    %v644 = vand.u32 %v643, 4294901760
    %645 = vmatmul.f32.gmra.mxu0 %v644
    %v646 = vpop.f32.mrf.mxu0
    %v647 = vadd.f32 %v593, %v646
    %v648 = vand.u32 %v600, 4294901760
    %v649 = vsub.f32 %v600, %v648
    %v650 = vand.u32 %v649, 4294901760
    %v651 = vsub.f32 %v649, %v650
    %v652 = vand.u32 %v651, 4294901760
    %653 = vmatmul.f32.gmra.mxu0 %v652
    %v654 = vpop.f32.mrf.mxu0
    %v655 = vadd.f32 %v593, %v654
    %v656 = vand.u32 %v603, 4294901760
    %v657 = vsub.f32 %v603, %v656
    %v658 = vand.u32 %v657, 4294901760
    %v659 = vsub.f32 %v657, %v658
    %v660 = vand.u32 %v659, 4294901760
    %661 = vmatmul.f32.gmra.mxu0 %v660
    %v662 = vpop.f32.mrf.mxu0
    %v663 = vadd.f32 %v593, %v662
    %v664 = vand.u32 %v606, 4294901760
    %v665 = vsub.f32 %v606, %v664
    %v666 = vand.u32 %v665, 4294901760
    %v667 = vsub.f32 %v665, %v666
    %v668 = vand.u32 %v667, 4294901760
    %669 = vmatmul.f32.gmra.mxu0 %v668
    %v670 = vpop.f32.mrf.mxu0
    %v671 = vadd.f32 %v593, %v670
    %v672 = vand.u32 %v609, 4294901760
    %v673 = vsub.f32 %v609, %v672
    %v674 = vand.u32 %v673, 4294901760
    %v675 = vsub.f32 %v673, %v674
    %v676 = vand.u32 %v675, 4294901760
    %677 = vmatmul.f32.gmra.mxu0 %v676
    %v678 = vpop.f32.mrf.mxu0
    %v679 = vadd.f32 %v593, %v678
    %v680 = vand.u32 %v612, 4294901760
    %v681 = vsub.f32 %v612, %v680
    %v682 = vand.u32 %v681, 4294901760
    %v683 = vsub.f32 %v681, %v682
    %v684 = vand.u32 %v683, 4294901760
    %685 = vmatmul.f32.gmra.mxu0 %v684
    %v686 = vpop.f32.mrf.mxu0
    %v687 = vadd.f32 %v593, %v686
    %v688 = vand.u32 %v615, 4294901760
    %v689 = vsub.f32 %v615, %v688
    %v690 = vand.u32 %v689, 4294901760
    %v691 = vsub.f32 %v689, %v690
    %v692 = vand.u32 %v691, 4294901760
    %693 = vmatmul.f32.gmra.mxu0 %v692
    %v694 = vpop.f32.mrf.mxu0
    %v695 = vadd.f32 %v593, %v694
    %v696 = vand.u32 %v618, 4294901760
    %v697 = vsub.f32 %v618, %v696
    %v698 = vand.u32 %v697, 4294901760
    %v699 = vsub.f32 %v697, %v698
    %v700 = vand.u32 %v699, 4294901760
    %701 = vmatmul.f32.gmra.mxu0 %v700
    %v702 = vpop.f32.mrf.mxu0
    %v703 = vadd.f32 %v593, %v702
    %704 = vdwg.mxu0
    %705 = vmatpush.msra.mxu0 0.0
    %706 = vmatpush.msra.mxu0 0.0
    %707 = vmatpush.msra.mxu0 0.0
    %708 = vmatpush.msra.mxu0 0.0
    %709 = vmatpush.msra.mxu0 0.0
    %710 = vmatpush.msra.mxu0 0.0
    %711 = vmatpush.msra.mxu0 0.0
    %712 = vmatpush.msra.mxu0 0.0
    %713 = vmatpush.msra.mxu0 0.0
    %714 = vmatpush.msra.mxu0 0.0
    %715 = vmatpush.msra.mxu0 0.0
    %716 = vmatpush.msra.mxu0 0.0
    %v717 = vand.u32 %v590, 4294901760
    %v718 = vsub.f32 %v590, %v717
    %v719 = vand.u32 %v718, 4294901760
    %v720 = vsub.f32 %v718, %v719
    %v721 = vand.u32 %v720, 4294901760
    %722 = vmatpush.msra.mxu0 %v721
    %v723 = vand.u32 %v589, 4294901760
    %v724 = vsub.f32 %v589, %v723
    %v725 = vand.u32 %v724, 4294901760
    %v726 = vsub.f32 %v724, %v725
    %v727 = vand.u32 %v726, 4294901760
    %728 = vmatpush.msra.mxu0 %v727
    %v729 = vand.u32 %v588, 4294901760
    %v730 = vsub.f32 %v588, %v729
    %v731 = vand.u32 %v730, 4294901760
    %v732 = vsub.f32 %v730, %v731
    %v733 = vand.u32 %v732, 4294901760
    %734 = vmatpush.msra.mxu0 %v733
    %v735 = vand.u32 %v587, 4294901760
    %v736 = vsub.f32 %v587, %v735
    %v737 = vand.u32 %v736, 4294901760
    %v738 = vsub.f32 %v736, %v737
    %v739 = vand.u32 %v738, 4294901760
    %740 = vmatpush.msra.mxu0 %v739
    %v741 = vand.u32 %v597, 4294901760
    %742 = vmatmul.f32.gmra.mxu0 %v741
    %v743 = vpop.f32.mrf.mxu0
    %v744 = vadd.f32 %v647, %v743
    %v745 = vand.u32 %v600, 4294901760
    %746 = vmatmul.f32.gmra.mxu0 %v745
    %v747 = vpop.f32.mrf.mxu0
    %v748 = vadd.f32 %v655, %v747
    %v749 = vand.u32 %v603, 4294901760
    %750 = vmatmul.f32.gmra.mxu0 %v749
    %v751 = vpop.f32.mrf.mxu0
    %v752 = vadd.f32 %v663, %v751
    %v753 = vand.u32 %v606, 4294901760
    %754 = vmatmul.f32.gmra.mxu0 %v753
    %v755 = vpop.f32.mrf.mxu0
    %v756 = vadd.f32 %v671, %v755
    %v757 = vand.u32 %v609, 4294901760
    %758 = vmatmul.f32.gmra.mxu0 %v757
    %v759 = vpop.f32.mrf.mxu0
    %v760 = vadd.f32 %v679, %v759
    %v761 = vand.u32 %v612, 4294901760
    %762 = vmatmul.f32.gmra.mxu0 %v761
    %v763 = vpop.f32.mrf.mxu0
    %v764 = vadd.f32 %v687, %v763
    %v765 = vand.u32 %v615, 4294901760
    %766 = vmatmul.f32.gmra.mxu0 %v765
    %v767 = vpop.f32.mrf.mxu0
    %v768 = vadd.f32 %v695, %v767
    %v769 = vand.u32 %v618, 4294901760
    %770 = vmatmul.f32.gmra.mxu0 %v769
    %v771 = vpop.f32.mrf.mxu0
    %v772 = vadd.f32 %v703, %v771
    %773 = vdwg.mxu0
    %774 = vmatpush.msra.mxu0 0.0
    %775 = vmatpush.msra.mxu0 0.0
    %776 = vmatpush.msra.mxu0 0.0
    %777 = vmatpush.msra.mxu0 0.0
    %778 = vmatpush.msra.mxu0 0.0
    %779 = vmatpush.msra.mxu0 0.0
    %780 = vmatpush.msra.mxu0 0.0
    %781 = vmatpush.msra.mxu0 0.0
    %782 = vmatpush.msra.mxu0 0.0
    %783 = vmatpush.msra.mxu0 0.0
    %784 = vmatpush.msra.mxu0 0.0
    %785 = vmatpush.msra.mxu0 0.0
    %v786 = vand.u32 %v590, 4294901760
    %v787 = vsub.f32 %v590, %v786
    %788 = vmatpush.msra.mxu0 %v787
    %v789 = vand.u32 %v589, 4294901760
    %v790 = vsub.f32 %v589, %v789
    %791 = vmatpush.msra.mxu0 %v790
    %v792 = vand.u32 %v588, 4294901760
    %v793 = vsub.f32 %v588, %v792
    %794 = vmatpush.msra.mxu0 %v793
    %v795 = vand.u32 %v587, 4294901760
    %v796 = vsub.f32 %v587, %v795
    %797 = vmatpush.msra.mxu0 %v796
    %v798 = vand.u32 %v597, 4294901760
    %v799 = vsub.f32 %v597, %v798
    %800 = vmatmul.f32.gmra.mxu0 %v799
    %v801 = vpop.f32.mrf.mxu0
    %v802 = vadd.f32 %v744, %v801
    %v803 = vand.u32 %v600, 4294901760
    %v804 = vsub.f32 %v600, %v803
    %805 = vmatmul.f32.gmra.mxu0 %v804
    %v806 = vpop.f32.mrf.mxu0
    %v807 = vadd.f32 %v748, %v806
    %v808 = vand.u32 %v603, 4294901760
    %v809 = vsub.f32 %v603, %v808
    %810 = vmatmul.f32.gmra.mxu0 %v809
    %v811 = vpop.f32.mrf.mxu0
    %v812 = vadd.f32 %v752, %v811
    %v813 = vand.u32 %v606, 4294901760
    %v814 = vsub.f32 %v606, %v813
    %815 = vmatmul.f32.gmra.mxu0 %v814
    %v816 = vpop.f32.mrf.mxu0
    %v817 = vadd.f32 %v756, %v816
    %v818 = vand.u32 %v609, 4294901760
    %v819 = vsub.f32 %v609, %v818
    %820 = vmatmul.f32.gmra.mxu0 %v819
    %v821 = vpop.f32.mrf.mxu0
    %v822 = vadd.f32 %v760, %v821
    %v823 = vand.u32 %v612, 4294901760
    %v824 = vsub.f32 %v612, %v823
    %825 = vmatmul.f32.gmra.mxu0 %v824
    %v826 = vpop.f32.mrf.mxu0
    %v827 = vadd.f32 %v764, %v826
    %v828 = vand.u32 %v615, 4294901760
    %v829 = vsub.f32 %v615, %v828
    %830 = vmatmul.f32.gmra.mxu0 %v829
    %v831 = vpop.f32.mrf.mxu0
    %v832 = vadd.f32 %v768, %v831
    %v833 = vand.u32 %v618, 4294901760
    %v834 = vsub.f32 %v618, %v833
    %835 = vmatmul.f32.gmra.mxu0 %v834
    %v836 = vpop.f32.mrf.mxu0
    %v837 = vadd.f32 %v772, %v836
    %838 = vdwg.mxu0
    %839 = vmatpush.msra.mxu0 0.0
    %840 = vmatpush.msra.mxu0 0.0
    %841 = vmatpush.msra.mxu0 0.0
    %842 = vmatpush.msra.mxu0 0.0
    %843 = vmatpush.msra.mxu0 0.0
    %844 = vmatpush.msra.mxu0 0.0
    %845 = vmatpush.msra.mxu0 0.0
    %846 = vmatpush.msra.mxu0 0.0
    %847 = vmatpush.msra.mxu0 0.0
    %848 = vmatpush.msra.mxu0 0.0
    %849 = vmatpush.msra.mxu0 0.0
    %850 = vmatpush.msra.mxu0 0.0
    %v851 = vand.u32 %v590, 4294901760
    %852 = vmatpush.msra.mxu0 %v851
    %v853 = vand.u32 %v589, 4294901760
    %854 = vmatpush.msra.mxu0 %v853
    %v855 = vand.u32 %v588, 4294901760
    %856 = vmatpush.msra.mxu0 %v855
    %v857 = vand.u32 %v587, 4294901760
    %858 = vmatpush.msra.mxu0 %v857
    %v859 = vand.u32 %v597, 4294901760
    %v860 = vsub.f32 %v597, %v859
    %v861 = vand.u32 %v860, 4294901760
    %862 = vmatmul.f32.gmra.mxu0 %v861
    %v863 = vpop.f32.mrf.mxu0
    %v864 = vadd.f32 %v802, %v863
    %v865 = vand.u32 %v600, 4294901760
    %v866 = vsub.f32 %v600, %v865
    %v867 = vand.u32 %v866, 4294901760
    %868 = vmatmul.f32.gmra.mxu0 %v867
    %v869 = vpop.f32.mrf.mxu0
    %v870 = vadd.f32 %v807, %v869
    %v871 = vand.u32 %v603, 4294901760
    %v872 = vsub.f32 %v603, %v871
    %v873 = vand.u32 %v872, 4294901760
    %874 = vmatmul.f32.gmra.mxu0 %v873
    %v875 = vpop.f32.mrf.mxu0
    %v876 = vadd.f32 %v812, %v875
    %v877 = vand.u32 %v606, 4294901760
    %v878 = vsub.f32 %v606, %v877
    %v879 = vand.u32 %v878, 4294901760
    %880 = vmatmul.f32.gmra.mxu0 %v879
    %v881 = vpop.f32.mrf.mxu0
    %v882 = vadd.f32 %v817, %v881
    %v883 = vand.u32 %v609, 4294901760
    %v884 = vsub.f32 %v609, %v883
    %v885 = vand.u32 %v884, 4294901760
    %886 = vmatmul.f32.gmra.mxu0 %v885
    %v887 = vpop.f32.mrf.mxu0
    %v888 = vadd.f32 %v822, %v887
    %v889 = vand.u32 %v612, 4294901760
    %v890 = vsub.f32 %v612, %v889
    %v891 = vand.u32 %v890, 4294901760
    %892 = vmatmul.f32.gmra.mxu0 %v891
    %v893 = vpop.f32.mrf.mxu0
    %v894 = vadd.f32 %v827, %v893
    %v895 = vand.u32 %v615, 4294901760
    %v896 = vsub.f32 %v615, %v895
    %v897 = vand.u32 %v896, 4294901760
    %898 = vmatmul.f32.gmra.mxu0 %v897
    %v899 = vpop.f32.mrf.mxu0
    %v900 = vadd.f32 %v832, %v899
    %v901 = vand.u32 %v618, 4294901760
    %v902 = vsub.f32 %v618, %v901
    %v903 = vand.u32 %v902, 4294901760
    %904 = vmatmul.f32.gmra.mxu0 %v903
    %v905 = vpop.f32.mrf.mxu0
    %v906 = vadd.f32 %v837, %v905
    %907 = vdwg.mxu0
    %908 = vmatpush.msra.mxu0 0.0
    %909 = vmatpush.msra.mxu0 0.0
    %910 = vmatpush.msra.mxu0 0.0
    %911 = vmatpush.msra.mxu0 0.0
    %912 = vmatpush.msra.mxu0 0.0
    %913 = vmatpush.msra.mxu0 0.0
    %914 = vmatpush.msra.mxu0 0.0
    %915 = vmatpush.msra.mxu0 0.0
    %916 = vmatpush.msra.mxu0 0.0
    %917 = vmatpush.msra.mxu0 0.0
    %918 = vmatpush.msra.mxu0 0.0
    %919 = vmatpush.msra.mxu0 0.0
    %v920 = vand.u32 %v590, 4294901760
    %v921 = vsub.f32 %v590, %v920
    %v922 = vand.u32 %v921, 4294901760
    %923 = vmatpush.msra.mxu0 %v922
    %v924 = vand.u32 %v589, 4294901760
    %v925 = vsub.f32 %v589, %v924
    %v926 = vand.u32 %v925, 4294901760
    %927 = vmatpush.msra.mxu0 %v926
    %v928 = vand.u32 %v588, 4294901760
    %v929 = vsub.f32 %v588, %v928
    %v930 = vand.u32 %v929, 4294901760
    %931 = vmatpush.msra.mxu0 %v930
    %v932 = vand.u32 %v587, 4294901760
    %v933 = vsub.f32 %v587, %v932
    %v934 = vand.u32 %v933, 4294901760
    %935 = vmatpush.msra.mxu0 %v934
    %v936 = vand.u32 %v597, 4294901760
    %937 = vmatmul.f32.gmra.mxu0 %v936
    %v938 = vpop.f32.mrf.mxu0
    %v939 = vadd.f32 %v864, %v938
    %v940 = vand.u32 %v600, 4294901760
    %941 = vmatmul.f32.gmra.mxu0 %v940
    %v942 = vpop.f32.mrf.mxu0
    %v943 = vadd.f32 %v870, %v942
    %v944 = vand.u32 %v603, 4294901760
    %945 = vmatmul.f32.gmra.mxu0 %v944
    %v946 = vpop.f32.mrf.mxu0
    %v947 = vadd.f32 %v876, %v946
    %v948 = vand.u32 %v606, 4294901760
    %949 = vmatmul.f32.gmra.mxu0 %v948
    %v950 = vpop.f32.mrf.mxu0
    %v951 = vadd.f32 %v882, %v950
    %v952 = vand.u32 %v609, 4294901760
    %953 = vmatmul.f32.gmra.mxu0 %v952
    %v954 = vpop.f32.mrf.mxu0
    %v955 = vadd.f32 %v888, %v954
    %v956 = vand.u32 %v612, 4294901760
    %957 = vmatmul.f32.gmra.mxu0 %v956
    %v958 = vpop.f32.mrf.mxu0
    %v959 = vadd.f32 %v894, %v958
    %v960 = vand.u32 %v615, 4294901760
    %961 = vmatmul.f32.gmra.mxu0 %v960
    %v962 = vpop.f32.mrf.mxu0
    %v963 = vadd.f32 %v900, %v962
    %v964 = vand.u32 %v618, 4294901760
    %965 = vmatmul.f32.gmra.mxu0 %v964
    %v966 = vpop.f32.mrf.mxu0
    %v967 = vadd.f32 %v906, %v966
    %968 = vdwg.mxu0
    %969 = vmatpush.msra.mxu0 0.0
    %970 = vmatpush.msra.mxu0 0.0
    %971 = vmatpush.msra.mxu0 0.0
    %972 = vmatpush.msra.mxu0 0.0
    %973 = vmatpush.msra.mxu0 0.0
    %974 = vmatpush.msra.mxu0 0.0
    %975 = vmatpush.msra.mxu0 0.0
    %976 = vmatpush.msra.mxu0 0.0
    %977 = vmatpush.msra.mxu0 0.0
    %978 = vmatpush.msra.mxu0 0.0
    %979 = vmatpush.msra.mxu0 0.0
    %980 = vmatpush.msra.mxu0 0.0
    %v981 = vand.u32 %v590, 4294901760
    %982 = vmatpush.msra.mxu0 %v981
    %v983 = vand.u32 %v589, 4294901760
    %984 = vmatpush.msra.mxu0 %v983
    %v985 = vand.u32 %v588, 4294901760
    %986 = vmatpush.msra.mxu0 %v985
    %v987 = vand.u32 %v587, 4294901760
    %988 = vmatpush.msra.mxu0 %v987
    %v989 = vand.u32 %v597, 4294901760
    %990 = vmatmul.f32.gmra.mxu0 %v989
    %v991 = vpop.f32.mrf.mxu0
    %v992 = vadd.f32 %v939, %v991
    %v993 = vand.u32 %v600, 4294901760
    %994 = vmatmul.f32.gmra.mxu0 %v993
    %v995 = vpop.f32.mrf.mxu0
    %v996 = vadd.f32 %v943, %v995
    %v997 = vand.u32 %v603, 4294901760
    %998 = vmatmul.f32.gmra.mxu0 %v997
    %v999 = vpop.f32.mrf.mxu0
    %v1000 = vadd.f32 %v947, %v999
    %v1001 = vand.u32 %v606, 4294901760
    %1002 = vmatmul.f32.gmra.mxu0 %v1001
    %v1003 = vpop.f32.mrf.mxu0
    %v1004 = vadd.f32 %v951, %v1003
    %v1005 = vand.u32 %v609, 4294901760
    %1006 = vmatmul.f32.gmra.mxu0 %v1005
    %v1007 = vpop.f32.mrf.mxu0
    %v1008 = vadd.f32 %v955, %v1007
    %v1009 = vand.u32 %v612, 4294901760
    %1010 = vmatmul.f32.gmra.mxu0 %v1009
    %v1011 = vpop.f32.mrf.mxu0
    %v1012 = vadd.f32 %v959, %v1011
    %v1013 = vand.u32 %v615, 4294901760
    %1014 = vmatmul.f32.gmra.mxu0 %v1013
    %v1015 = vpop.f32.mrf.mxu0
    %v1016 = vadd.f32 %v963, %v1015
    %v1017 = vand.u32 %v618, 4294901760
    %1018 = vmatmul.f32.gmra.mxu0 %v1017
    %v1019 = vpop.f32.mrf.mxu0
    %v1020 = vadd.f32 %v967, %v1019
    %1021 = vdwg.mxu0
    %v1022 = vld [vmem:[%s4] sm:$0xff]
    %v1023 = vld [vmem:[%s4 + $0x8] sm:$0xff]
    %v1024 = vld [vmem:[%s4 + $0x10] sm:$0xff]
    %v1025 = vld [vmem:[%s4 + $0x18] sm:$0xff]
    %v1026 = vld [vmem:[%s2] sm:$0xff]
    %v1028 = vsel %vm595, %v1026, 0
    %1030 = vmatpush.msra.mxu0 0.0
    %1031 = vmatpush.msra.mxu0 0.0
    %1032 = vmatpush.msra.mxu0 0.0
    %1033 = vmatpush.msra.mxu0 0.0
    %1034 = vmatpush.msra.mxu0 0.0
    %1035 = vmatpush.msra.mxu0 0.0
    %1036 = vmatpush.msra.mxu0 0.0
    %1037 = vmatpush.msra.mxu0 0.0
    %1038 = vmatpush.msra.mxu0 0.0
    %1039 = vmatpush.msra.mxu0 0.0
    %1040 = vmatpush.msra.mxu0 0.0
    %1041 = vmatpush.msra.mxu0 0.0
    %v1042 = vand.u32 %v1025, 4294901760
    %1043 = vmatpush.msra.mxu0 %v1042
    %v1044 = vand.u32 %v1024, 4294901760
    %1045 = vmatpush.msra.mxu0 %v1044
    %v1046 = vand.u32 %v1023, 4294901760
    %1047 = vmatpush.msra.mxu0 %v1046
    %v1048 = vand.u32 %v1022, 4294901760
    %1049 = vmatpush.msra.mxu0 %v1048
    %v1050 = vand.u32 %v1028, 4294901760
    %v1051 = vsub.f32 %v1028, %v1050
    %v1052 = vand.u32 %v1051, 4294901760
    %v1053 = vsub.f32 %v1051, %v1052
    %v1054 = vand.u32 %v1053, 4294901760
    %1055 = vmatmul.f32.gmra.mxu0 %v1054
    %v1056 = vpop.f32.mrf.mxu0
    %v1057 = vadd.f32 0.0, %v1056
    %1058 = vdwg.mxu0
    %1059 = vmatpush.msra.mxu0 0.0
    %1060 = vmatpush.msra.mxu0 0.0
    %1061 = vmatpush.msra.mxu0 0.0
    %1062 = vmatpush.msra.mxu0 0.0
    %1063 = vmatpush.msra.mxu0 0.0
    %1064 = vmatpush.msra.mxu0 0.0
    %1065 = vmatpush.msra.mxu0 0.0
    %1066 = vmatpush.msra.mxu0 0.0
    %1067 = vmatpush.msra.mxu0 0.0
    %1068 = vmatpush.msra.mxu0 0.0
    %1069 = vmatpush.msra.mxu0 0.0
    %1070 = vmatpush.msra.mxu0 0.0
    %v1071 = vand.u32 %v1025, 4294901760
    %v1072 = vsub.f32 %v1025, %v1071
    %v1073 = vand.u32 %v1072, 4294901760
    %v1074 = vsub.f32 %v1072, %v1073
    %v1075 = vand.u32 %v1074, 4294901760
    %1076 = vmatpush.msra.mxu0 %v1075
    %v1077 = vand.u32 %v1024, 4294901760
    %v1078 = vsub.f32 %v1024, %v1077
    %v1079 = vand.u32 %v1078, 4294901760
    %v1080 = vsub.f32 %v1078, %v1079
    %v1081 = vand.u32 %v1080, 4294901760
    %1082 = vmatpush.msra.mxu0 %v1081
    %v1083 = vand.u32 %v1023, 4294901760
    %v1084 = vsub.f32 %v1023, %v1083
    %v1085 = vand.u32 %v1084, 4294901760
    %v1086 = vsub.f32 %v1084, %v1085
    %v1087 = vand.u32 %v1086, 4294901760
    %1088 = vmatpush.msra.mxu0 %v1087
    %v1089 = vand.u32 %v1022, 4294901760
    %v1090 = vsub.f32 %v1022, %v1089
    %v1091 = vand.u32 %v1090, 4294901760
    %v1092 = vsub.f32 %v1090, %v1091
    %v1093 = vand.u32 %v1092, 4294901760
    %1094 = vmatpush.msra.mxu0 %v1093
    %v1095 = vand.u32 %v1028, 4294901760
    %1096 = vmatmul.f32.gmra.mxu0 %v1095
    %v1097 = vpop.f32.mrf.mxu0
    %v1098 = vadd.f32 %v1057, %v1097
    %1099 = vdwg.mxu0
    %1100 = vmatpush.msra.mxu0 0.0
    %1101 = vmatpush.msra.mxu0 0.0
    %1102 = vmatpush.msra.mxu0 0.0
    %1103 = vmatpush.msra.mxu0 0.0
    %1104 = vmatpush.msra.mxu0 0.0
    %1105 = vmatpush.msra.mxu0 0.0
    %1106 = vmatpush.msra.mxu0 0.0
    %1107 = vmatpush.msra.mxu0 0.0
    %1108 = vmatpush.msra.mxu0 0.0
    %1109 = vmatpush.msra.mxu0 0.0
    %1110 = vmatpush.msra.mxu0 0.0
    %1111 = vmatpush.msra.mxu0 0.0
    %v1112 = vand.u32 %v1025, 4294901760
    %v1113 = vsub.f32 %v1025, %v1112
    %1114 = vmatpush.msra.mxu0 %v1113
    %v1115 = vand.u32 %v1024, 4294901760
    %v1116 = vsub.f32 %v1024, %v1115
    %1117 = vmatpush.msra.mxu0 %v1116
    %v1118 = vand.u32 %v1023, 4294901760
    %v1119 = vsub.f32 %v1023, %v1118
    %1120 = vmatpush.msra.mxu0 %v1119
    %v1121 = vand.u32 %v1022, 4294901760
    %v1122 = vsub.f32 %v1022, %v1121
    %1123 = vmatpush.msra.mxu0 %v1122
    %v1124 = vand.u32 %v1028, 4294901760
    %v1125 = vsub.f32 %v1028, %v1124
    %1126 = vmatmul.f32.gmra.mxu0 %v1125
    %v1127 = vpop.f32.mrf.mxu0
    %v1128 = vadd.f32 %v1098, %v1127
    %1129 = vdwg.mxu0
    %1130 = vmatpush.msra.mxu0 0.0
    %1131 = vmatpush.msra.mxu0 0.0
    %1132 = vmatpush.msra.mxu0 0.0
    %1133 = vmatpush.msra.mxu0 0.0
    %1134 = vmatpush.msra.mxu0 0.0
    %1135 = vmatpush.msra.mxu0 0.0
    %1136 = vmatpush.msra.mxu0 0.0
    %1137 = vmatpush.msra.mxu0 0.0
    %1138 = vmatpush.msra.mxu0 0.0
    %1139 = vmatpush.msra.mxu0 0.0
    %1140 = vmatpush.msra.mxu0 0.0
    %1141 = vmatpush.msra.mxu0 0.0
    %v1142 = vand.u32 %v1025, 4294901760
    %1143 = vmatpush.msra.mxu0 %v1142
    %v1144 = vand.u32 %v1024, 4294901760
    %1145 = vmatpush.msra.mxu0 %v1144
    %v1146 = vand.u32 %v1023, 4294901760
    %1147 = vmatpush.msra.mxu0 %v1146
    %v1148 = vand.u32 %v1022, 4294901760
    %1149 = vmatpush.msra.mxu0 %v1148
    %v1150 = vand.u32 %v1028, 4294901760
    %v1151 = vsub.f32 %v1028, %v1150
    %v1152 = vand.u32 %v1151, 4294901760
    %1153 = vmatmul.f32.gmra.mxu0 %v1152
    %v1154 = vpop.f32.mrf.mxu0
    %v1155 = vadd.f32 %v1128, %v1154
    %1156 = vdwg.mxu0
    %1157 = vmatpush.msra.mxu0 0.0
    %1158 = vmatpush.msra.mxu0 0.0
    %1159 = vmatpush.msra.mxu0 0.0
    %1160 = vmatpush.msra.mxu0 0.0
    %1161 = vmatpush.msra.mxu0 0.0
    %1162 = vmatpush.msra.mxu0 0.0
    %1163 = vmatpush.msra.mxu0 0.0
    %1164 = vmatpush.msra.mxu0 0.0
    %1165 = vmatpush.msra.mxu0 0.0
    %1166 = vmatpush.msra.mxu0 0.0
    %1167 = vmatpush.msra.mxu0 0.0
    %1168 = vmatpush.msra.mxu0 0.0
    %v1169 = vand.u32 %v1025, 4294901760
    %v1170 = vsub.f32 %v1025, %v1169
    %v1171 = vand.u32 %v1170, 4294901760
    %1172 = vmatpush.msra.mxu0 %v1171
    %v1173 = vand.u32 %v1024, 4294901760
    %v1174 = vsub.f32 %v1024, %v1173
    %v1175 = vand.u32 %v1174, 4294901760
    %1176 = vmatpush.msra.mxu0 %v1175
    %v1177 = vand.u32 %v1023, 4294901760
    %v1178 = vsub.f32 %v1023, %v1177
    %v1179 = vand.u32 %v1178, 4294901760
    %1180 = vmatpush.msra.mxu0 %v1179
    %v1181 = vand.u32 %v1022, 4294901760
    %v1182 = vsub.f32 %v1022, %v1181
    %v1183 = vand.u32 %v1182, 4294901760
    %1184 = vmatpush.msra.mxu0 %v1183
    %v1185 = vand.u32 %v1028, 4294901760
    %1186 = vmatmul.f32.gmra.mxu0 %v1185
    %v1187 = vpop.f32.mrf.mxu0
    %v1188 = vadd.f32 %v1155, %v1187
    %1189 = vdwg.mxu0
    %1190 = vmatpush.msra.mxu0 0.0
    %1191 = vmatpush.msra.mxu0 0.0
    %1192 = vmatpush.msra.mxu0 0.0
    %1193 = vmatpush.msra.mxu0 0.0
    %1194 = vmatpush.msra.mxu0 0.0
    %1195 = vmatpush.msra.mxu0 0.0
    %1196 = vmatpush.msra.mxu0 0.0
    %1197 = vmatpush.msra.mxu0 0.0
    %1198 = vmatpush.msra.mxu0 0.0
    %1199 = vmatpush.msra.mxu0 0.0
    %1200 = vmatpush.msra.mxu0 0.0
    %1201 = vmatpush.msra.mxu0 0.0
    %v1202 = vand.u32 %v1025, 4294901760
    %1203 = vmatpush.msra.mxu0 %v1202
    %v1204 = vand.u32 %v1024, 4294901760
    %1205 = vmatpush.msra.mxu0 %v1204
    %v1206 = vand.u32 %v1023, 4294901760
    %1207 = vmatpush.msra.mxu0 %v1206
    %v1208 = vand.u32 %v1022, 4294901760
    %1209 = vmatpush.msra.mxu0 %v1208
    %v1210 = vand.u32 %v1028, 4294901760
    %1211 = vmatmul.f32.gmra.mxu0 %v1210
    %v1212 = vpop.f32.mrf.mxu0
    %v1213 = vadd.f32 %v1188, %v1212
    %1214 = vdwg.mxu0
    %v1215 = vadd.f32 %v992, %v1213
    %v1216 = vtanh.pop %v1215
    %1217 = vst.msk [vmem:[#allocation2] sm:$0xff] %vm595, %v1216
    %v1219 = vsel %vm595, %v1216, 0
    %1221 = vmatpush.msra.mxu0 0.0
    %1222 = vmatpush.msra.mxu0 0.0
    %1223 = vmatpush.msra.mxu0 0.0
    %1224 = vmatpush.msra.mxu0 0.0
    %1225 = vmatpush.msra.mxu0 0.0
    %1226 = vmatpush.msra.mxu0 0.0
    %1227 = vmatpush.msra.mxu0 0.0
    %1228 = vmatpush.msra.mxu0 0.0
    %1229 = vmatpush.msra.mxu0 0.0
    %1230 = vmatpush.msra.mxu0 0.0
    %1231 = vmatpush.msra.mxu0 0.0
    %1232 = vmatpush.msra.mxu0 0.0
    %v1233 = vand.u32 %v1025, 4294901760
    %1234 = vmatpush.msra.mxu0 %v1233
    %v1235 = vand.u32 %v1024, 4294901760
    %1236 = vmatpush.msra.mxu0 %v1235
    %v1237 = vand.u32 %v1023, 4294901760
    %1238 = vmatpush.msra.mxu0 %v1237
    %v1239 = vand.u32 %v1022, 4294901760
    %1240 = vmatpush.msra.mxu0 %v1239
    %v1241 = vand.u32 %v1219, 4294901760
    %v1242 = vsub.f32 %v1219, %v1241
    %v1243 = vand.u32 %v1242, 4294901760
    %v1244 = vsub.f32 %v1242, %v1243
    %v1245 = vand.u32 %v1244, 4294901760
    %1246 = vmatmul.f32.gmra.mxu0 %v1245
    %v1247 = vpop.f32.mrf.mxu0
    %v1248 = vadd.f32 0.0, %v1247
    %1249 = vdwg.mxu0
    %1250 = vmatpush.msra.mxu0 0.0
    %1251 = vmatpush.msra.mxu0 0.0
    %1252 = vmatpush.msra.mxu0 0.0
    %1253 = vmatpush.msra.mxu0 0.0
    %1254 = vmatpush.msra.mxu0 0.0
    %1255 = vmatpush.msra.mxu0 0.0
    %1256 = vmatpush.msra.mxu0 0.0
    %1257 = vmatpush.msra.mxu0 0.0
    %1258 = vmatpush.msra.mxu0 0.0
    %1259 = vmatpush.msra.mxu0 0.0
    %1260 = vmatpush.msra.mxu0 0.0
    %1261 = vmatpush.msra.mxu0 0.0
    %v1262 = vand.u32 %v1025, 4294901760
    %v1263 = vsub.f32 %v1025, %v1262
    %v1264 = vand.u32 %v1263, 4294901760
    %v1265 = vsub.f32 %v1263, %v1264
    %v1266 = vand.u32 %v1265, 4294901760
    %1267 = vmatpush.msra.mxu0 %v1266
    %v1268 = vand.u32 %v1024, 4294901760
    %v1269 = vsub.f32 %v1024, %v1268
    %v1270 = vand.u32 %v1269, 4294901760
    %v1271 = vsub.f32 %v1269, %v1270
    %v1272 = vand.u32 %v1271, 4294901760
    %1273 = vmatpush.msra.mxu0 %v1272
    %v1274 = vand.u32 %v1023, 4294901760
    %v1275 = vsub.f32 %v1023, %v1274
    %v1276 = vand.u32 %v1275, 4294901760
    %v1277 = vsub.f32 %v1275, %v1276
    %v1278 = vand.u32 %v1277, 4294901760
    %1279 = vmatpush.msra.mxu0 %v1278
    %v1280 = vand.u32 %v1022, 4294901760
    %v1281 = vsub.f32 %v1022, %v1280
    %v1282 = vand.u32 %v1281, 4294901760
    %v1283 = vsub.f32 %v1281, %v1282
    %v1284 = vand.u32 %v1283, 4294901760
    %1285 = vmatpush.msra.mxu0 %v1284
    %v1286 = vand.u32 %v1219, 4294901760
    %1287 = vmatmul.f32.gmra.mxu0 %v1286
    %v1288 = vpop.f32.mrf.mxu0
    %v1289 = vadd.f32 %v1248, %v1288
    %1290 = vdwg.mxu0
    %1291 = vmatpush.msra.mxu0 0.0
    %1292 = vmatpush.msra.mxu0 0.0
    %1293 = vmatpush.msra.mxu0 0.0
    %1294 = vmatpush.msra.mxu0 0.0
    %1295 = vmatpush.msra.mxu0 0.0
    %1296 = vmatpush.msra.mxu0 0.0
    %1297 = vmatpush.msra.mxu0 0.0
    %1298 = vmatpush.msra.mxu0 0.0
    %1299 = vmatpush.msra.mxu0 0.0
    %1300 = vmatpush.msra.mxu0 0.0
    %1301 = vmatpush.msra.mxu0 0.0
    %1302 = vmatpush.msra.mxu0 0.0
    %v1303 = vand.u32 %v1025, 4294901760
    %v1304 = vsub.f32 %v1025, %v1303
    %1305 = vmatpush.msra.mxu0 %v1304
    %v1306 = vand.u32 %v1024, 4294901760
    %v1307 = vsub.f32 %v1024, %v1306
    %1308 = vmatpush.msra.mxu0 %v1307
    %v1309 = vand.u32 %v1023, 4294901760
    %v1310 = vsub.f32 %v1023, %v1309
    %1311 = vmatpush.msra.mxu0 %v1310
    %v1312 = vand.u32 %v1022, 4294901760
    %v1313 = vsub.f32 %v1022, %v1312
    %1314 = vmatpush.msra.mxu0 %v1313
    %v1315 = vand.u32 %v1219, 4294901760
    %v1316 = vsub.f32 %v1219, %v1315
    %1317 = vmatmul.f32.gmra.mxu0 %v1316
    %v1318 = vpop.f32.mrf.mxu0
    %v1319 = vadd.f32 %v1289, %v1318
    %1320 = vdwg.mxu0
    %1321 = vmatpush.msra.mxu0 0.0
    %1322 = vmatpush.msra.mxu0 0.0
    %1323 = vmatpush.msra.mxu0 0.0
    %1324 = vmatpush.msra.mxu0 0.0
    %1325 = vmatpush.msra.mxu0 0.0
    %1326 = vmatpush.msra.mxu0 0.0
    %1327 = vmatpush.msra.mxu0 0.0
    %1328 = vmatpush.msra.mxu0 0.0
    %1329 = vmatpush.msra.mxu0 0.0
    %1330 = vmatpush.msra.mxu0 0.0
    %1331 = vmatpush.msra.mxu0 0.0
    %1332 = vmatpush.msra.mxu0 0.0
    %v1333 = vand.u32 %v1025, 4294901760
    %1334 = vmatpush.msra.mxu0 %v1333
    %v1335 = vand.u32 %v1024, 4294901760
    %1336 = vmatpush.msra.mxu0 %v1335
    %v1337 = vand.u32 %v1023, 4294901760
    %1338 = vmatpush.msra.mxu0 %v1337
    %v1339 = vand.u32 %v1022, 4294901760
    %1340 = vmatpush.msra.mxu0 %v1339
    %v1341 = vand.u32 %v1219, 4294901760
    %v1342 = vsub.f32 %v1219, %v1341
    %v1343 = vand.u32 %v1342, 4294901760
    %1344 = vmatmul.f32.gmra.mxu0 %v1343
    %v1345 = vpop.f32.mrf.mxu0
    %v1346 = vadd.f32 %v1319, %v1345
    %1347 = vdwg.mxu0
    %1348 = vmatpush.msra.mxu0 0.0
    %1349 = vmatpush.msra.mxu0 0.0
    %1350 = vmatpush.msra.mxu0 0.0
    %1351 = vmatpush.msra.mxu0 0.0
    %1352 = vmatpush.msra.mxu0 0.0
    %1353 = vmatpush.msra.mxu0 0.0
    %1354 = vmatpush.msra.mxu0 0.0
    %1355 = vmatpush.msra.mxu0 0.0
    %1356 = vmatpush.msra.mxu0 0.0
    %1357 = vmatpush.msra.mxu0 0.0
    %1358 = vmatpush.msra.mxu0 0.0
    %1359 = vmatpush.msra.mxu0 0.0
    %v1360 = vand.u32 %v1025, 4294901760
    %v1361 = vsub.f32 %v1025, %v1360
    %v1362 = vand.u32 %v1361, 4294901760
    %1363 = vmatpush.msra.mxu0 %v1362
    %v1364 = vand.u32 %v1024, 4294901760
    %v1365 = vsub.f32 %v1024, %v1364
    %v1366 = vand.u32 %v1365, 4294901760
    %1367 = vmatpush.msra.mxu0 %v1366
    %v1368 = vand.u32 %v1023, 4294901760
    %v1369 = vsub.f32 %v1023, %v1368
    %v1370 = vand.u32 %v1369, 4294901760
    %1371 = vmatpush.msra.mxu0 %v1370
    %v1372 = vand.u32 %v1022, 4294901760
    %v1373 = vsub.f32 %v1022, %v1372
    %v1374 = vand.u32 %v1373, 4294901760
    %1375 = vmatpush.msra.mxu0 %v1374
    %v1376 = vand.u32 %v1219, 4294901760
    %1377 = vmatmul.f32.gmra.mxu0 %v1376
    %v1378 = vpop.f32.mrf.mxu0
    %v1379 = vadd.f32 %v1346, %v1378
    %1380 = vdwg.mxu0
    %1381 = vmatpush.msra.mxu0 0.0
    %1382 = vmatpush.msra.mxu0 0.0
    %1383 = vmatpush.msra.mxu0 0.0
    %1384 = vmatpush.msra.mxu0 0.0
    %1385 = vmatpush.msra.mxu0 0.0
    %1386 = vmatpush.msra.mxu0 0.0
    %1387 = vmatpush.msra.mxu0 0.0
    %1388 = vmatpush.msra.mxu0 0.0
    %1389 = vmatpush.msra.mxu0 0.0
    %1390 = vmatpush.msra.mxu0 0.0
    %1391 = vmatpush.msra.mxu0 0.0
    %1392 = vmatpush.msra.mxu0 0.0
    %v1393 = vand.u32 %v1025, 4294901760
    %1394 = vmatpush.msra.mxu0 %v1393
    %v1395 = vand.u32 %v1024, 4294901760
    %1396 = vmatpush.msra.mxu0 %v1395
    %v1397 = vand.u32 %v1023, 4294901760
    %1398 = vmatpush.msra.mxu0 %v1397
    %v1399 = vand.u32 %v1022, 4294901760
    %1400 = vmatpush.msra.mxu0 %v1399
    %v1401 = vand.u32 %v1219, 4294901760
    %1402 = vmatmul.f32.gmra.mxu0 %v1401
    %v1403 = vpop.f32.mrf.mxu0
    %v1404 = vadd.f32 %v1379, %v1403
    %1405 = vdwg.mxu0
    %v1406 = vadd.f32 %v996, %v1404
    %v1407 = vtanh.pop %v1406
    %1408 = vst.msk [vmem:[#allocation2 + $0x8] sm:$0xff] %vm595, %v1407
    %v1410 = vsel %vm595, %v1407, 0
    %1412 = vmatpush.msra.mxu0 0.0
    %1413 = vmatpush.msra.mxu0 0.0
    %1414 = vmatpush.msra.mxu0 0.0
    %1415 = vmatpush.msra.mxu0 0.0
    %1416 = vmatpush.msra.mxu0 0.0
    %1417 = vmatpush.msra.mxu0 0.0
    %1418 = vmatpush.msra.mxu0 0.0
    %1419 = vmatpush.msra.mxu0 0.0
    %1420 = vmatpush.msra.mxu0 0.0
    %1421 = vmatpush.msra.mxu0 0.0
    %1422 = vmatpush.msra.mxu0 0.0
    %1423 = vmatpush.msra.mxu0 0.0
    %v1424 = vand.u32 %v1025, 4294901760
    %1425 = vmatpush.msra.mxu0 %v1424
    %v1426 = vand.u32 %v1024, 4294901760
    %1427 = vmatpush.msra.mxu0 %v1426
    %v1428 = vand.u32 %v1023, 4294901760
    %1429 = vmatpush.msra.mxu0 %v1428
    %v1430 = vand.u32 %v1022, 4294901760
    %1431 = vmatpush.msra.mxu0 %v1430
    %v1432 = vand.u32 %v1410, 4294901760
    %v1433 = vsub.f32 %v1410, %v1432
    %v1434 = vand.u32 %v1433, 4294901760
    %v1435 = vsub.f32 %v1433, %v1434
    %v1436 = vand.u32 %v1435, 4294901760
    %1437 = vmatmul.f32.gmra.mxu0 %v1436
    %v1438 = vpop.f32.mrf.mxu0
    %v1439 = vadd.f32 0.0, %v1438
    %1440 = vdwg.mxu0
    %1441 = vmatpush.msra.mxu0 0.0
    %1442 = vmatpush.msra.mxu0 0.0
    %1443 = vmatpush.msra.mxu0 0.0
    %1444 = vmatpush.msra.mxu0 0.0
    %1445 = vmatpush.msra.mxu0 0.0
    %1446 = vmatpush.msra.mxu0 0.0
    %1447 = vmatpush.msra.mxu0 0.0
    %1448 = vmatpush.msra.mxu0 0.0
    %1449 = vmatpush.msra.mxu0 0.0
    %1450 = vmatpush.msra.mxu0 0.0
    %1451 = vmatpush.msra.mxu0 0.0
    %1452 = vmatpush.msra.mxu0 0.0
    %v1453 = vand.u32 %v1025, 4294901760
    %v1454 = vsub.f32 %v1025, %v1453
    %v1455 = vand.u32 %v1454, 4294901760
    %v1456 = vsub.f32 %v1454, %v1455
    %v1457 = vand.u32 %v1456, 4294901760
    %1458 = vmatpush.msra.mxu0 %v1457
    %v1459 = vand.u32 %v1024, 4294901760
    %v1460 = vsub.f32 %v1024, %v1459
    %v1461 = vand.u32 %v1460, 4294901760
    %v1462 = vsub.f32 %v1460, %v1461
    %v1463 = vand.u32 %v1462, 4294901760
    %1464 = vmatpush.msra.mxu0 %v1463
    %v1465 = vand.u32 %v1023, 4294901760
    %v1466 = vsub.f32 %v1023, %v1465
    %v1467 = vand.u32 %v1466, 4294901760
    %v1468 = vsub.f32 %v1466, %v1467
    %v1469 = vand.u32 %v1468, 4294901760
    %1470 = vmatpush.msra.mxu0 %v1469
    %v1471 = vand.u32 %v1022, 4294901760
    %v1472 = vsub.f32 %v1022, %v1471
    %v1473 = vand.u32 %v1472, 4294901760
    %v1474 = vsub.f32 %v1472, %v1473
    %v1475 = vand.u32 %v1474, 4294901760
    %1476 = vmatpush.msra.mxu0 %v1475
    %v1477 = vand.u32 %v1410, 4294901760
    %1478 = vmatmul.f32.gmra.mxu0 %v1477
    %v1479 = vpop.f32.mrf.mxu0
    %v1480 = vadd.f32 %v1439, %v1479
    %1481 = vdwg.mxu0
    %1482 = vmatpush.msra.mxu0 0.0
    %1483 = vmatpush.msra.mxu0 0.0
    %1484 = vmatpush.msra.mxu0 0.0
    %1485 = vmatpush.msra.mxu0 0.0
    %1486 = vmatpush.msra.mxu0 0.0
    %1487 = vmatpush.msra.mxu0 0.0
    %1488 = vmatpush.msra.mxu0 0.0
    %1489 = vmatpush.msra.mxu0 0.0
    %1490 = vmatpush.msra.mxu0 0.0
    %1491 = vmatpush.msra.mxu0 0.0
    %1492 = vmatpush.msra.mxu0 0.0
    %1493 = vmatpush.msra.mxu0 0.0
    %v1494 = vand.u32 %v1025, 4294901760
    %v1495 = vsub.f32 %v1025, %v1494
    %1496 = vmatpush.msra.mxu0 %v1495
    %v1497 = vand.u32 %v1024, 4294901760
    %v1498 = vsub.f32 %v1024, %v1497
    %1499 = vmatpush.msra.mxu0 %v1498
    %v1500 = vand.u32 %v1023, 4294901760
    %v1501 = vsub.f32 %v1023, %v1500
    %1502 = vmatpush.msra.mxu0 %v1501
    %v1503 = vand.u32 %v1022, 4294901760
    %v1504 = vsub.f32 %v1022, %v1503
    %1505 = vmatpush.msra.mxu0 %v1504
    %v1506 = vand.u32 %v1410, 4294901760
    %v1507 = vsub.f32 %v1410, %v1506
    %1508 = vmatmul.f32.gmra.mxu0 %v1507
    %v1509 = vpop.f32.mrf.mxu0
    %v1510 = vadd.f32 %v1480, %v1509
    %1511 = vdwg.mxu0
    %1512 = vmatpush.msra.mxu0 0.0
    %1513 = vmatpush.msra.mxu0 0.0
    %1514 = vmatpush.msra.mxu0 0.0
    %1515 = vmatpush.msra.mxu0 0.0
    %1516 = vmatpush.msra.mxu0 0.0
    %1517 = vmatpush.msra.mxu0 0.0
    %1518 = vmatpush.msra.mxu0 0.0
    %1519 = vmatpush.msra.mxu0 0.0
    %1520 = vmatpush.msra.mxu0 0.0
    %1521 = vmatpush.msra.mxu0 0.0
    %1522 = vmatpush.msra.mxu0 0.0
    %1523 = vmatpush.msra.mxu0 0.0
    %v1524 = vand.u32 %v1025, 4294901760
    %1525 = vmatpush.msra.mxu0 %v1524
    %v1526 = vand.u32 %v1024, 4294901760
    %1527 = vmatpush.msra.mxu0 %v1526
    %v1528 = vand.u32 %v1023, 4294901760
    %1529 = vmatpush.msra.mxu0 %v1528
    %v1530 = vand.u32 %v1022, 4294901760
    %1531 = vmatpush.msra.mxu0 %v1530
    %v1532 = vand.u32 %v1410, 4294901760
    %v1533 = vsub.f32 %v1410, %v1532
    %v1534 = vand.u32 %v1533, 4294901760
    %1535 = vmatmul.f32.gmra.mxu0 %v1534
    %v1536 = vpop.f32.mrf.mxu0
    %v1537 = vadd.f32 %v1510, %v1536
    %1538 = vdwg.mxu0
    %1539 = vmatpush.msra.mxu0 0.0
    %1540 = vmatpush.msra.mxu0 0.0
    %1541 = vmatpush.msra.mxu0 0.0
    %1542 = vmatpush.msra.mxu0 0.0
    %1543 = vmatpush.msra.mxu0 0.0
    %1544 = vmatpush.msra.mxu0 0.0
    %1545 = vmatpush.msra.mxu0 0.0
    %1546 = vmatpush.msra.mxu0 0.0
    %1547 = vmatpush.msra.mxu0 0.0
    %1548 = vmatpush.msra.mxu0 0.0
    %1549 = vmatpush.msra.mxu0 0.0
    %1550 = vmatpush.msra.mxu0 0.0
    %v1551 = vand.u32 %v1025, 4294901760
    %v1552 = vsub.f32 %v1025, %v1551
    %v1553 = vand.u32 %v1552, 4294901760
    %1554 = vmatpush.msra.mxu0 %v1553
    %v1555 = vand.u32 %v1024, 4294901760
    %v1556 = vsub.f32 %v1024, %v1555
    %v1557 = vand.u32 %v1556, 4294901760
    %1558 = vmatpush.msra.mxu0 %v1557
    %v1559 = vand.u32 %v1023, 4294901760
    %v1560 = vsub.f32 %v1023, %v1559
    %v1561 = vand.u32 %v1560, 4294901760
    %1562 = vmatpush.msra.mxu0 %v1561
    %v1563 = vand.u32 %v1022, 4294901760
    %v1564 = vsub.f32 %v1022, %v1563
    %v1565 = vand.u32 %v1564, 4294901760
    %1566 = vmatpush.msra.mxu0 %v1565
    %v1567 = vand.u32 %v1410, 4294901760
    %1568 = vmatmul.f32.gmra.mxu0 %v1567
    %v1569 = vpop.f32.mrf.mxu0
    %v1570 = vadd.f32 %v1537, %v1569
    %1571 = vdwg.mxu0
    %1572 = vmatpush.msra.mxu0 0.0
    %1573 = vmatpush.msra.mxu0 0.0
    %1574 = vmatpush.msra.mxu0 0.0
    %1575 = vmatpush.msra.mxu0 0.0
    %1576 = vmatpush.msra.mxu0 0.0
    %1577 = vmatpush.msra.mxu0 0.0
    %1578 = vmatpush.msra.mxu0 0.0
    %1579 = vmatpush.msra.mxu0 0.0
    %1580 = vmatpush.msra.mxu0 0.0
    %1581 = vmatpush.msra.mxu0 0.0
    %1582 = vmatpush.msra.mxu0 0.0
    %1583 = vmatpush.msra.mxu0 0.0
    %v1584 = vand.u32 %v1025, 4294901760
    %1585 = vmatpush.msra.mxu0 %v1584
    %v1586 = vand.u32 %v1024, 4294901760
    %1587 = vmatpush.msra.mxu0 %v1586
    %v1588 = vand.u32 %v1023, 4294901760
    %1589 = vmatpush.msra.mxu0 %v1588
    %v1590 = vand.u32 %v1022, 4294901760
    %1591 = vmatpush.msra.mxu0 %v1590
    %v1592 = vand.u32 %v1410, 4294901760
    %1593 = vmatmul.f32.gmra.mxu0 %v1592
    %v1594 = vpop.f32.mrf.mxu0
    %v1595 = vadd.f32 %v1570, %v1594
    %1596 = vdwg.mxu0
    %v1597 = vadd.f32 %v1000, %v1595
    %v1598 = vtanh.pop %v1597
    %1599 = vst.msk [vmem:[#allocation2 + $0x10] sm:$0xff] %vm595, %v1598
    %v1601 = vsel %vm595, %v1598, 0
    %1603 = vmatpush.msra.mxu0 0.0
    %1604 = vmatpush.msra.mxu0 0.0
    %1605 = vmatpush.msra.mxu0 0.0
    %1606 = vmatpush.msra.mxu0 0.0
    %1607 = vmatpush.msra.mxu0 0.0
    %1608 = vmatpush.msra.mxu0 0.0
    %1609 = vmatpush.msra.mxu0 0.0
    %1610 = vmatpush.msra.mxu0 0.0
    %1611 = vmatpush.msra.mxu0 0.0
    %1612 = vmatpush.msra.mxu0 0.0
    %1613 = vmatpush.msra.mxu0 0.0
    %1614 = vmatpush.msra.mxu0 0.0
    %v1615 = vand.u32 %v1025, 4294901760
    %1616 = vmatpush.msra.mxu0 %v1615
    %v1617 = vand.u32 %v1024, 4294901760
    %1618 = vmatpush.msra.mxu0 %v1617
    %v1619 = vand.u32 %v1023, 4294901760
    %1620 = vmatpush.msra.mxu0 %v1619
    %v1621 = vand.u32 %v1022, 4294901760
    %1622 = vmatpush.msra.mxu0 %v1621
    %v1623 = vand.u32 %v1601, 4294901760
    %v1624 = vsub.f32 %v1601, %v1623
    %v1625 = vand.u32 %v1624, 4294901760
    %v1626 = vsub.f32 %v1624, %v1625
    %v1627 = vand.u32 %v1626, 4294901760
    %1628 = vmatmul.f32.gmra.mxu0 %v1627
    %v1629 = vpop.f32.mrf.mxu0
    %v1630 = vadd.f32 0.0, %v1629
    %1631 = vdwg.mxu0
    %1632 = vmatpush.msra.mxu0 0.0
    %1633 = vmatpush.msra.mxu0 0.0
    %1634 = vmatpush.msra.mxu0 0.0
    %1635 = vmatpush.msra.mxu0 0.0
    %1636 = vmatpush.msra.mxu0 0.0
    %1637 = vmatpush.msra.mxu0 0.0
    %1638 = vmatpush.msra.mxu0 0.0
    %1639 = vmatpush.msra.mxu0 0.0
    %1640 = vmatpush.msra.mxu0 0.0
    %1641 = vmatpush.msra.mxu0 0.0
    %1642 = vmatpush.msra.mxu0 0.0
    %1643 = vmatpush.msra.mxu0 0.0
    %v1644 = vand.u32 %v1025, 4294901760
    %v1645 = vsub.f32 %v1025, %v1644
    %v1646 = vand.u32 %v1645, 4294901760
    %v1647 = vsub.f32 %v1645, %v1646
    %v1648 = vand.u32 %v1647, 4294901760
    %1649 = vmatpush.msra.mxu0 %v1648
    %v1650 = vand.u32 %v1024, 4294901760
    %v1651 = vsub.f32 %v1024, %v1650
    %v1652 = vand.u32 %v1651, 4294901760
    %v1653 = vsub.f32 %v1651, %v1652
    %v1654 = vand.u32 %v1653, 4294901760
    %1655 = vmatpush.msra.mxu0 %v1654
    %v1656 = vand.u32 %v1023, 4294901760
    %v1657 = vsub.f32 %v1023, %v1656
    %v1658 = vand.u32 %v1657, 4294901760
    %v1659 = vsub.f32 %v1657, %v1658
    %v1660 = vand.u32 %v1659, 4294901760
    %1661 = vmatpush.msra.mxu0 %v1660
    %v1662 = vand.u32 %v1022, 4294901760
    %v1663 = vsub.f32 %v1022, %v1662
    %v1664 = vand.u32 %v1663, 4294901760
    %v1665 = vsub.f32 %v1663, %v1664
    %v1666 = vand.u32 %v1665, 4294901760
    %1667 = vmatpush.msra.mxu0 %v1666
    %v1668 = vand.u32 %v1601, 4294901760
    %1669 = vmatmul.f32.gmra.mxu0 %v1668
    %v1670 = vpop.f32.mrf.mxu0
    %v1671 = vadd.f32 %v1630, %v1670
    %1672 = vdwg.mxu0
    %1673 = vmatpush.msra.mxu0 0.0
    %1674 = vmatpush.msra.mxu0 0.0
    %1675 = vmatpush.msra.mxu0 0.0
    %1676 = vmatpush.msra.mxu0 0.0
    %1677 = vmatpush.msra.mxu0 0.0
    %1678 = vmatpush.msra.mxu0 0.0
    %1679 = vmatpush.msra.mxu0 0.0
    %1680 = vmatpush.msra.mxu0 0.0
    %1681 = vmatpush.msra.mxu0 0.0
    %1682 = vmatpush.msra.mxu0 0.0
    %1683 = vmatpush.msra.mxu0 0.0
    %1684 = vmatpush.msra.mxu0 0.0
    %v1685 = vand.u32 %v1025, 4294901760
    %v1686 = vsub.f32 %v1025, %v1685
    %1687 = vmatpush.msra.mxu0 %v1686
    %v1688 = vand.u32 %v1024, 4294901760
    %v1689 = vsub.f32 %v1024, %v1688
    %1690 = vmatpush.msra.mxu0 %v1689
    %v1691 = vand.u32 %v1023, 4294901760
    %v1692 = vsub.f32 %v1023, %v1691
    %1693 = vmatpush.msra.mxu0 %v1692
    %v1694 = vand.u32 %v1022, 4294901760
    %v1695 = vsub.f32 %v1022, %v1694
    %1696 = vmatpush.msra.mxu0 %v1695
    %v1697 = vand.u32 %v1601, 4294901760
    %v1698 = vsub.f32 %v1601, %v1697
    %1699 = vmatmul.f32.gmra.mxu0 %v1698
    %v1700 = vpop.f32.mrf.mxu0
    %v1701 = vadd.f32 %v1671, %v1700
    %1702 = vdwg.mxu0
    %1703 = vmatpush.msra.mxu0 0.0
    %1704 = vmatpush.msra.mxu0 0.0
    %1705 = vmatpush.msra.mxu0 0.0
    %1706 = vmatpush.msra.mxu0 0.0
    %1707 = vmatpush.msra.mxu0 0.0
    %1708 = vmatpush.msra.mxu0 0.0
    %1709 = vmatpush.msra.mxu0 0.0
    %1710 = vmatpush.msra.mxu0 0.0
    %1711 = vmatpush.msra.mxu0 0.0
    %1712 = vmatpush.msra.mxu0 0.0
    %1713 = vmatpush.msra.mxu0 0.0
    %1714 = vmatpush.msra.mxu0 0.0
    %v1715 = vand.u32 %v1025, 4294901760
    %1716 = vmatpush.msra.mxu0 %v1715
    %v1717 = vand.u32 %v1024, 4294901760
    %1718 = vmatpush.msra.mxu0 %v1717
    %v1719 = vand.u32 %v1023, 4294901760
    %1720 = vmatpush.msra.mxu0 %v1719
    %v1721 = vand.u32 %v1022, 4294901760
    %1722 = vmatpush.msra.mxu0 %v1721
    %v1723 = vand.u32 %v1601, 4294901760
    %v1724 = vsub.f32 %v1601, %v1723
    %v1725 = vand.u32 %v1724, 4294901760
    %1726 = vmatmul.f32.gmra.mxu0 %v1725
    %v1727 = vpop.f32.mrf.mxu0
    %v1728 = vadd.f32 %v1701, %v1727
    %1729 = vdwg.mxu0
    %1730 = vmatpush.msra.mxu0 0.0
    %1731 = vmatpush.msra.mxu0 0.0
    %1732 = vmatpush.msra.mxu0 0.0
    %1733 = vmatpush.msra.mxu0 0.0
    %1734 = vmatpush.msra.mxu0 0.0
    %1735 = vmatpush.msra.mxu0 0.0
    %1736 = vmatpush.msra.mxu0 0.0
    %1737 = vmatpush.msra.mxu0 0.0
    %1738 = vmatpush.msra.mxu0 0.0
    %1739 = vmatpush.msra.mxu0 0.0
    %1740 = vmatpush.msra.mxu0 0.0
    %1741 = vmatpush.msra.mxu0 0.0
    %v1742 = vand.u32 %v1025, 4294901760
    %v1743 = vsub.f32 %v1025, %v1742
    %v1744 = vand.u32 %v1743, 4294901760
    %1745 = vmatpush.msra.mxu0 %v1744
    %v1746 = vand.u32 %v1024, 4294901760
    %v1747 = vsub.f32 %v1024, %v1746
    %v1748 = vand.u32 %v1747, 4294901760
    %1749 = vmatpush.msra.mxu0 %v1748
    %v1750 = vand.u32 %v1023, 4294901760
    %v1751 = vsub.f32 %v1023, %v1750
    %v1752 = vand.u32 %v1751, 4294901760
    %1753 = vmatpush.msra.mxu0 %v1752
    %v1754 = vand.u32 %v1022, 4294901760
    %v1755 = vsub.f32 %v1022, %v1754
    %v1756 = vand.u32 %v1755, 4294901760
    %1757 = vmatpush.msra.mxu0 %v1756
    %v1758 = vand.u32 %v1601, 4294901760
    %1759 = vmatmul.f32.gmra.mxu0 %v1758
    %v1760 = vpop.f32.mrf.mxu0
    %v1761 = vadd.f32 %v1728, %v1760
    %1762 = vdwg.mxu0
    %1763 = vmatpush.msra.mxu0 0.0
    %1764 = vmatpush.msra.mxu0 0.0
    %1765 = vmatpush.msra.mxu0 0.0
    %1766 = vmatpush.msra.mxu0 0.0
    %1767 = vmatpush.msra.mxu0 0.0
    %1768 = vmatpush.msra.mxu0 0.0
    %1769 = vmatpush.msra.mxu0 0.0
    %1770 = vmatpush.msra.mxu0 0.0
    %1771 = vmatpush.msra.mxu0 0.0
    %1772 = vmatpush.msra.mxu0 0.0
    %1773 = vmatpush.msra.mxu0 0.0
    %1774 = vmatpush.msra.mxu0 0.0
    %v1775 = vand.u32 %v1025, 4294901760
    %1776 = vmatpush.msra.mxu0 %v1775
    %v1777 = vand.u32 %v1024, 4294901760
    %1778 = vmatpush.msra.mxu0 %v1777
    %v1779 = vand.u32 %v1023, 4294901760
    %1780 = vmatpush.msra.mxu0 %v1779
    %v1781 = vand.u32 %v1022, 4294901760
    %1782 = vmatpush.msra.mxu0 %v1781
    %v1783 = vand.u32 %v1601, 4294901760
    %1784 = vmatmul.f32.gmra.mxu0 %v1783
    %v1785 = vpop.f32.mrf.mxu0
    %v1786 = vadd.f32 %v1761, %v1785
    %1787 = vdwg.mxu0
    %v1788 = vadd.f32 %v1004, %v1786
    %v1789 = vtanh.pop %v1788
    %1790 = vst.msk [vmem:[#allocation2 + $0x18] sm:$0xff] %vm595, %v1789
    %v1792 = vsel %vm595, %v1789, 0
    %1794 = vmatpush.msra.mxu0 0.0
    %1795 = vmatpush.msra.mxu0 0.0
    %1796 = vmatpush.msra.mxu0 0.0
    %1797 = vmatpush.msra.mxu0 0.0
    %1798 = vmatpush.msra.mxu0 0.0
    %1799 = vmatpush.msra.mxu0 0.0
    %1800 = vmatpush.msra.mxu0 0.0
    %1801 = vmatpush.msra.mxu0 0.0
    %1802 = vmatpush.msra.mxu0 0.0
    %1803 = vmatpush.msra.mxu0 0.0
    %1804 = vmatpush.msra.mxu0 0.0
    %1805 = vmatpush.msra.mxu0 0.0
    %v1806 = vand.u32 %v1025, 4294901760
    %1807 = vmatpush.msra.mxu0 %v1806
    %v1808 = vand.u32 %v1024, 4294901760
    %1809 = vmatpush.msra.mxu0 %v1808
    %v1810 = vand.u32 %v1023, 4294901760
    %1811 = vmatpush.msra.mxu0 %v1810
    %v1812 = vand.u32 %v1022, 4294901760
    %1813 = vmatpush.msra.mxu0 %v1812
    %v1814 = vand.u32 %v1792, 4294901760
    %v1815 = vsub.f32 %v1792, %v1814
    %v1816 = vand.u32 %v1815, 4294901760
    %v1817 = vsub.f32 %v1815, %v1816
    %v1818 = vand.u32 %v1817, 4294901760
    %1819 = vmatmul.f32.gmra.mxu0 %v1818
    %v1820 = vpop.f32.mrf.mxu0
    %v1821 = vadd.f32 0.0, %v1820
    %1822 = vdwg.mxu0
    %1823 = vmatpush.msra.mxu0 0.0
    %1824 = vmatpush.msra.mxu0 0.0
    %1825 = vmatpush.msra.mxu0 0.0
    %1826 = vmatpush.msra.mxu0 0.0
    %1827 = vmatpush.msra.mxu0 0.0
    %1828 = vmatpush.msra.mxu0 0.0
    %1829 = vmatpush.msra.mxu0 0.0
    %1830 = vmatpush.msra.mxu0 0.0
    %1831 = vmatpush.msra.mxu0 0.0
    %1832 = vmatpush.msra.mxu0 0.0
    %1833 = vmatpush.msra.mxu0 0.0
    %1834 = vmatpush.msra.mxu0 0.0
    %v1835 = vand.u32 %v1025, 4294901760
    %v1836 = vsub.f32 %v1025, %v1835
    %v1837 = vand.u32 %v1836, 4294901760
    %v1838 = vsub.f32 %v1836, %v1837
    %v1839 = vand.u32 %v1838, 4294901760
    %1840 = vmatpush.msra.mxu0 %v1839
    %v1841 = vand.u32 %v1024, 4294901760
    %v1842 = vsub.f32 %v1024, %v1841
    %v1843 = vand.u32 %v1842, 4294901760
    %v1844 = vsub.f32 %v1842, %v1843
    %v1845 = vand.u32 %v1844, 4294901760
    %1846 = vmatpush.msra.mxu0 %v1845
    %v1847 = vand.u32 %v1023, 4294901760
    %v1848 = vsub.f32 %v1023, %v1847
    %v1849 = vand.u32 %v1848, 4294901760
    %v1850 = vsub.f32 %v1848, %v1849
    %v1851 = vand.u32 %v1850, 4294901760
    %1852 = vmatpush.msra.mxu0 %v1851
    %v1853 = vand.u32 %v1022, 4294901760
    %v1854 = vsub.f32 %v1022, %v1853
    %v1855 = vand.u32 %v1854, 4294901760
    %v1856 = vsub.f32 %v1854, %v1855
    %v1857 = vand.u32 %v1856, 4294901760
    %1858 = vmatpush.msra.mxu0 %v1857
    %v1859 = vand.u32 %v1792, 4294901760
    %1860 = vmatmul.f32.gmra.mxu0 %v1859
    %v1861 = vpop.f32.mrf.mxu0
    %v1862 = vadd.f32 %v1821, %v1861
    %1863 = vdwg.mxu0
    %1864 = vmatpush.msra.mxu0 0.0
    %1865 = vmatpush.msra.mxu0 0.0
    %1866 = vmatpush.msra.mxu0 0.0
    %1867 = vmatpush.msra.mxu0 0.0
    %1868 = vmatpush.msra.mxu0 0.0
    %1869 = vmatpush.msra.mxu0 0.0
    %1870 = vmatpush.msra.mxu0 0.0
    %1871 = vmatpush.msra.mxu0 0.0
    %1872 = vmatpush.msra.mxu0 0.0
    %1873 = vmatpush.msra.mxu0 0.0
    %1874 = vmatpush.msra.mxu0 0.0
    %1875 = vmatpush.msra.mxu0 0.0
    %v1876 = vand.u32 %v1025, 4294901760
    %v1877 = vsub.f32 %v1025, %v1876
    %1878 = vmatpush.msra.mxu0 %v1877
    %v1879 = vand.u32 %v1024, 4294901760
    %v1880 = vsub.f32 %v1024, %v1879
    %1881 = vmatpush.msra.mxu0 %v1880
    %v1882 = vand.u32 %v1023, 4294901760
    %v1883 = vsub.f32 %v1023, %v1882
    %1884 = vmatpush.msra.mxu0 %v1883
    %v1885 = vand.u32 %v1022, 4294901760
    %v1886 = vsub.f32 %v1022, %v1885
    %1887 = vmatpush.msra.mxu0 %v1886
    %v1888 = vand.u32 %v1792, 4294901760
    %v1889 = vsub.f32 %v1792, %v1888
    %1890 = vmatmul.f32.gmra.mxu0 %v1889
    %v1891 = vpop.f32.mrf.mxu0
    %v1892 = vadd.f32 %v1862, %v1891
    %1893 = vdwg.mxu0
    %1894 = vmatpush.msra.mxu0 0.0
    %1895 = vmatpush.msra.mxu0 0.0
    %1896 = vmatpush.msra.mxu0 0.0
    %1897 = vmatpush.msra.mxu0 0.0
    %1898 = vmatpush.msra.mxu0 0.0
    %1899 = vmatpush.msra.mxu0 0.0
    %1900 = vmatpush.msra.mxu0 0.0
    %1901 = vmatpush.msra.mxu0 0.0
    %1902 = vmatpush.msra.mxu0 0.0
    %1903 = vmatpush.msra.mxu0 0.0
    %1904 = vmatpush.msra.mxu0 0.0
    %1905 = vmatpush.msra.mxu0 0.0
    %v1906 = vand.u32 %v1025, 4294901760
    %1907 = vmatpush.msra.mxu0 %v1906
    %v1908 = vand.u32 %v1024, 4294901760
    %1909 = vmatpush.msra.mxu0 %v1908
    %v1910 = vand.u32 %v1023, 4294901760
    %1911 = vmatpush.msra.mxu0 %v1910
    %v1912 = vand.u32 %v1022, 4294901760
    %1913 = vmatpush.msra.mxu0 %v1912
    %v1914 = vand.u32 %v1792, 4294901760
    %v1915 = vsub.f32 %v1792, %v1914
    %v1916 = vand.u32 %v1915, 4294901760
    %1917 = vmatmul.f32.gmra.mxu0 %v1916
    %v1918 = vpop.f32.mrf.mxu0
    %v1919 = vadd.f32 %v1892, %v1918
    %1920 = vdwg.mxu0
    %1921 = vmatpush.msra.mxu0 0.0
    %1922 = vmatpush.msra.mxu0 0.0
    %1923 = vmatpush.msra.mxu0 0.0
    %1924 = vmatpush.msra.mxu0 0.0
    %1925 = vmatpush.msra.mxu0 0.0
    %1926 = vmatpush.msra.mxu0 0.0
    %1927 = vmatpush.msra.mxu0 0.0
    %1928 = vmatpush.msra.mxu0 0.0
    %1929 = vmatpush.msra.mxu0 0.0
    %1930 = vmatpush.msra.mxu0 0.0
    %1931 = vmatpush.msra.mxu0 0.0
    %1932 = vmatpush.msra.mxu0 0.0
    %v1933 = vand.u32 %v1025, 4294901760
    %v1934 = vsub.f32 %v1025, %v1933
    %v1935 = vand.u32 %v1934, 4294901760
    %1936 = vmatpush.msra.mxu0 %v1935
    %v1937 = vand.u32 %v1024, 4294901760
    %v1938 = vsub.f32 %v1024, %v1937
    %v1939 = vand.u32 %v1938, 4294901760
    %1940 = vmatpush.msra.mxu0 %v1939
    %v1941 = vand.u32 %v1023, 4294901760
    %v1942 = vsub.f32 %v1023, %v1941
    %v1943 = vand.u32 %v1942, 4294901760
    %1944 = vmatpush.msra.mxu0 %v1943
    %v1945 = vand.u32 %v1022, 4294901760
    %v1946 = vsub.f32 %v1022, %v1945
    %v1947 = vand.u32 %v1946, 4294901760
    %1948 = vmatpush.msra.mxu0 %v1947
    %v1949 = vand.u32 %v1792, 4294901760
    %1950 = vmatmul.f32.gmra.mxu0 %v1949
    %v1951 = vpop.f32.mrf.mxu0
    %v1952 = vadd.f32 %v1919, %v1951
    %1953 = vdwg.mxu0
    %1954 = vmatpush.msra.mxu0 0.0
    %1955 = vmatpush.msra.mxu0 0.0
    %1956 = vmatpush.msra.mxu0 0.0
    %1957 = vmatpush.msra.mxu0 0.0
    %1958 = vmatpush.msra.mxu0 0.0
    %1959 = vmatpush.msra.mxu0 0.0
    %1960 = vmatpush.msra.mxu0 0.0
    %1961 = vmatpush.msra.mxu0 0.0
    %1962 = vmatpush.msra.mxu0 0.0
    %1963 = vmatpush.msra.mxu0 0.0
    %1964 = vmatpush.msra.mxu0 0.0
    %1965 = vmatpush.msra.mxu0 0.0
    %v1966 = vand.u32 %v1025, 4294901760
    %1967 = vmatpush.msra.mxu0 %v1966
    %v1968 = vand.u32 %v1024, 4294901760
    %1969 = vmatpush.msra.mxu0 %v1968
    %v1970 = vand.u32 %v1023, 4294901760
    %1971 = vmatpush.msra.mxu0 %v1970
    %v1972 = vand.u32 %v1022, 4294901760
    %1973 = vmatpush.msra.mxu0 %v1972
    %v1974 = vand.u32 %v1792, 4294901760
    %1975 = vmatmul.f32.gmra.mxu0 %v1974
    %v1976 = vpop.f32.mrf.mxu0
    %v1977 = vadd.f32 %v1952, %v1976
    %1978 = vdwg.mxu0
    %v1979 = vadd.f32 %v1008, %v1977
    %v1980 = vtanh.pop %v1979
    %1981 = vst.msk [vmem:[#allocation2 + $0x20] sm:$0xff] %vm595, %v1980
    %v1983 = vsel %vm595, %v1980, 0
    %1985 = vmatpush.msra.mxu0 0.0
    %1986 = vmatpush.msra.mxu0 0.0
    %1987 = vmatpush.msra.mxu0 0.0
    %1988 = vmatpush.msra.mxu0 0.0
    %1989 = vmatpush.msra.mxu0 0.0
    %1990 = vmatpush.msra.mxu0 0.0
    %1991 = vmatpush.msra.mxu0 0.0
    %1992 = vmatpush.msra.mxu0 0.0
    %1993 = vmatpush.msra.mxu0 0.0
    %1994 = vmatpush.msra.mxu0 0.0
    %1995 = vmatpush.msra.mxu0 0.0
    %1996 = vmatpush.msra.mxu0 0.0
    %v1997 = vand.u32 %v1025, 4294901760
    %1998 = vmatpush.msra.mxu0 %v1997
    %v1999 = vand.u32 %v1024, 4294901760
    %2000 = vmatpush.msra.mxu0 %v1999
    %v2001 = vand.u32 %v1023, 4294901760
    %2002 = vmatpush.msra.mxu0 %v2001
    %v2003 = vand.u32 %v1022, 4294901760
    %2004 = vmatpush.msra.mxu0 %v2003
    %v2005 = vand.u32 %v1983, 4294901760
    %v2006 = vsub.f32 %v1983, %v2005
    %v2007 = vand.u32 %v2006, 4294901760
    %v2008 = vsub.f32 %v2006, %v2007
    %v2009 = vand.u32 %v2008, 4294901760
    %2010 = vmatmul.f32.gmra.mxu0 %v2009
    %v2011 = vpop.f32.mrf.mxu0
    %v2012 = vadd.f32 0.0, %v2011
    %2013 = vdwg.mxu0
    %2014 = vmatpush.msra.mxu0 0.0
    %2015 = vmatpush.msra.mxu0 0.0
    %2016 = vmatpush.msra.mxu0 0.0
    %2017 = vmatpush.msra.mxu0 0.0
    %2018 = vmatpush.msra.mxu0 0.0
    %2019 = vmatpush.msra.mxu0 0.0
    %2020 = vmatpush.msra.mxu0 0.0
    %2021 = vmatpush.msra.mxu0 0.0
    %2022 = vmatpush.msra.mxu0 0.0
    %2023 = vmatpush.msra.mxu0 0.0
    %2024 = vmatpush.msra.mxu0 0.0
    %2025 = vmatpush.msra.mxu0 0.0
    %v2026 = vand.u32 %v1025, 4294901760
    %v2027 = vsub.f32 %v1025, %v2026
    %v2028 = vand.u32 %v2027, 4294901760
    %v2029 = vsub.f32 %v2027, %v2028
    %v2030 = vand.u32 %v2029, 4294901760
    %2031 = vmatpush.msra.mxu0 %v2030
    %v2032 = vand.u32 %v1024, 4294901760
    %v2033 = vsub.f32 %v1024, %v2032
    %v2034 = vand.u32 %v2033, 4294901760
    %v2035 = vsub.f32 %v2033, %v2034
    %v2036 = vand.u32 %v2035, 4294901760
    %2037 = vmatpush.msra.mxu0 %v2036
    %v2038 = vand.u32 %v1023, 4294901760
    %v2039 = vsub.f32 %v1023, %v2038
    %v2040 = vand.u32 %v2039, 4294901760
    %v2041 = vsub.f32 %v2039, %v2040
    %v2042 = vand.u32 %v2041, 4294901760
    %2043 = vmatpush.msra.mxu0 %v2042
    %v2044 = vand.u32 %v1022, 4294901760
    %v2045 = vsub.f32 %v1022, %v2044
    %v2046 = vand.u32 %v2045, 4294901760
    %v2047 = vsub.f32 %v2045, %v2046
    %v2048 = vand.u32 %v2047, 4294901760
    %2049 = vmatpush.msra.mxu0 %v2048
    %v2050 = vand.u32 %v1983, 4294901760
    %2051 = vmatmul.f32.gmra.mxu0 %v2050
    %v2052 = vpop.f32.mrf.mxu0
    %v2053 = vadd.f32 %v2012, %v2052
    %2054 = vdwg.mxu0
    %2055 = vmatpush.msra.mxu0 0.0
    %2056 = vmatpush.msra.mxu0 0.0
    %2057 = vmatpush.msra.mxu0 0.0
    %2058 = vmatpush.msra.mxu0 0.0
    %2059 = vmatpush.msra.mxu0 0.0
    %2060 = vmatpush.msra.mxu0 0.0
    %2061 = vmatpush.msra.mxu0 0.0
    %2062 = vmatpush.msra.mxu0 0.0
    %2063 = vmatpush.msra.mxu0 0.0
    %2064 = vmatpush.msra.mxu0 0.0
    %2065 = vmatpush.msra.mxu0 0.0
    %2066 = vmatpush.msra.mxu0 0.0
    %v2067 = vand.u32 %v1025, 4294901760
    %v2068 = vsub.f32 %v1025, %v2067
    %2069 = vmatpush.msra.mxu0 %v2068
    %v2070 = vand.u32 %v1024, 4294901760
    %v2071 = vsub.f32 %v1024, %v2070
    %2072 = vmatpush.msra.mxu0 %v2071
    %v2073 = vand.u32 %v1023, 4294901760
    %v2074 = vsub.f32 %v1023, %v2073
    %2075 = vmatpush.msra.mxu0 %v2074
    %v2076 = vand.u32 %v1022, 4294901760
    %v2077 = vsub.f32 %v1022, %v2076
    %2078 = vmatpush.msra.mxu0 %v2077
    %v2079 = vand.u32 %v1983, 4294901760
    %v2080 = vsub.f32 %v1983, %v2079
    %2081 = vmatmul.f32.gmra.mxu0 %v2080
    %v2082 = vpop.f32.mrf.mxu0
    %v2083 = vadd.f32 %v2053, %v2082
    %2084 = vdwg.mxu0
    %2085 = vmatpush.msra.mxu0 0.0
    %2086 = vmatpush.msra.mxu0 0.0
    %2087 = vmatpush.msra.mxu0 0.0
    %2088 = vmatpush.msra.mxu0 0.0
    %2089 = vmatpush.msra.mxu0 0.0
    %2090 = vmatpush.msra.mxu0 0.0
    %2091 = vmatpush.msra.mxu0 0.0
    %2092 = vmatpush.msra.mxu0 0.0
    %2093 = vmatpush.msra.mxu0 0.0
    %2094 = vmatpush.msra.mxu0 0.0
    %2095 = vmatpush.msra.mxu0 0.0
    %2096 = vmatpush.msra.mxu0 0.0
    %v2097 = vand.u32 %v1025, 4294901760
    %2098 = vmatpush.msra.mxu0 %v2097
    %v2099 = vand.u32 %v1024, 4294901760
    %2100 = vmatpush.msra.mxu0 %v2099
    %v2101 = vand.u32 %v1023, 4294901760
    %2102 = vmatpush.msra.mxu0 %v2101
    %v2103 = vand.u32 %v1022, 4294901760
    %2104 = vmatpush.msra.mxu0 %v2103
    %v2105 = vand.u32 %v1983, 4294901760
    %v2106 = vsub.f32 %v1983, %v2105
    %v2107 = vand.u32 %v2106, 4294901760
    %2108 = vmatmul.f32.gmra.mxu0 %v2107
    %v2109 = vpop.f32.mrf.mxu0
    %v2110 = vadd.f32 %v2083, %v2109
    %2111 = vdwg.mxu0
    %2112 = vmatpush.msra.mxu0 0.0
    %2113 = vmatpush.msra.mxu0 0.0
    %2114 = vmatpush.msra.mxu0 0.0
    %2115 = vmatpush.msra.mxu0 0.0
    %2116 = vmatpush.msra.mxu0 0.0
    %2117 = vmatpush.msra.mxu0 0.0
    %2118 = vmatpush.msra.mxu0 0.0
    %2119 = vmatpush.msra.mxu0 0.0
    %2120 = vmatpush.msra.mxu0 0.0
    %2121 = vmatpush.msra.mxu0 0.0
    %2122 = vmatpush.msra.mxu0 0.0
    %2123 = vmatpush.msra.mxu0 0.0
    %v2124 = vand.u32 %v1025, 4294901760
    %v2125 = vsub.f32 %v1025, %v2124
    %v2126 = vand.u32 %v2125, 4294901760
    %2127 = vmatpush.msra.mxu0 %v2126
    %v2128 = vand.u32 %v1024, 4294901760
    %v2129 = vsub.f32 %v1024, %v2128
    %v2130 = vand.u32 %v2129, 4294901760
    %2131 = vmatpush.msra.mxu0 %v2130
    %v2132 = vand.u32 %v1023, 4294901760
    %v2133 = vsub.f32 %v1023, %v2132
    %v2134 = vand.u32 %v2133, 4294901760
    %2135 = vmatpush.msra.mxu0 %v2134
    %v2136 = vand.u32 %v1022, 4294901760
    %v2137 = vsub.f32 %v1022, %v2136
    %v2138 = vand.u32 %v2137, 4294901760
    %2139 = vmatpush.msra.mxu0 %v2138
    %v2140 = vand.u32 %v1983, 4294901760
    %2141 = vmatmul.f32.gmra.mxu0 %v2140
    %v2142 = vpop.f32.mrf.mxu0
    %v2143 = vadd.f32 %v2110, %v2142
    %2144 = vdwg.mxu0
    %2145 = vmatpush.msra.mxu0 0.0
    %2146 = vmatpush.msra.mxu0 0.0
    %2147 = vmatpush.msra.mxu0 0.0
    %2148 = vmatpush.msra.mxu0 0.0
    %2149 = vmatpush.msra.mxu0 0.0
    %2150 = vmatpush.msra.mxu0 0.0
    %2151 = vmatpush.msra.mxu0 0.0
    %2152 = vmatpush.msra.mxu0 0.0
    %2153 = vmatpush.msra.mxu0 0.0
    %2154 = vmatpush.msra.mxu0 0.0
    %2155 = vmatpush.msra.mxu0 0.0
    %2156 = vmatpush.msra.mxu0 0.0
    %v2157 = vand.u32 %v1025, 4294901760
    %2158 = vmatpush.msra.mxu0 %v2157
    %v2159 = vand.u32 %v1024, 4294901760
    %2160 = vmatpush.msra.mxu0 %v2159
    %v2161 = vand.u32 %v1023, 4294901760
    %2162 = vmatpush.msra.mxu0 %v2161
    %v2163 = vand.u32 %v1022, 4294901760
    %2164 = vmatpush.msra.mxu0 %v2163
    %v2165 = vand.u32 %v1983, 4294901760
    %2166 = vmatmul.f32.gmra.mxu0 %v2165
    %v2167 = vpop.f32.mrf.mxu0
    %v2168 = vadd.f32 %v2143, %v2167
    %2169 = vdwg.mxu0
    %v2170 = vadd.f32 %v1012, %v2168
    %v2171 = vtanh.pop %v2170
    %2172 = vst.msk [vmem:[#allocation2 + $0x28] sm:$0xff] %vm595, %v2171
    %v2174 = vsel %vm595, %v2171, 0
    %2176 = vmatpush.msra.mxu0 0.0
    %2177 = vmatpush.msra.mxu0 0.0
    %2178 = vmatpush.msra.mxu0 0.0
    %2179 = vmatpush.msra.mxu0 0.0
    %2180 = vmatpush.msra.mxu0 0.0
    %2181 = vmatpush.msra.mxu0 0.0
    %2182 = vmatpush.msra.mxu0 0.0
    %2183 = vmatpush.msra.mxu0 0.0
    %2184 = vmatpush.msra.mxu0 0.0
    %2185 = vmatpush.msra.mxu0 0.0
    %2186 = vmatpush.msra.mxu0 0.0
    %2187 = vmatpush.msra.mxu0 0.0
    %v2188 = vand.u32 %v1025, 4294901760
    %2189 = vmatpush.msra.mxu0 %v2188
    %v2190 = vand.u32 %v1024, 4294901760
    %2191 = vmatpush.msra.mxu0 %v2190
    %v2192 = vand.u32 %v1023, 4294901760
    %2193 = vmatpush.msra.mxu0 %v2192
    %v2194 = vand.u32 %v1022, 4294901760
    %2195 = vmatpush.msra.mxu0 %v2194
    %v2196 = vand.u32 %v2174, 4294901760
    %v2197 = vsub.f32 %v2174, %v2196
    %v2198 = vand.u32 %v2197, 4294901760
    %v2199 = vsub.f32 %v2197, %v2198
    %v2200 = vand.u32 %v2199, 4294901760
    %2201 = vmatmul.f32.gmra.mxu0 %v2200
    %v2202 = vpop.f32.mrf.mxu0
    %v2203 = vadd.f32 0.0, %v2202
    %2204 = vdwg.mxu0
    %2205 = vmatpush.msra.mxu0 0.0
    %2206 = vmatpush.msra.mxu0 0.0
    %2207 = vmatpush.msra.mxu0 0.0
    %2208 = vmatpush.msra.mxu0 0.0
    %2209 = vmatpush.msra.mxu0 0.0
    %2210 = vmatpush.msra.mxu0 0.0
    %2211 = vmatpush.msra.mxu0 0.0
    %2212 = vmatpush.msra.mxu0 0.0
    %2213 = vmatpush.msra.mxu0 0.0
    %2214 = vmatpush.msra.mxu0 0.0
    %2215 = vmatpush.msra.mxu0 0.0
    %2216 = vmatpush.msra.mxu0 0.0
    %v2217 = vand.u32 %v1025, 4294901760
    %v2218 = vsub.f32 %v1025, %v2217
    %v2219 = vand.u32 %v2218, 4294901760
    %v2220 = vsub.f32 %v2218, %v2219
    %v2221 = vand.u32 %v2220, 4294901760
    %2222 = vmatpush.msra.mxu0 %v2221
    %v2223 = vand.u32 %v1024, 4294901760
    %v2224 = vsub.f32 %v1024, %v2223
    %v2225 = vand.u32 %v2224, 4294901760
    %v2226 = vsub.f32 %v2224, %v2225
    %v2227 = vand.u32 %v2226, 4294901760
    %2228 = vmatpush.msra.mxu0 %v2227
    %v2229 = vand.u32 %v1023, 4294901760
    %v2230 = vsub.f32 %v1023, %v2229
    %v2231 = vand.u32 %v2230, 4294901760
    %v2232 = vsub.f32 %v2230, %v2231
    %v2233 = vand.u32 %v2232, 4294901760
    %2234 = vmatpush.msra.mxu0 %v2233
    %v2235 = vand.u32 %v1022, 4294901760
    %v2236 = vsub.f32 %v1022, %v2235
    %v2237 = vand.u32 %v2236, 4294901760
    %v2238 = vsub.f32 %v2236, %v2237
    %v2239 = vand.u32 %v2238, 4294901760
    %2240 = vmatpush.msra.mxu0 %v2239
    %v2241 = vand.u32 %v2174, 4294901760
    %2242 = vmatmul.f32.gmra.mxu0 %v2241
    %v2243 = vpop.f32.mrf.mxu0
    %v2244 = vadd.f32 %v2203, %v2243
    %2245 = vdwg.mxu0
    %2246 = vmatpush.msra.mxu0 0.0
    %2247 = vmatpush.msra.mxu0 0.0
    %2248 = vmatpush.msra.mxu0 0.0
    %2249 = vmatpush.msra.mxu0 0.0
    %2250 = vmatpush.msra.mxu0 0.0
    %2251 = vmatpush.msra.mxu0 0.0
    %2252 = vmatpush.msra.mxu0 0.0
    %2253 = vmatpush.msra.mxu0 0.0
    %2254 = vmatpush.msra.mxu0 0.0
    %2255 = vmatpush.msra.mxu0 0.0
    %2256 = vmatpush.msra.mxu0 0.0
    %2257 = vmatpush.msra.mxu0 0.0
    %v2258 = vand.u32 %v1025, 4294901760
    %v2259 = vsub.f32 %v1025, %v2258
    %2260 = vmatpush.msra.mxu0 %v2259
    %v2261 = vand.u32 %v1024, 4294901760
    %v2262 = vsub.f32 %v1024, %v2261
    %2263 = vmatpush.msra.mxu0 %v2262
    %v2264 = vand.u32 %v1023, 4294901760
    %v2265 = vsub.f32 %v1023, %v2264
    %2266 = vmatpush.msra.mxu0 %v2265
    %v2267 = vand.u32 %v1022, 4294901760
    %v2268 = vsub.f32 %v1022, %v2267
    %2269 = vmatpush.msra.mxu0 %v2268
    %v2270 = vand.u32 %v2174, 4294901760
    %v2271 = vsub.f32 %v2174, %v2270
    %2272 = vmatmul.f32.gmra.mxu0 %v2271
    %v2273 = vpop.f32.mrf.mxu0
    %v2274 = vadd.f32 %v2244, %v2273
    %2275 = vdwg.mxu0
    %2276 = vmatpush.msra.mxu0 0.0
    %2277 = vmatpush.msra.mxu0 0.0
    %2278 = vmatpush.msra.mxu0 0.0
    %2279 = vmatpush.msra.mxu0 0.0
    %2280 = vmatpush.msra.mxu0 0.0
    %2281 = vmatpush.msra.mxu0 0.0
    %2282 = vmatpush.msra.mxu0 0.0
    %2283 = vmatpush.msra.mxu0 0.0
    %2284 = vmatpush.msra.mxu0 0.0
    %2285 = vmatpush.msra.mxu0 0.0
    %2286 = vmatpush.msra.mxu0 0.0
    %2287 = vmatpush.msra.mxu0 0.0
    %v2288 = vand.u32 %v1025, 4294901760
    %2289 = vmatpush.msra.mxu0 %v2288
    %v2290 = vand.u32 %v1024, 4294901760
    %2291 = vmatpush.msra.mxu0 %v2290
    %v2292 = vand.u32 %v1023, 4294901760
    %2293 = vmatpush.msra.mxu0 %v2292
    %v2294 = vand.u32 %v1022, 4294901760
    %2295 = vmatpush.msra.mxu0 %v2294
    %v2296 = vand.u32 %v2174, 4294901760
    %v2297 = vsub.f32 %v2174, %v2296
    %v2298 = vand.u32 %v2297, 4294901760
    %2299 = vmatmul.f32.gmra.mxu0 %v2298
    %v2300 = vpop.f32.mrf.mxu0
    %v2301 = vadd.f32 %v2274, %v2300
    %2302 = vdwg.mxu0
    %2303 = vmatpush.msra.mxu0 0.0
    %2304 = vmatpush.msra.mxu0 0.0
    %2305 = vmatpush.msra.mxu0 0.0
    %2306 = vmatpush.msra.mxu0 0.0
    %2307 = vmatpush.msra.mxu0 0.0
    %2308 = vmatpush.msra.mxu0 0.0
    %2309 = vmatpush.msra.mxu0 0.0
    %2310 = vmatpush.msra.mxu0 0.0
    %2311 = vmatpush.msra.mxu0 0.0
    %2312 = vmatpush.msra.mxu0 0.0
    %2313 = vmatpush.msra.mxu0 0.0
    %2314 = vmatpush.msra.mxu0 0.0
    %v2315 = vand.u32 %v1025, 4294901760
    %v2316 = vsub.f32 %v1025, %v2315
    %v2317 = vand.u32 %v2316, 4294901760
    %2318 = vmatpush.msra.mxu0 %v2317
    %v2319 = vand.u32 %v1024, 4294901760
    %v2320 = vsub.f32 %v1024, %v2319
    %v2321 = vand.u32 %v2320, 4294901760
    %2322 = vmatpush.msra.mxu0 %v2321
    %v2323 = vand.u32 %v1023, 4294901760
    %v2324 = vsub.f32 %v1023, %v2323
    %v2325 = vand.u32 %v2324, 4294901760
    %2326 = vmatpush.msra.mxu0 %v2325
    %v2327 = vand.u32 %v1022, 4294901760
    %v2328 = vsub.f32 %v1022, %v2327
    %v2329 = vand.u32 %v2328, 4294901760
    %2330 = vmatpush.msra.mxu0 %v2329
    %v2331 = vand.u32 %v2174, 4294901760
    %2332 = vmatmul.f32.gmra.mxu0 %v2331
    %v2333 = vpop.f32.mrf.mxu0
    %v2334 = vadd.f32 %v2301, %v2333
    %2335 = vdwg.mxu0
    %2336 = vmatpush.msra.mxu0 0.0
    %2337 = vmatpush.msra.mxu0 0.0
    %2338 = vmatpush.msra.mxu0 0.0
    %2339 = vmatpush.msra.mxu0 0.0
    %2340 = vmatpush.msra.mxu0 0.0
    %2341 = vmatpush.msra.mxu0 0.0
    %2342 = vmatpush.msra.mxu0 0.0
    %2343 = vmatpush.msra.mxu0 0.0
    %2344 = vmatpush.msra.mxu0 0.0
    %2345 = vmatpush.msra.mxu0 0.0
    %2346 = vmatpush.msra.mxu0 0.0
    %2347 = vmatpush.msra.mxu0 0.0
    %v2348 = vand.u32 %v1025, 4294901760
    %2349 = vmatpush.msra.mxu0 %v2348
    %v2350 = vand.u32 %v1024, 4294901760
    %2351 = vmatpush.msra.mxu0 %v2350
    %v2352 = vand.u32 %v1023, 4294901760
    %2353 = vmatpush.msra.mxu0 %v2352
    %v2354 = vand.u32 %v1022, 4294901760
    %2355 = vmatpush.msra.mxu0 %v2354
    %v2356 = vand.u32 %v2174, 4294901760
    %2357 = vmatmul.f32.gmra.mxu0 %v2356
    %v2358 = vpop.f32.mrf.mxu0
    %v2359 = vadd.f32 %v2334, %v2358
    %2360 = vdwg.mxu0
    %v2361 = vadd.f32 %v1016, %v2359
    %v2362 = vtanh.pop %v2361
    %2363 = vst.msk [vmem:[#allocation2 + $0x30] sm:$0xff] %vm595, %v2362
    %v2365 = vsel %vm595, %v2362, 0
    %2367 = vmatpush.msra.mxu0 0.0
    %2368 = vmatpush.msra.mxu0 0.0
    %2369 = vmatpush.msra.mxu0 0.0
    %2370 = vmatpush.msra.mxu0 0.0
    %2371 = vmatpush.msra.mxu0 0.0
    %2372 = vmatpush.msra.mxu0 0.0
    %2373 = vmatpush.msra.mxu0 0.0
    %2374 = vmatpush.msra.mxu0 0.0
    %2375 = vmatpush.msra.mxu0 0.0
    %2376 = vmatpush.msra.mxu0 0.0
    %2377 = vmatpush.msra.mxu0 0.0
    %2378 = vmatpush.msra.mxu0 0.0
    %v2379 = vand.u32 %v1025, 4294901760
    %2380 = vmatpush.msra.mxu0 %v2379
    %v2381 = vand.u32 %v1024, 4294901760
    %2382 = vmatpush.msra.mxu0 %v2381
    %v2383 = vand.u32 %v1023, 4294901760
    %2384 = vmatpush.msra.mxu0 %v2383
    %v2385 = vand.u32 %v1022, 4294901760
    %2386 = vmatpush.msra.mxu0 %v2385
    %v2387 = vand.u32 %v2365, 4294901760
    %v2388 = vsub.f32 %v2365, %v2387
    %v2389 = vand.u32 %v2388, 4294901760
    %v2390 = vsub.f32 %v2388, %v2389
    %v2391 = vand.u32 %v2390, 4294901760
    %2392 = vmatmul.f32.gmra.mxu0 %v2391
    %v2393 = vpop.f32.mrf.mxu0
    %v2394 = vadd.f32 0.0, %v2393
    %2395 = vdwg.mxu0
    %2396 = vmatpush.msra.mxu0 0.0
    %2397 = vmatpush.msra.mxu0 0.0
    %2398 = vmatpush.msra.mxu0 0.0
    %2399 = vmatpush.msra.mxu0 0.0
    %2400 = vmatpush.msra.mxu0 0.0
    %2401 = vmatpush.msra.mxu0 0.0
    %2402 = vmatpush.msra.mxu0 0.0
    %2403 = vmatpush.msra.mxu0 0.0
    %2404 = vmatpush.msra.mxu0 0.0
    %2405 = vmatpush.msra.mxu0 0.0
    %2406 = vmatpush.msra.mxu0 0.0
    %2407 = vmatpush.msra.mxu0 0.0
    %v2408 = vand.u32 %v1025, 4294901760
    %v2409 = vsub.f32 %v1025, %v2408
    %v2410 = vand.u32 %v2409, 4294901760
    %v2411 = vsub.f32 %v2409, %v2410
    %v2412 = vand.u32 %v2411, 4294901760
    %2413 = vmatpush.msra.mxu0 %v2412
    %v2414 = vand.u32 %v1024, 4294901760
    %v2415 = vsub.f32 %v1024, %v2414
    %v2416 = vand.u32 %v2415, 4294901760
    %v2417 = vsub.f32 %v2415, %v2416
    %v2418 = vand.u32 %v2417, 4294901760
    %2419 = vmatpush.msra.mxu0 %v2418
    %v2420 = vand.u32 %v1023, 4294901760
    %v2421 = vsub.f32 %v1023, %v2420
    %v2422 = vand.u32 %v2421, 4294901760
    %v2423 = vsub.f32 %v2421, %v2422
    %v2424 = vand.u32 %v2423, 4294901760
    %2425 = vmatpush.msra.mxu0 %v2424
    %v2426 = vand.u32 %v1022, 4294901760
    %v2427 = vsub.f32 %v1022, %v2426
    %v2428 = vand.u32 %v2427, 4294901760
    %v2429 = vsub.f32 %v2427, %v2428
    %v2430 = vand.u32 %v2429, 4294901760
    %2431 = vmatpush.msra.mxu0 %v2430
    %v2432 = vand.u32 %v2365, 4294901760
    %2433 = vmatmul.f32.gmra.mxu0 %v2432
    %v2434 = vpop.f32.mrf.mxu0
    %v2435 = vadd.f32 %v2394, %v2434
    %2436 = vdwg.mxu0
    %2437 = vmatpush.msra.mxu0 0.0
    %2438 = vmatpush.msra.mxu0 0.0
    %2439 = vmatpush.msra.mxu0 0.0
    %2440 = vmatpush.msra.mxu0 0.0
    %2441 = vmatpush.msra.mxu0 0.0
    %2442 = vmatpush.msra.mxu0 0.0
    %2443 = vmatpush.msra.mxu0 0.0
    %2444 = vmatpush.msra.mxu0 0.0
    %2445 = vmatpush.msra.mxu0 0.0
    %2446 = vmatpush.msra.mxu0 0.0
    %2447 = vmatpush.msra.mxu0 0.0
    %2448 = vmatpush.msra.mxu0 0.0
    %v2449 = vand.u32 %v1025, 4294901760
    %v2450 = vsub.f32 %v1025, %v2449
    %2451 = vmatpush.msra.mxu0 %v2450
    %v2452 = vand.u32 %v1024, 4294901760
    %v2453 = vsub.f32 %v1024, %v2452
    %2454 = vmatpush.msra.mxu0 %v2453
    %v2455 = vand.u32 %v1023, 4294901760
    %v2456 = vsub.f32 %v1023, %v2455
    %2457 = vmatpush.msra.mxu0 %v2456
    %v2458 = vand.u32 %v1022, 4294901760
    %v2459 = vsub.f32 %v1022, %v2458
    %2460 = vmatpush.msra.mxu0 %v2459
    %v2461 = vand.u32 %v2365, 4294901760
    %v2462 = vsub.f32 %v2365, %v2461
    %2463 = vmatmul.f32.gmra.mxu0 %v2462
    %v2464 = vpop.f32.mrf.mxu0
    %v2465 = vadd.f32 %v2435, %v2464
    %2466 = vdwg.mxu0
    %2467 = vmatpush.msra.mxu0 0.0
    %2468 = vmatpush.msra.mxu0 0.0
    %2469 = vmatpush.msra.mxu0 0.0
    %2470 = vmatpush.msra.mxu0 0.0
    %2471 = vmatpush.msra.mxu0 0.0
    %2472 = vmatpush.msra.mxu0 0.0
    %2473 = vmatpush.msra.mxu0 0.0
    %2474 = vmatpush.msra.mxu0 0.0
    %2475 = vmatpush.msra.mxu0 0.0
    %2476 = vmatpush.msra.mxu0 0.0
    %2477 = vmatpush.msra.mxu0 0.0
    %2478 = vmatpush.msra.mxu0 0.0
    %v2479 = vand.u32 %v1025, 4294901760
    %2480 = vmatpush.msra.mxu0 %v2479
    %v2481 = vand.u32 %v1024, 4294901760
    %2482 = vmatpush.msra.mxu0 %v2481
    %v2483 = vand.u32 %v1023, 4294901760
    %2484 = vmatpush.msra.mxu0 %v2483
    %v2485 = vand.u32 %v1022, 4294901760
    %2486 = vmatpush.msra.mxu0 %v2485
    %v2487 = vand.u32 %v2365, 4294901760
    %v2488 = vsub.f32 %v2365, %v2487
    %v2489 = vand.u32 %v2488, 4294901760
    %2490 = vmatmul.f32.gmra.mxu0 %v2489
    %v2491 = vpop.f32.mrf.mxu0
    %v2492 = vadd.f32 %v2465, %v2491
    %2493 = vdwg.mxu0
    %2494 = vmatpush.msra.mxu0 0.0
    %2495 = vmatpush.msra.mxu0 0.0
    %2496 = vmatpush.msra.mxu0 0.0
    %2497 = vmatpush.msra.mxu0 0.0
    %2498 = vmatpush.msra.mxu0 0.0
    %2499 = vmatpush.msra.mxu0 0.0
    %2500 = vmatpush.msra.mxu0 0.0
    %2501 = vmatpush.msra.mxu0 0.0
    %2502 = vmatpush.msra.mxu0 0.0
    %2503 = vmatpush.msra.mxu0 0.0
    %2504 = vmatpush.msra.mxu0 0.0
    %2505 = vmatpush.msra.mxu0 0.0
    %v2506 = vand.u32 %v1025, 4294901760
    %v2507 = vsub.f32 %v1025, %v2506
    %v2508 = vand.u32 %v2507, 4294901760
    %2509 = vmatpush.msra.mxu0 %v2508
    %v2510 = vand.u32 %v1024, 4294901760
    %v2511 = vsub.f32 %v1024, %v2510
    %v2512 = vand.u32 %v2511, 4294901760
    %2513 = vmatpush.msra.mxu0 %v2512
    %v2514 = vand.u32 %v1023, 4294901760
    %v2515 = vsub.f32 %v1023, %v2514
    %v2516 = vand.u32 %v2515, 4294901760
    %2517 = vmatpush.msra.mxu0 %v2516
    %v2518 = vand.u32 %v1022, 4294901760
    %v2519 = vsub.f32 %v1022, %v2518
    %v2520 = vand.u32 %v2519, 4294901760
    %2521 = vmatpush.msra.mxu0 %v2520
    %v2522 = vand.u32 %v2365, 4294901760
    %2523 = vmatmul.f32.gmra.mxu0 %v2522
    %v2524 = vpop.f32.mrf.mxu0
    %v2525 = vadd.f32 %v2492, %v2524
    %2526 = vdwg.mxu0
    %2527 = vmatpush.msra.mxu0 0.0
    %2528 = vmatpush.msra.mxu0 0.0
    %2529 = vmatpush.msra.mxu0 0.0
    %2530 = vmatpush.msra.mxu0 0.0
    %2531 = vmatpush.msra.mxu0 0.0
    %2532 = vmatpush.msra.mxu0 0.0
    %2533 = vmatpush.msra.mxu0 0.0
    %2534 = vmatpush.msra.mxu0 0.0
    %2535 = vmatpush.msra.mxu0 0.0
    %2536 = vmatpush.msra.mxu0 0.0
    %2537 = vmatpush.msra.mxu0 0.0
    %2538 = vmatpush.msra.mxu0 0.0
    %v2539 = vand.u32 %v1025, 4294901760
    %2540 = vmatpush.msra.mxu0 %v2539
    %v2541 = vand.u32 %v1024, 4294901760
    %2542 = vmatpush.msra.mxu0 %v2541
    %v2543 = vand.u32 %v1023, 4294901760
    %2544 = vmatpush.msra.mxu0 %v2543
    %v2545 = vand.u32 %v1022, 4294901760
    %2546 = vmatpush.msra.mxu0 %v2545
    %v2547 = vand.u32 %v2365, 4294901760
    %2548 = vmatmul.f32.gmra.mxu0 %v2547
    %v2549 = vpop.f32.mrf.mxu0
    %v2550 = vadd.f32 %v2525, %v2549
    %2551 = vdwg.mxu0
    %v2552 = vadd.f32 %v1020, %v2550
    %v2553 = vtanh.pop %v2552
    %2554 = vst.msk [vmem:[#allocation2 + $0x38] sm:$0xff] %vm595, %v2553
    %v2555 = vld [vmem:[#allocation2] sm:$0xff]
    %v2556 = vld [vmem:[#allocation2 + $0x8] sm:$0xff]
    %v2557 = vld [vmem:[#allocation2 + $0x10] sm:$0xff]
    %v2558 = vld [vmem:[#allocation2 + $0x18] sm:$0xff]
    %v2559 = vld [vmem:[#allocation2 + $0x20] sm:$0xff]
    %v2560 = vld [vmem:[#allocation2 + $0x28] sm:$0xff]
    %v2561 = vld [vmem:[#allocation2 + $0x30] sm:$0xff]
    %v2562 = vld [vmem:[#allocation2 + $0x38] sm:$0xff]
    %s2563 = scalar_lea.vmem %s3, 32
    %v2564 = vld [vmem:[%s2563] sm:$0xff]
    %v2565 = vld [vmem:[%s2563 + $0x8] sm:$0xff]
    %v2566 = vld [vmem:[%s2563 + $0x10] sm:$0xff]
    %v2567 = vld [vmem:[%s2563 + $0x18] sm:$0xff]
    %s2568 = scalar_lea.vmem %s5, 1
    %v2569 = vld [vmem:[%s2568] sm:$0x1]
    %v2571 = vperm.slane %v2569, 0
    %v2574 = vsel %vm595, %v2555, 0
    %v2577 = vsel %vm595, %v2556, 0
    %v2580 = vsel %vm595, %v2557, 0
    %v2583 = vsel %vm595, %v2558, 0
    %v2586 = vsel %vm595, %v2559, 0
    %v2589 = vsel %vm595, %v2560, 0
    %v2592 = vsel %vm595, %v2561, 0
    %v2595 = vsel %vm595, %v2562, 0
    %2597 = vmatpush.msra.mxu0 0.0
    %2598 = vmatpush.msra.mxu0 0.0
    %2599 = vmatpush.msra.mxu0 0.0
    %2600 = vmatpush.msra.mxu0 0.0
    %2601 = vmatpush.msra.mxu0 0.0
    %2602 = vmatpush.msra.mxu0 0.0
    %2603 = vmatpush.msra.mxu0 0.0
    %2604 = vmatpush.msra.mxu0 0.0
    %2605 = vmatpush.msra.mxu0 0.0
    %2606 = vmatpush.msra.mxu0 0.0
    %2607 = vmatpush.msra.mxu0 0.0
    %2608 = vmatpush.msra.mxu0 0.0
    %v2609 = vand.u32 %v2567, 4294901760
    %2610 = vmatpush.msra.mxu0 %v2609
    %v2611 = vand.u32 %v2566, 4294901760
    %2612 = vmatpush.msra.mxu0 %v2611
    %v2613 = vand.u32 %v2565, 4294901760
    %2614 = vmatpush.msra.mxu0 %v2613
    %v2615 = vand.u32 %v2564, 4294901760
    %2616 = vmatpush.msra.mxu0 %v2615
    %v2617 = vand.u32 %v2574, 4294901760
    %v2618 = vsub.f32 %v2574, %v2617
    %v2619 = vand.u32 %v2618, 4294901760
    %v2620 = vsub.f32 %v2618, %v2619
    %v2621 = vand.u32 %v2620, 4294901760
    %2622 = vmatmul.f32.gmra.mxu0 %v2621
    %v2623 = vpop.f32.mrf.mxu0
    %v2624 = vadd.f32 %v2571, %v2623
    %v2625 = vand.u32 %v2577, 4294901760
    %v2626 = vsub.f32 %v2577, %v2625
    %v2627 = vand.u32 %v2626, 4294901760
    %v2628 = vsub.f32 %v2626, %v2627
    %v2629 = vand.u32 %v2628, 4294901760
    %2630 = vmatmul.f32.gmra.mxu0 %v2629
    %v2631 = vpop.f32.mrf.mxu0
    %v2632 = vadd.f32 %v2571, %v2631
    %v2633 = vand.u32 %v2580, 4294901760
    %v2634 = vsub.f32 %v2580, %v2633
    %v2635 = vand.u32 %v2634, 4294901760
    %v2636 = vsub.f32 %v2634, %v2635
    %v2637 = vand.u32 %v2636, 4294901760
    %2638 = vmatmul.f32.gmra.mxu0 %v2637
    %v2639 = vpop.f32.mrf.mxu0
    %v2640 = vadd.f32 %v2571, %v2639
    %v2641 = vand.u32 %v2583, 4294901760
    %v2642 = vsub.f32 %v2583, %v2641
    %v2643 = vand.u32 %v2642, 4294901760
    %v2644 = vsub.f32 %v2642, %v2643
    %v2645 = vand.u32 %v2644, 4294901760
    %2646 = vmatmul.f32.gmra.mxu0 %v2645
    %v2647 = vpop.f32.mrf.mxu0
    %v2648 = vadd.f32 %v2571, %v2647
    %v2649 = vand.u32 %v2586, 4294901760
    %v2650 = vsub.f32 %v2586, %v2649
    %v2651 = vand.u32 %v2650, 4294901760
    %v2652 = vsub.f32 %v2650, %v2651
    %v2653 = vand.u32 %v2652, 4294901760
    %2654 = vmatmul.f32.gmra.mxu0 %v2653
    %v2655 = vpop.f32.mrf.mxu0
    %v2656 = vadd.f32 %v2571, %v2655
    %v2657 = vand.u32 %v2589, 4294901760
    %v2658 = vsub.f32 %v2589, %v2657
    %v2659 = vand.u32 %v2658, 4294901760
    %v2660 = vsub.f32 %v2658, %v2659
    %v2661 = vand.u32 %v2660, 4294901760
    %2662 = vmatmul.f32.gmra.mxu0 %v2661
    %v2663 = vpop.f32.mrf.mxu0
    %v2664 = vadd.f32 %v2571, %v2663
    %v2665 = vand.u32 %v2592, 4294901760
    %v2666 = vsub.f32 %v2592, %v2665
    %v2667 = vand.u32 %v2666, 4294901760
    %v2668 = vsub.f32 %v2666, %v2667
    %v2669 = vand.u32 %v2668, 4294901760
    %2670 = vmatmul.f32.gmra.mxu0 %v2669
    %v2671 = vpop.f32.mrf.mxu0
    %v2672 = vadd.f32 %v2571, %v2671
    %v2673 = vand.u32 %v2595, 4294901760
    %v2674 = vsub.f32 %v2595, %v2673
    %v2675 = vand.u32 %v2674, 4294901760
    %v2676 = vsub.f32 %v2674, %v2675
    %v2677 = vand.u32 %v2676, 4294901760
    %2678 = vmatmul.f32.gmra.mxu0 %v2677
    %v2679 = vpop.f32.mrf.mxu0
    %v2680 = vadd.f32 %v2571, %v2679
    %2681 = vdwg.mxu0
    %2682 = vmatpush.msra.mxu0 0.0
    %2683 = vmatpush.msra.mxu0 0.0
    %2684 = vmatpush.msra.mxu0 0.0
    %2685 = vmatpush.msra.mxu0 0.0
    %2686 = vmatpush.msra.mxu0 0.0
    %2687 = vmatpush.msra.mxu0 0.0
    %2688 = vmatpush.msra.mxu0 0.0
    %2689 = vmatpush.msra.mxu0 0.0
    %2690 = vmatpush.msra.mxu0 0.0
    %2691 = vmatpush.msra.mxu0 0.0
    %2692 = vmatpush.msra.mxu0 0.0
    %2693 = vmatpush.msra.mxu0 0.0
    %v2694 = vand.u32 %v2567, 4294901760
    %v2695 = vsub.f32 %v2567, %v2694
    %v2696 = vand.u32 %v2695, 4294901760
    %v2697 = vsub.f32 %v2695, %v2696
    %v2698 = vand.u32 %v2697, 4294901760
    %2699 = vmatpush.msra.mxu0 %v2698
    %v2700 = vand.u32 %v2566, 4294901760
    %v2701 = vsub.f32 %v2566, %v2700
    %v2702 = vand.u32 %v2701, 4294901760
    %v2703 = vsub.f32 %v2701, %v2702
    %v2704 = vand.u32 %v2703, 4294901760
    %2705 = vmatpush.msra.mxu0 %v2704
    %v2706 = vand.u32 %v2565, 4294901760
    %v2707 = vsub.f32 %v2565, %v2706
    %v2708 = vand.u32 %v2707, 4294901760
    %v2709 = vsub.f32 %v2707, %v2708
    %v2710 = vand.u32 %v2709, 4294901760
    %2711 = vmatpush.msra.mxu0 %v2710
    %v2712 = vand.u32 %v2564, 4294901760
    %v2713 = vsub.f32 %v2564, %v2712
    %v2714 = vand.u32 %v2713, 4294901760
    %v2715 = vsub.f32 %v2713, %v2714
    %v2716 = vand.u32 %v2715, 4294901760
    %2717 = vmatpush.msra.mxu0 %v2716
    %v2718 = vand.u32 %v2574, 4294901760
    %2719 = vmatmul.f32.gmra.mxu0 %v2718
    %v2720 = vpop.f32.mrf.mxu0
    %v2721 = vadd.f32 %v2624, %v2720
    %v2722 = vand.u32 %v2577, 4294901760
    %2723 = vmatmul.f32.gmra.mxu0 %v2722
    %v2724 = vpop.f32.mrf.mxu0
    %v2725 = vadd.f32 %v2632, %v2724
    %v2726 = vand.u32 %v2580, 4294901760
    %2727 = vmatmul.f32.gmra.mxu0 %v2726
    %v2728 = vpop.f32.mrf.mxu0
    %v2729 = vadd.f32 %v2640, %v2728
    %v2730 = vand.u32 %v2583, 4294901760
    %2731 = vmatmul.f32.gmra.mxu0 %v2730
    %v2732 = vpop.f32.mrf.mxu0
    %v2733 = vadd.f32 %v2648, %v2732
    %v2734 = vand.u32 %v2586, 4294901760
    %2735 = vmatmul.f32.gmra.mxu0 %v2734
    %v2736 = vpop.f32.mrf.mxu0
    %v2737 = vadd.f32 %v2656, %v2736
    %v2738 = vand.u32 %v2589, 4294901760
    %2739 = vmatmul.f32.gmra.mxu0 %v2738
    %v2740 = vpop.f32.mrf.mxu0
    %v2741 = vadd.f32 %v2664, %v2740
    %v2742 = vand.u32 %v2592, 4294901760
    %2743 = vmatmul.f32.gmra.mxu0 %v2742
    %v2744 = vpop.f32.mrf.mxu0
    %v2745 = vadd.f32 %v2672, %v2744
    %v2746 = vand.u32 %v2595, 4294901760
    %2747 = vmatmul.f32.gmra.mxu0 %v2746
    %v2748 = vpop.f32.mrf.mxu0
    %v2749 = vadd.f32 %v2680, %v2748
    %2750 = vdwg.mxu0
    %2751 = vmatpush.msra.mxu0 0.0
    %2752 = vmatpush.msra.mxu0 0.0
    %2753 = vmatpush.msra.mxu0 0.0
    %2754 = vmatpush.msra.mxu0 0.0
    %2755 = vmatpush.msra.mxu0 0.0
    %2756 = vmatpush.msra.mxu0 0.0
    %2757 = vmatpush.msra.mxu0 0.0
    %2758 = vmatpush.msra.mxu0 0.0
    %2759 = vmatpush.msra.mxu0 0.0
    %2760 = vmatpush.msra.mxu0 0.0
    %2761 = vmatpush.msra.mxu0 0.0
    %2762 = vmatpush.msra.mxu0 0.0
    %v2763 = vand.u32 %v2567, 4294901760
    %v2764 = vsub.f32 %v2567, %v2763
    %2765 = vmatpush.msra.mxu0 %v2764
    %v2766 = vand.u32 %v2566, 4294901760
    %v2767 = vsub.f32 %v2566, %v2766
    %2768 = vmatpush.msra.mxu0 %v2767
    %v2769 = vand.u32 %v2565, 4294901760
    %v2770 = vsub.f32 %v2565, %v2769
    %2771 = vmatpush.msra.mxu0 %v2770
    %v2772 = vand.u32 %v2564, 4294901760
    %v2773 = vsub.f32 %v2564, %v2772
    %2774 = vmatpush.msra.mxu0 %v2773
    %v2775 = vand.u32 %v2574, 4294901760
    %v2776 = vsub.f32 %v2574, %v2775
    %2777 = vmatmul.f32.gmra.mxu0 %v2776
    %v2778 = vpop.f32.mrf.mxu0
    %v2779 = vadd.f32 %v2721, %v2778
    %v2780 = vand.u32 %v2577, 4294901760
    %v2781 = vsub.f32 %v2577, %v2780
    %2782 = vmatmul.f32.gmra.mxu0 %v2781
    %v2783 = vpop.f32.mrf.mxu0
    %v2784 = vadd.f32 %v2725, %v2783
    %v2785 = vand.u32 %v2580, 4294901760
    %v2786 = vsub.f32 %v2580, %v2785
    %2787 = vmatmul.f32.gmra.mxu0 %v2786
    %v2788 = vpop.f32.mrf.mxu0
    %v2789 = vadd.f32 %v2729, %v2788
    %v2790 = vand.u32 %v2583, 4294901760
    %v2791 = vsub.f32 %v2583, %v2790
    %2792 = vmatmul.f32.gmra.mxu0 %v2791
    %v2793 = vpop.f32.mrf.mxu0
    %v2794 = vadd.f32 %v2733, %v2793
    %v2795 = vand.u32 %v2586, 4294901760
    %v2796 = vsub.f32 %v2586, %v2795
    %2797 = vmatmul.f32.gmra.mxu0 %v2796
    %v2798 = vpop.f32.mrf.mxu0
    %v2799 = vadd.f32 %v2737, %v2798
    %v2800 = vand.u32 %v2589, 4294901760
    %v2801 = vsub.f32 %v2589, %v2800
    %2802 = vmatmul.f32.gmra.mxu0 %v2801
    %v2803 = vpop.f32.mrf.mxu0
    %v2804 = vadd.f32 %v2741, %v2803
    %v2805 = vand.u32 %v2592, 4294901760
    %v2806 = vsub.f32 %v2592, %v2805
    %2807 = vmatmul.f32.gmra.mxu0 %v2806
    %v2808 = vpop.f32.mrf.mxu0
    %v2809 = vadd.f32 %v2745, %v2808
    %v2810 = vand.u32 %v2595, 4294901760
    %v2811 = vsub.f32 %v2595, %v2810
    %2812 = vmatmul.f32.gmra.mxu0 %v2811
    %v2813 = vpop.f32.mrf.mxu0
    %v2814 = vadd.f32 %v2749, %v2813
    %2815 = vdwg.mxu0
    %2816 = vmatpush.msra.mxu0 0.0
    %2817 = vmatpush.msra.mxu0 0.0
    %2818 = vmatpush.msra.mxu0 0.0
    %2819 = vmatpush.msra.mxu0 0.0
    %2820 = vmatpush.msra.mxu0 0.0
    %2821 = vmatpush.msra.mxu0 0.0
    %2822 = vmatpush.msra.mxu0 0.0
    %2823 = vmatpush.msra.mxu0 0.0
    %2824 = vmatpush.msra.mxu0 0.0
    %2825 = vmatpush.msra.mxu0 0.0
    %2826 = vmatpush.msra.mxu0 0.0
    %2827 = vmatpush.msra.mxu0 0.0
    %v2828 = vand.u32 %v2567, 4294901760
    %2829 = vmatpush.msra.mxu0 %v2828
    %v2830 = vand.u32 %v2566, 4294901760
    %2831 = vmatpush.msra.mxu0 %v2830
    %v2832 = vand.u32 %v2565, 4294901760
    %2833 = vmatpush.msra.mxu0 %v2832
    %v2834 = vand.u32 %v2564, 4294901760
    %2835 = vmatpush.msra.mxu0 %v2834
    %v2836 = vand.u32 %v2574, 4294901760
    %v2837 = vsub.f32 %v2574, %v2836
    %v2838 = vand.u32 %v2837, 4294901760
    %2839 = vmatmul.f32.gmra.mxu0 %v2838
    %v2840 = vpop.f32.mrf.mxu0
    %v2841 = vadd.f32 %v2779, %v2840
    %v2842 = vand.u32 %v2577, 4294901760
    %v2843 = vsub.f32 %v2577, %v2842
    %v2844 = vand.u32 %v2843, 4294901760
    %2845 = vmatmul.f32.gmra.mxu0 %v2844
    %v2846 = vpop.f32.mrf.mxu0
    %v2847 = vadd.f32 %v2784, %v2846
    %v2848 = vand.u32 %v2580, 4294901760
    %v2849 = vsub.f32 %v2580, %v2848
    %v2850 = vand.u32 %v2849, 4294901760
    %2851 = vmatmul.f32.gmra.mxu0 %v2850
    %v2852 = vpop.f32.mrf.mxu0
    %v2853 = vadd.f32 %v2789, %v2852
    %v2854 = vand.u32 %v2583, 4294901760
    %v2855 = vsub.f32 %v2583, %v2854
    %v2856 = vand.u32 %v2855, 4294901760
    %2857 = vmatmul.f32.gmra.mxu0 %v2856
    %v2858 = vpop.f32.mrf.mxu0
    %v2859 = vadd.f32 %v2794, %v2858
    %v2860 = vand.u32 %v2586, 4294901760
    %v2861 = vsub.f32 %v2586, %v2860
    %v2862 = vand.u32 %v2861, 4294901760
    %2863 = vmatmul.f32.gmra.mxu0 %v2862
    %v2864 = vpop.f32.mrf.mxu0
    %v2865 = vadd.f32 %v2799, %v2864
    %v2866 = vand.u32 %v2589, 4294901760
    %v2867 = vsub.f32 %v2589, %v2866
    %v2868 = vand.u32 %v2867, 4294901760
    %2869 = vmatmul.f32.gmra.mxu0 %v2868
    %v2870 = vpop.f32.mrf.mxu0
    %v2871 = vadd.f32 %v2804, %v2870
    %v2872 = vand.u32 %v2592, 4294901760
    %v2873 = vsub.f32 %v2592, %v2872
    %v2874 = vand.u32 %v2873, 4294901760
    %2875 = vmatmul.f32.gmra.mxu0 %v2874
    %v2876 = vpop.f32.mrf.mxu0
    %v2877 = vadd.f32 %v2809, %v2876
    %v2878 = vand.u32 %v2595, 4294901760
    %v2879 = vsub.f32 %v2595, %v2878
    %v2880 = vand.u32 %v2879, 4294901760
    %2881 = vmatmul.f32.gmra.mxu0 %v2880
    %v2882 = vpop.f32.mrf.mxu0
    %v2883 = vadd.f32 %v2814, %v2882
    %2884 = vdwg.mxu0
    %2885 = vmatpush.msra.mxu0 0.0
    %2886 = vmatpush.msra.mxu0 0.0
    %2887 = vmatpush.msra.mxu0 0.0
    %2888 = vmatpush.msra.mxu0 0.0
    %2889 = vmatpush.msra.mxu0 0.0
    %2890 = vmatpush.msra.mxu0 0.0
    %2891 = vmatpush.msra.mxu0 0.0
    %2892 = vmatpush.msra.mxu0 0.0
    %2893 = vmatpush.msra.mxu0 0.0
    %2894 = vmatpush.msra.mxu0 0.0
    %2895 = vmatpush.msra.mxu0 0.0
    %2896 = vmatpush.msra.mxu0 0.0
    %v2897 = vand.u32 %v2567, 4294901760
    %v2898 = vsub.f32 %v2567, %v2897
    %v2899 = vand.u32 %v2898, 4294901760
    %2900 = vmatpush.msra.mxu0 %v2899
    %v2901 = vand.u32 %v2566, 4294901760
    %v2902 = vsub.f32 %v2566, %v2901
    %v2903 = vand.u32 %v2902, 4294901760
    %2904 = vmatpush.msra.mxu0 %v2903
    %v2905 = vand.u32 %v2565, 4294901760
    %v2906 = vsub.f32 %v2565, %v2905
    %v2907 = vand.u32 %v2906, 4294901760
    %2908 = vmatpush.msra.mxu0 %v2907
    %v2909 = vand.u32 %v2564, 4294901760
    %v2910 = vsub.f32 %v2564, %v2909
    %v2911 = vand.u32 %v2910, 4294901760
    %2912 = vmatpush.msra.mxu0 %v2911
    %v2913 = vand.u32 %v2574, 4294901760
    %2914 = vmatmul.f32.gmra.mxu0 %v2913
    %v2915 = vpop.f32.mrf.mxu0
    %v2916 = vadd.f32 %v2841, %v2915
    %v2917 = vand.u32 %v2577, 4294901760
    %2918 = vmatmul.f32.gmra.mxu0 %v2917
    %v2919 = vpop.f32.mrf.mxu0
    %v2920 = vadd.f32 %v2847, %v2919
    %v2921 = vand.u32 %v2580, 4294901760
    %2922 = vmatmul.f32.gmra.mxu0 %v2921
    %v2923 = vpop.f32.mrf.mxu0
    %v2924 = vadd.f32 %v2853, %v2923
    %v2925 = vand.u32 %v2583, 4294901760
    %2926 = vmatmul.f32.gmra.mxu0 %v2925
    %v2927 = vpop.f32.mrf.mxu0
    %v2928 = vadd.f32 %v2859, %v2927
    %v2929 = vand.u32 %v2586, 4294901760
    %2930 = vmatmul.f32.gmra.mxu0 %v2929
    %v2931 = vpop.f32.mrf.mxu0
    %v2932 = vadd.f32 %v2865, %v2931
    %v2933 = vand.u32 %v2589, 4294901760
    %2934 = vmatmul.f32.gmra.mxu0 %v2933
    %v2935 = vpop.f32.mrf.mxu0
    %v2936 = vadd.f32 %v2871, %v2935
    %v2937 = vand.u32 %v2592, 4294901760
    %2938 = vmatmul.f32.gmra.mxu0 %v2937
    %v2939 = vpop.f32.mrf.mxu0
    %v2940 = vadd.f32 %v2877, %v2939
    %v2941 = vand.u32 %v2595, 4294901760
    %2942 = vmatmul.f32.gmra.mxu0 %v2941
    %v2943 = vpop.f32.mrf.mxu0
    %v2944 = vadd.f32 %v2883, %v2943
    %2945 = vdwg.mxu0
    %2946 = vmatpush.msra.mxu0 0.0
    %2947 = vmatpush.msra.mxu0 0.0
    %2948 = vmatpush.msra.mxu0 0.0
    %2949 = vmatpush.msra.mxu0 0.0
    %2950 = vmatpush.msra.mxu0 0.0
    %2951 = vmatpush.msra.mxu0 0.0
    %2952 = vmatpush.msra.mxu0 0.0
    %2953 = vmatpush.msra.mxu0 0.0
    %2954 = vmatpush.msra.mxu0 0.0
    %2955 = vmatpush.msra.mxu0 0.0
    %2956 = vmatpush.msra.mxu0 0.0
    %2957 = vmatpush.msra.mxu0 0.0
    %v2958 = vand.u32 %v2567, 4294901760
    %2959 = vmatpush.msra.mxu0 %v2958
    %v2960 = vand.u32 %v2566, 4294901760
    %2961 = vmatpush.msra.mxu0 %v2960
    %v2962 = vand.u32 %v2565, 4294901760
    %2963 = vmatpush.msra.mxu0 %v2962
    %v2964 = vand.u32 %v2564, 4294901760
    %2965 = vmatpush.msra.mxu0 %v2964
    %v2966 = vand.u32 %v2574, 4294901760
    %2967 = vmatmul.f32.gmra.mxu0 %v2966
    %v2968 = vpop.f32.mrf.mxu0
    %v2969 = vadd.f32 %v2916, %v2968
    %v2970 = vand.u32 %v2577, 4294901760
    %2971 = vmatmul.f32.gmra.mxu0 %v2970
    %v2972 = vpop.f32.mrf.mxu0
    %v2973 = vadd.f32 %v2920, %v2972
    %v2974 = vand.u32 %v2580, 4294901760
    %2975 = vmatmul.f32.gmra.mxu0 %v2974
    %v2976 = vpop.f32.mrf.mxu0
    %v2977 = vadd.f32 %v2924, %v2976
    %v2978 = vand.u32 %v2583, 4294901760
    %2979 = vmatmul.f32.gmra.mxu0 %v2978
    %v2980 = vpop.f32.mrf.mxu0
    %v2981 = vadd.f32 %v2928, %v2980
    %v2982 = vand.u32 %v2586, 4294901760
    %2983 = vmatmul.f32.gmra.mxu0 %v2982
    %v2984 = vpop.f32.mrf.mxu0
    %v2985 = vadd.f32 %v2932, %v2984
    %v2986 = vand.u32 %v2589, 4294901760
    %2987 = vmatmul.f32.gmra.mxu0 %v2986
    %v2988 = vpop.f32.mrf.mxu0
    %v2989 = vadd.f32 %v2936, %v2988
    %v2990 = vand.u32 %v2592, 4294901760
    %2991 = vmatmul.f32.gmra.mxu0 %v2990
    %v2992 = vpop.f32.mrf.mxu0
    %v2993 = vadd.f32 %v2940, %v2992
    %v2994 = vand.u32 %v2595, 4294901760
    %2995 = vmatmul.f32.gmra.mxu0 %v2994
    %v2996 = vpop.f32.mrf.mxu0
    %v2997 = vadd.f32 %v2944, %v2996
    %2998 = vdwg.mxu0
    %s2999 = scalar_lea.vmem %s4, 32
    %v3000 = vld [vmem:[%s2999] sm:$0xff]
    %v3001 = vld [vmem:[%s2999 + $0x8] sm:$0xff]
    %v3002 = vld [vmem:[%s2999 + $0x10] sm:$0xff]
    %v3003 = vld [vmem:[%s2999 + $0x18] sm:$0xff]
    %s3004 = scalar_lea.vmem %s2, 8
    %v3005 = vld [vmem:[%s3004] sm:$0xff]
    %v3007 = vsel %vm595, %v3005, 0
    %3009 = vmatpush.msra.mxu0 0.0
    %3010 = vmatpush.msra.mxu0 0.0
    %3011 = vmatpush.msra.mxu0 0.0
    %3012 = vmatpush.msra.mxu0 0.0
    %3013 = vmatpush.msra.mxu0 0.0
    %3014 = vmatpush.msra.mxu0 0.0
    %3015 = vmatpush.msra.mxu0 0.0
    %3016 = vmatpush.msra.mxu0 0.0
    %3017 = vmatpush.msra.mxu0 0.0
    %3018 = vmatpush.msra.mxu0 0.0
    %3019 = vmatpush.msra.mxu0 0.0
    %3020 = vmatpush.msra.mxu0 0.0
    %v3021 = vand.u32 %v3003, 4294901760
    %3022 = vmatpush.msra.mxu0 %v3021
    %v3023 = vand.u32 %v3002, 4294901760
    %3024 = vmatpush.msra.mxu0 %v3023
    %v3025 = vand.u32 %v3001, 4294901760
    %3026 = vmatpush.msra.mxu0 %v3025
    %v3027 = vand.u32 %v3000, 4294901760
    %3028 = vmatpush.msra.mxu0 %v3027
    %v3029 = vand.u32 %v3007, 4294901760
    %v3030 = vsub.f32 %v3007, %v3029
    %v3031 = vand.u32 %v3030, 4294901760
    %v3032 = vsub.f32 %v3030, %v3031
    %v3033 = vand.u32 %v3032, 4294901760
    %3034 = vmatmul.f32.gmra.mxu0 %v3033
    %v3035 = vpop.f32.mrf.mxu0
    %v3036 = vadd.f32 0.0, %v3035
    %3037 = vdwg.mxu0
    %3038 = vmatpush.msra.mxu0 0.0
    %3039 = vmatpush.msra.mxu0 0.0
    %3040 = vmatpush.msra.mxu0 0.0
    %3041 = vmatpush.msra.mxu0 0.0
    %3042 = vmatpush.msra.mxu0 0.0
    %3043 = vmatpush.msra.mxu0 0.0
    %3044 = vmatpush.msra.mxu0 0.0
    %3045 = vmatpush.msra.mxu0 0.0
    %3046 = vmatpush.msra.mxu0 0.0
    %3047 = vmatpush.msra.mxu0 0.0
    %3048 = vmatpush.msra.mxu0 0.0
    %3049 = vmatpush.msra.mxu0 0.0
    %v3050 = vand.u32 %v3003, 4294901760
    %v3051 = vsub.f32 %v3003, %v3050
    %v3052 = vand.u32 %v3051, 4294901760
    %v3053 = vsub.f32 %v3051, %v3052
    %v3054 = vand.u32 %v3053, 4294901760
    %3055 = vmatpush.msra.mxu0 %v3054
    %v3056 = vand.u32 %v3002, 4294901760
    %v3057 = vsub.f32 %v3002, %v3056
    %v3058 = vand.u32 %v3057, 4294901760
    %v3059 = vsub.f32 %v3057, %v3058
    %v3060 = vand.u32 %v3059, 4294901760
    %3061 = vmatpush.msra.mxu0 %v3060
    %v3062 = vand.u32 %v3001, 4294901760
    %v3063 = vsub.f32 %v3001, %v3062
    %v3064 = vand.u32 %v3063, 4294901760
    %v3065 = vsub.f32 %v3063, %v3064
    %v3066 = vand.u32 %v3065, 4294901760
    %3067 = vmatpush.msra.mxu0 %v3066
    %v3068 = vand.u32 %v3000, 4294901760
    %v3069 = vsub.f32 %v3000, %v3068
    %v3070 = vand.u32 %v3069, 4294901760
    %v3071 = vsub.f32 %v3069, %v3070
    %v3072 = vand.u32 %v3071, 4294901760
    %3073 = vmatpush.msra.mxu0 %v3072
    %v3074 = vand.u32 %v3007, 4294901760
    %3075 = vmatmul.f32.gmra.mxu0 %v3074
    %v3076 = vpop.f32.mrf.mxu0
    %v3077 = vadd.f32 %v3036, %v3076
    %3078 = vdwg.mxu0
    %3079 = vmatpush.msra.mxu0 0.0
    %3080 = vmatpush.msra.mxu0 0.0
    %3081 = vmatpush.msra.mxu0 0.0
    %3082 = vmatpush.msra.mxu0 0.0
    %3083 = vmatpush.msra.mxu0 0.0
    %3084 = vmatpush.msra.mxu0 0.0
    %3085 = vmatpush.msra.mxu0 0.0
    %3086 = vmatpush.msra.mxu0 0.0
    %3087 = vmatpush.msra.mxu0 0.0
    %3088 = vmatpush.msra.mxu0 0.0
    %3089 = vmatpush.msra.mxu0 0.0
    %3090 = vmatpush.msra.mxu0 0.0
    %v3091 = vand.u32 %v3003, 4294901760
    %v3092 = vsub.f32 %v3003, %v3091
    %3093 = vmatpush.msra.mxu0 %v3092
    %v3094 = vand.u32 %v3002, 4294901760
    %v3095 = vsub.f32 %v3002, %v3094
    %3096 = vmatpush.msra.mxu0 %v3095
    %v3097 = vand.u32 %v3001, 4294901760
    %v3098 = vsub.f32 %v3001, %v3097
    %3099 = vmatpush.msra.mxu0 %v3098
    %v3100 = vand.u32 %v3000, 4294901760
    %v3101 = vsub.f32 %v3000, %v3100
    %3102 = vmatpush.msra.mxu0 %v3101
    %v3103 = vand.u32 %v3007, 4294901760
    %v3104 = vsub.f32 %v3007, %v3103
    %3105 = vmatmul.f32.gmra.mxu0 %v3104
    %v3106 = vpop.f32.mrf.mxu0
    %v3107 = vadd.f32 %v3077, %v3106
    %3108 = vdwg.mxu0
    %3109 = vmatpush.msra.mxu0 0.0
    %3110 = vmatpush.msra.mxu0 0.0
    %3111 = vmatpush.msra.mxu0 0.0
    %3112 = vmatpush.msra.mxu0 0.0
    %3113 = vmatpush.msra.mxu0 0.0
    %3114 = vmatpush.msra.mxu0 0.0
    %3115 = vmatpush.msra.mxu0 0.0
    %3116 = vmatpush.msra.mxu0 0.0
    %3117 = vmatpush.msra.mxu0 0.0
    %3118 = vmatpush.msra.mxu0 0.0
    %3119 = vmatpush.msra.mxu0 0.0
    %3120 = vmatpush.msra.mxu0 0.0
    %v3121 = vand.u32 %v3003, 4294901760
    %3122 = vmatpush.msra.mxu0 %v3121
    %v3123 = vand.u32 %v3002, 4294901760
    %3124 = vmatpush.msra.mxu0 %v3123
    %v3125 = vand.u32 %v3001, 4294901760
    %3126 = vmatpush.msra.mxu0 %v3125
    %v3127 = vand.u32 %v3000, 4294901760
    %3128 = vmatpush.msra.mxu0 %v3127
    %v3129 = vand.u32 %v3007, 4294901760
    %v3130 = vsub.f32 %v3007, %v3129
    %v3131 = vand.u32 %v3130, 4294901760
    %3132 = vmatmul.f32.gmra.mxu0 %v3131
    %v3133 = vpop.f32.mrf.mxu0
    %v3134 = vadd.f32 %v3107, %v3133
    %3135 = vdwg.mxu0
    %3136 = vmatpush.msra.mxu0 0.0
    %3137 = vmatpush.msra.mxu0 0.0
    %3138 = vmatpush.msra.mxu0 0.0
    %3139 = vmatpush.msra.mxu0 0.0
    %3140 = vmatpush.msra.mxu0 0.0
    %3141 = vmatpush.msra.mxu0 0.0
    %3142 = vmatpush.msra.mxu0 0.0
    %3143 = vmatpush.msra.mxu0 0.0
    %3144 = vmatpush.msra.mxu0 0.0
    %3145 = vmatpush.msra.mxu0 0.0
    %3146 = vmatpush.msra.mxu0 0.0
    %3147 = vmatpush.msra.mxu0 0.0
    %v3148 = vand.u32 %v3003, 4294901760
    %v3149 = vsub.f32 %v3003, %v3148
    %v3150 = vand.u32 %v3149, 4294901760
    %3151 = vmatpush.msra.mxu0 %v3150
    %v3152 = vand.u32 %v3002, 4294901760
    %v3153 = vsub.f32 %v3002, %v3152
    %v3154 = vand.u32 %v3153, 4294901760
    %3155 = vmatpush.msra.mxu0 %v3154
    %v3156 = vand.u32 %v3001, 4294901760
    %v3157 = vsub.f32 %v3001, %v3156
    %v3158 = vand.u32 %v3157, 4294901760
    %3159 = vmatpush.msra.mxu0 %v3158
    %v3160 = vand.u32 %v3000, 4294901760
    %v3161 = vsub.f32 %v3000, %v3160
    %v3162 = vand.u32 %v3161, 4294901760
    %3163 = vmatpush.msra.mxu0 %v3162
    %v3164 = vand.u32 %v3007, 4294901760
    %3165 = vmatmul.f32.gmra.mxu0 %v3164
    %v3166 = vpop.f32.mrf.mxu0
    %v3167 = vadd.f32 %v3134, %v3166
    %3168 = vdwg.mxu0
    %3169 = vmatpush.msra.mxu0 0.0
    %3170 = vmatpush.msra.mxu0 0.0
    %3171 = vmatpush.msra.mxu0 0.0
    %3172 = vmatpush.msra.mxu0 0.0
    %3173 = vmatpush.msra.mxu0 0.0
    %3174 = vmatpush.msra.mxu0 0.0
    %3175 = vmatpush.msra.mxu0 0.0
    %3176 = vmatpush.msra.mxu0 0.0
    %3177 = vmatpush.msra.mxu0 0.0
    %3178 = vmatpush.msra.mxu0 0.0
    %3179 = vmatpush.msra.mxu0 0.0
    %3180 = vmatpush.msra.mxu0 0.0
    %v3181 = vand.u32 %v3003, 4294901760
    %3182 = vmatpush.msra.mxu0 %v3181
    %v3183 = vand.u32 %v3002, 4294901760
    %3184 = vmatpush.msra.mxu0 %v3183
    %v3185 = vand.u32 %v3001, 4294901760
    %3186 = vmatpush.msra.mxu0 %v3185
    %v3187 = vand.u32 %v3000, 4294901760
    %3188 = vmatpush.msra.mxu0 %v3187
    %v3189 = vand.u32 %v3007, 4294901760
    %3190 = vmatmul.f32.gmra.mxu0 %v3189
    %v3191 = vpop.f32.mrf.mxu0
    %v3192 = vadd.f32 %v3167, %v3191
    %3193 = vdwg.mxu0
    %v3194 = vadd.f32 %v2969, %v3192
    %v3195 = vtanh.pop %v3194
    %v3197 = vsel %vm595, %v3195, 0
    %3199 = vmatpush.msra.mxu0 0.0
    %3200 = vmatpush.msra.mxu0 0.0
    %3201 = vmatpush.msra.mxu0 0.0
    %3202 = vmatpush.msra.mxu0 0.0
    %3203 = vmatpush.msra.mxu0 0.0
    %3204 = vmatpush.msra.mxu0 0.0
    %3205 = vmatpush.msra.mxu0 0.0
    %3206 = vmatpush.msra.mxu0 0.0
    %3207 = vmatpush.msra.mxu0 0.0
    %3208 = vmatpush.msra.mxu0 0.0
    %3209 = vmatpush.msra.mxu0 0.0
    %3210 = vmatpush.msra.mxu0 0.0
    %v3211 = vand.u32 %v3003, 4294901760
    %3212 = vmatpush.msra.mxu0 %v3211
    %v3213 = vand.u32 %v3002, 4294901760
    %3214 = vmatpush.msra.mxu0 %v3213
    %v3215 = vand.u32 %v3001, 4294901760
    %3216 = vmatpush.msra.mxu0 %v3215
    %v3217 = vand.u32 %v3000, 4294901760
    %3218 = vmatpush.msra.mxu0 %v3217
    %v3219 = vand.u32 %v3197, 4294901760
    %v3220 = vsub.f32 %v3197, %v3219
    %v3221 = vand.u32 %v3220, 4294901760
    %v3222 = vsub.f32 %v3220, %v3221
    %v3223 = vand.u32 %v3222, 4294901760
    %3224 = vmatmul.f32.gmra.mxu0 %v3223
    %v3225 = vpop.f32.mrf.mxu0
    %v3226 = vadd.f32 0.0, %v3225
    %3227 = vdwg.mxu0
    %3228 = vmatpush.msra.mxu0 0.0
    %3229 = vmatpush.msra.mxu0 0.0
    %3230 = vmatpush.msra.mxu0 0.0
    %3231 = vmatpush.msra.mxu0 0.0
    %3232 = vmatpush.msra.mxu0 0.0
    %3233 = vmatpush.msra.mxu0 0.0
    %3234 = vmatpush.msra.mxu0 0.0
    %3235 = vmatpush.msra.mxu0 0.0
    %3236 = vmatpush.msra.mxu0 0.0
    %3237 = vmatpush.msra.mxu0 0.0
    %3238 = vmatpush.msra.mxu0 0.0
    %3239 = vmatpush.msra.mxu0 0.0
    %v3240 = vand.u32 %v3003, 4294901760
    %v3241 = vsub.f32 %v3003, %v3240
    %v3242 = vand.u32 %v3241, 4294901760
    %v3243 = vsub.f32 %v3241, %v3242
    %v3244 = vand.u32 %v3243, 4294901760
    %3245 = vmatpush.msra.mxu0 %v3244
    %v3246 = vand.u32 %v3002, 4294901760
    %v3247 = vsub.f32 %v3002, %v3246
    %v3248 = vand.u32 %v3247, 4294901760
    %v3249 = vsub.f32 %v3247, %v3248
    %v3250 = vand.u32 %v3249, 4294901760
    %3251 = vmatpush.msra.mxu0 %v3250
    %v3252 = vand.u32 %v3001, 4294901760
    %v3253 = vsub.f32 %v3001, %v3252
    %v3254 = vand.u32 %v3253, 4294901760
    %v3255 = vsub.f32 %v3253, %v3254
    %v3256 = vand.u32 %v3255, 4294901760
    %3257 = vmatpush.msra.mxu0 %v3256
    %v3258 = vand.u32 %v3000, 4294901760
    %v3259 = vsub.f32 %v3000, %v3258
    %v3260 = vand.u32 %v3259, 4294901760
    %v3261 = vsub.f32 %v3259, %v3260
    %v3262 = vand.u32 %v3261, 4294901760
    %3263 = vmatpush.msra.mxu0 %v3262
    %v3264 = vand.u32 %v3197, 4294901760
    %3265 = vmatmul.f32.gmra.mxu0 %v3264
    %v3266 = vpop.f32.mrf.mxu0
    %v3267 = vadd.f32 %v3226, %v3266
    %3268 = vdwg.mxu0
    %3269 = vmatpush.msra.mxu0 0.0
    %3270 = vmatpush.msra.mxu0 0.0
    %3271 = vmatpush.msra.mxu0 0.0
    %3272 = vmatpush.msra.mxu0 0.0
    %3273 = vmatpush.msra.mxu0 0.0
    %3274 = vmatpush.msra.mxu0 0.0
    %3275 = vmatpush.msra.mxu0 0.0
    %3276 = vmatpush.msra.mxu0 0.0
    %3277 = vmatpush.msra.mxu0 0.0
    %3278 = vmatpush.msra.mxu0 0.0
    %3279 = vmatpush.msra.mxu0 0.0
    %3280 = vmatpush.msra.mxu0 0.0
    %v3281 = vand.u32 %v3003, 4294901760
    %v3282 = vsub.f32 %v3003, %v3281
    %3283 = vmatpush.msra.mxu0 %v3282
    %v3284 = vand.u32 %v3002, 4294901760
    %v3285 = vsub.f32 %v3002, %v3284
    %3286 = vmatpush.msra.mxu0 %v3285
    %v3287 = vand.u32 %v3001, 4294901760
    %v3288 = vsub.f32 %v3001, %v3287
    %3289 = vmatpush.msra.mxu0 %v3288
    %v3290 = vand.u32 %v3000, 4294901760
    %v3291 = vsub.f32 %v3000, %v3290
    %3292 = vmatpush.msra.mxu0 %v3291
    %v3293 = vand.u32 %v3197, 4294901760
    %v3294 = vsub.f32 %v3197, %v3293
    %3295 = vmatmul.f32.gmra.mxu0 %v3294
    %v3296 = vpop.f32.mrf.mxu0
    %v3297 = vadd.f32 %v3267, %v3296
    %3298 = vdwg.mxu0
    %3299 = vmatpush.msra.mxu0 0.0
    %3300 = vmatpush.msra.mxu0 0.0
    %3301 = vmatpush.msra.mxu0 0.0
    %3302 = vmatpush.msra.mxu0 0.0
    %3303 = vmatpush.msra.mxu0 0.0
    %3304 = vmatpush.msra.mxu0 0.0
    %3305 = vmatpush.msra.mxu0 0.0
    %3306 = vmatpush.msra.mxu0 0.0
    %3307 = vmatpush.msra.mxu0 0.0
    %3308 = vmatpush.msra.mxu0 0.0
    %3309 = vmatpush.msra.mxu0 0.0
    %3310 = vmatpush.msra.mxu0 0.0
    %v3311 = vand.u32 %v3003, 4294901760
    %3312 = vmatpush.msra.mxu0 %v3311
    %v3313 = vand.u32 %v3002, 4294901760
    %3314 = vmatpush.msra.mxu0 %v3313
    %v3315 = vand.u32 %v3001, 4294901760
    %3316 = vmatpush.msra.mxu0 %v3315
    %v3317 = vand.u32 %v3000, 4294901760
    %3318 = vmatpush.msra.mxu0 %v3317
    %v3319 = vand.u32 %v3197, 4294901760
    %v3320 = vsub.f32 %v3197, %v3319
    %v3321 = vand.u32 %v3320, 4294901760
    %3322 = vmatmul.f32.gmra.mxu0 %v3321
    %v3323 = vpop.f32.mrf.mxu0
    %v3324 = vadd.f32 %v3297, %v3323
    %3325 = vdwg.mxu0
    %3326 = vmatpush.msra.mxu0 0.0
    %3327 = vmatpush.msra.mxu0 0.0
    %3328 = vmatpush.msra.mxu0 0.0
    %3329 = vmatpush.msra.mxu0 0.0
    %3330 = vmatpush.msra.mxu0 0.0
    %3331 = vmatpush.msra.mxu0 0.0
    %3332 = vmatpush.msra.mxu0 0.0
    %3333 = vmatpush.msra.mxu0 0.0
    %3334 = vmatpush.msra.mxu0 0.0
    %3335 = vmatpush.msra.mxu0 0.0
    %3336 = vmatpush.msra.mxu0 0.0
    %3337 = vmatpush.msra.mxu0 0.0
    %v3338 = vand.u32 %v3003, 4294901760
    %v3339 = vsub.f32 %v3003, %v3338
    %v3340 = vand.u32 %v3339, 4294901760
    %3341 = vmatpush.msra.mxu0 %v3340
    %v3342 = vand.u32 %v3002, 4294901760
    %v3343 = vsub.f32 %v3002, %v3342
    %v3344 = vand.u32 %v3343, 4294901760
    %3345 = vmatpush.msra.mxu0 %v3344
    %v3346 = vand.u32 %v3001, 4294901760
    %v3347 = vsub.f32 %v3001, %v3346
    %v3348 = vand.u32 %v3347, 4294901760
    %3349 = vmatpush.msra.mxu0 %v3348
    %v3350 = vand.u32 %v3000, 4294901760
    %v3351 = vsub.f32 %v3000, %v3350
    %v3352 = vand.u32 %v3351, 4294901760
    %3353 = vmatpush.msra.mxu0 %v3352
    %v3354 = vand.u32 %v3197, 4294901760
    %3355 = vmatmul.f32.gmra.mxu0 %v3354
    %v3356 = vpop.f32.mrf.mxu0
    %v3357 = vadd.f32 %v3324, %v3356
    %3358 = vdwg.mxu0
    %3359 = vmatpush.msra.mxu0 0.0
    %3360 = vmatpush.msra.mxu0 0.0
    %3361 = vmatpush.msra.mxu0 0.0
    %3362 = vmatpush.msra.mxu0 0.0
    %3363 = vmatpush.msra.mxu0 0.0
    %3364 = vmatpush.msra.mxu0 0.0
    %3365 = vmatpush.msra.mxu0 0.0
    %3366 = vmatpush.msra.mxu0 0.0
    %3367 = vmatpush.msra.mxu0 0.0
    %3368 = vmatpush.msra.mxu0 0.0
    %3369 = vmatpush.msra.mxu0 0.0
    %3370 = vmatpush.msra.mxu0 0.0
    %v3371 = vand.u32 %v3003, 4294901760
    %3372 = vmatpush.msra.mxu0 %v3371
    %v3373 = vand.u32 %v3002, 4294901760
    %3374 = vmatpush.msra.mxu0 %v3373
    %v3375 = vand.u32 %v3001, 4294901760
    %3376 = vmatpush.msra.mxu0 %v3375
    %v3377 = vand.u32 %v3000, 4294901760
    %3378 = vmatpush.msra.mxu0 %v3377
    %v3379 = vand.u32 %v3197, 4294901760
    %3380 = vmatmul.f32.gmra.mxu0 %v3379
    %v3381 = vpop.f32.mrf.mxu0
    %v3382 = vadd.f32 %v3357, %v3381
    %3383 = vdwg.mxu0
    %v3384 = vadd.f32 %v2973, %v3382
    %v3385 = vtanh.pop %v3384
    %v3387 = vsel %vm595, %v3385, 0
    %3389 = vmatpush.msra.mxu0 0.0
    %3390 = vmatpush.msra.mxu0 0.0
    %3391 = vmatpush.msra.mxu0 0.0
    %3392 = vmatpush.msra.mxu0 0.0
    %3393 = vmatpush.msra.mxu0 0.0
    %3394 = vmatpush.msra.mxu0 0.0
    %3395 = vmatpush.msra.mxu0 0.0
    %3396 = vmatpush.msra.mxu0 0.0
    %3397 = vmatpush.msra.mxu0 0.0
    %3398 = vmatpush.msra.mxu0 0.0
    %3399 = vmatpush.msra.mxu0 0.0
    %3400 = vmatpush.msra.mxu0 0.0
    %v3401 = vand.u32 %v3003, 4294901760
    %3402 = vmatpush.msra.mxu0 %v3401
    %v3403 = vand.u32 %v3002, 4294901760
    %3404 = vmatpush.msra.mxu0 %v3403
    %v3405 = vand.u32 %v3001, 4294901760
    %3406 = vmatpush.msra.mxu0 %v3405
    %v3407 = vand.u32 %v3000, 4294901760
    %3408 = vmatpush.msra.mxu0 %v3407
    %v3409 = vand.u32 %v3387, 4294901760
    %v3410 = vsub.f32 %v3387, %v3409
    %v3411 = vand.u32 %v3410, 4294901760
    %v3412 = vsub.f32 %v3410, %v3411
    %v3413 = vand.u32 %v3412, 4294901760
    %3414 = vmatmul.f32.gmra.mxu0 %v3413
    %v3415 = vpop.f32.mrf.mxu0
    %v3416 = vadd.f32 0.0, %v3415
    %3417 = vdwg.mxu0
    %3418 = vmatpush.msra.mxu0 0.0
    %3419 = vmatpush.msra.mxu0 0.0
    %3420 = vmatpush.msra.mxu0 0.0
    %3421 = vmatpush.msra.mxu0 0.0
    %3422 = vmatpush.msra.mxu0 0.0
    %3423 = vmatpush.msra.mxu0 0.0
    %3424 = vmatpush.msra.mxu0 0.0
    %3425 = vmatpush.msra.mxu0 0.0
    %3426 = vmatpush.msra.mxu0 0.0
    %3427 = vmatpush.msra.mxu0 0.0
    %3428 = vmatpush.msra.mxu0 0.0
    %3429 = vmatpush.msra.mxu0 0.0
    %v3430 = vand.u32 %v3003, 4294901760
    %v3431 = vsub.f32 %v3003, %v3430
    %v3432 = vand.u32 %v3431, 4294901760
    %v3433 = vsub.f32 %v3431, %v3432
    %v3434 = vand.u32 %v3433, 4294901760
    %3435 = vmatpush.msra.mxu0 %v3434
    %v3436 = vand.u32 %v3002, 4294901760
    %v3437 = vsub.f32 %v3002, %v3436
    %v3438 = vand.u32 %v3437, 4294901760
    %v3439 = vsub.f32 %v3437, %v3438
    %v3440 = vand.u32 %v3439, 4294901760
    %3441 = vmatpush.msra.mxu0 %v3440
    %v3442 = vand.u32 %v3001, 4294901760
    %v3443 = vsub.f32 %v3001, %v3442
    %v3444 = vand.u32 %v3443, 4294901760
    %v3445 = vsub.f32 %v3443, %v3444
    %v3446 = vand.u32 %v3445, 4294901760
    %3447 = vmatpush.msra.mxu0 %v3446
    %v3448 = vand.u32 %v3000, 4294901760
    %v3449 = vsub.f32 %v3000, %v3448
    %v3450 = vand.u32 %v3449, 4294901760
    %v3451 = vsub.f32 %v3449, %v3450
    %v3452 = vand.u32 %v3451, 4294901760
    %3453 = vmatpush.msra.mxu0 %v3452
    %v3454 = vand.u32 %v3387, 4294901760
    %3455 = vmatmul.f32.gmra.mxu0 %v3454
    %v3456 = vpop.f32.mrf.mxu0
    %v3457 = vadd.f32 %v3416, %v3456
    %3458 = vdwg.mxu0
    %3459 = vmatpush.msra.mxu0 0.0
    %3460 = vmatpush.msra.mxu0 0.0
    %3461 = vmatpush.msra.mxu0 0.0
    %3462 = vmatpush.msra.mxu0 0.0
    %3463 = vmatpush.msra.mxu0 0.0
    %3464 = vmatpush.msra.mxu0 0.0
    %3465 = vmatpush.msra.mxu0 0.0
    %3466 = vmatpush.msra.mxu0 0.0
    %3467 = vmatpush.msra.mxu0 0.0
    %3468 = vmatpush.msra.mxu0 0.0
    %3469 = vmatpush.msra.mxu0 0.0
    %3470 = vmatpush.msra.mxu0 0.0
    %v3471 = vand.u32 %v3003, 4294901760
    %v3472 = vsub.f32 %v3003, %v3471
    %3473 = vmatpush.msra.mxu0 %v3472
    %v3474 = vand.u32 %v3002, 4294901760
    %v3475 = vsub.f32 %v3002, %v3474
    %3476 = vmatpush.msra.mxu0 %v3475
    %v3477 = vand.u32 %v3001, 4294901760
    %v3478 = vsub.f32 %v3001, %v3477
    %3479 = vmatpush.msra.mxu0 %v3478
    %v3480 = vand.u32 %v3000, 4294901760
    %v3481 = vsub.f32 %v3000, %v3480
    %3482 = vmatpush.msra.mxu0 %v3481
    %v3483 = vand.u32 %v3387, 4294901760
    %v3484 = vsub.f32 %v3387, %v3483
    %3485 = vmatmul.f32.gmra.mxu0 %v3484
    %v3486 = vpop.f32.mrf.mxu0
    %v3487 = vadd.f32 %v3457, %v3486
    %3488 = vdwg.mxu0
    %3489 = vmatpush.msra.mxu0 0.0
    %3490 = vmatpush.msra.mxu0 0.0
    %3491 = vmatpush.msra.mxu0 0.0
    %3492 = vmatpush.msra.mxu0 0.0
    %3493 = vmatpush.msra.mxu0 0.0
    %3494 = vmatpush.msra.mxu0 0.0
    %3495 = vmatpush.msra.mxu0 0.0
    %3496 = vmatpush.msra.mxu0 0.0
    %3497 = vmatpush.msra.mxu0 0.0
    %3498 = vmatpush.msra.mxu0 0.0
    %3499 = vmatpush.msra.mxu0 0.0
    %3500 = vmatpush.msra.mxu0 0.0
    %v3501 = vand.u32 %v3003, 4294901760
    %3502 = vmatpush.msra.mxu0 %v3501
    %v3503 = vand.u32 %v3002, 4294901760
    %3504 = vmatpush.msra.mxu0 %v3503
    %v3505 = vand.u32 %v3001, 4294901760
    %3506 = vmatpush.msra.mxu0 %v3505
    %v3507 = vand.u32 %v3000, 4294901760
    %3508 = vmatpush.msra.mxu0 %v3507
    %v3509 = vand.u32 %v3387, 4294901760
    %v3510 = vsub.f32 %v3387, %v3509
    %v3511 = vand.u32 %v3510, 4294901760
    %3512 = vmatmul.f32.gmra.mxu0 %v3511
    %v3513 = vpop.f32.mrf.mxu0
    %v3514 = vadd.f32 %v3487, %v3513
    %3515 = vdwg.mxu0
    %3516 = vmatpush.msra.mxu0 0.0
    %3517 = vmatpush.msra.mxu0 0.0
    %3518 = vmatpush.msra.mxu0 0.0
    %3519 = vmatpush.msra.mxu0 0.0
    %3520 = vmatpush.msra.mxu0 0.0
    %3521 = vmatpush.msra.mxu0 0.0
    %3522 = vmatpush.msra.mxu0 0.0
    %3523 = vmatpush.msra.mxu0 0.0
    %3524 = vmatpush.msra.mxu0 0.0
    %3525 = vmatpush.msra.mxu0 0.0
    %3526 = vmatpush.msra.mxu0 0.0
    %3527 = vmatpush.msra.mxu0 0.0
    %v3528 = vand.u32 %v3003, 4294901760
    %v3529 = vsub.f32 %v3003, %v3528
    %v3530 = vand.u32 %v3529, 4294901760
    %3531 = vmatpush.msra.mxu0 %v3530
    %v3532 = vand.u32 %v3002, 4294901760
    %v3533 = vsub.f32 %v3002, %v3532
    %v3534 = vand.u32 %v3533, 4294901760
    %3535 = vmatpush.msra.mxu0 %v3534
    %v3536 = vand.u32 %v3001, 4294901760
    %v3537 = vsub.f32 %v3001, %v3536
    %v3538 = vand.u32 %v3537, 4294901760
    %3539 = vmatpush.msra.mxu0 %v3538
    %v3540 = vand.u32 %v3000, 4294901760
    %v3541 = vsub.f32 %v3000, %v3540
    %v3542 = vand.u32 %v3541, 4294901760
    %3543 = vmatpush.msra.mxu0 %v3542
    %v3544 = vand.u32 %v3387, 4294901760
    %3545 = vmatmul.f32.gmra.mxu0 %v3544
    %v3546 = vpop.f32.mrf.mxu0
    %v3547 = vadd.f32 %v3514, %v3546
    %3548 = vdwg.mxu0
    %3549 = vmatpush.msra.mxu0 0.0
    %3550 = vmatpush.msra.mxu0 0.0
    %3551 = vmatpush.msra.mxu0 0.0
    %3552 = vmatpush.msra.mxu0 0.0
    %3553 = vmatpush.msra.mxu0 0.0
    %3554 = vmatpush.msra.mxu0 0.0
    %3555 = vmatpush.msra.mxu0 0.0
    %3556 = vmatpush.msra.mxu0 0.0
    %3557 = vmatpush.msra.mxu0 0.0
    %3558 = vmatpush.msra.mxu0 0.0
    %3559 = vmatpush.msra.mxu0 0.0
    %3560 = vmatpush.msra.mxu0 0.0
    %v3561 = vand.u32 %v3003, 4294901760
    %3562 = vmatpush.msra.mxu0 %v3561
    %v3563 = vand.u32 %v3002, 4294901760
    %3564 = vmatpush.msra.mxu0 %v3563
    %v3565 = vand.u32 %v3001, 4294901760
    %3566 = vmatpush.msra.mxu0 %v3565
    %v3567 = vand.u32 %v3000, 4294901760
    %3568 = vmatpush.msra.mxu0 %v3567
    %v3569 = vand.u32 %v3387, 4294901760
    %3570 = vmatmul.f32.gmra.mxu0 %v3569
    %v3571 = vpop.f32.mrf.mxu0
    %v3572 = vadd.f32 %v3547, %v3571
    %3573 = vdwg.mxu0
    %v3574 = vadd.f32 %v2977, %v3572
    %v3575 = vtanh.pop %v3574
    %v3577 = vsel %vm595, %v3575, 0
    %3579 = vmatpush.msra.mxu0 0.0
    %3580 = vmatpush.msra.mxu0 0.0
    %3581 = vmatpush.msra.mxu0 0.0
    %3582 = vmatpush.msra.mxu0 0.0
    %3583 = vmatpush.msra.mxu0 0.0
    %3584 = vmatpush.msra.mxu0 0.0
    %3585 = vmatpush.msra.mxu0 0.0
    %3586 = vmatpush.msra.mxu0 0.0
    %3587 = vmatpush.msra.mxu0 0.0
    %3588 = vmatpush.msra.mxu0 0.0
    %3589 = vmatpush.msra.mxu0 0.0
    %3590 = vmatpush.msra.mxu0 0.0
    %v3591 = vand.u32 %v3003, 4294901760
    %3592 = vmatpush.msra.mxu0 %v3591
    %v3593 = vand.u32 %v3002, 4294901760
    %3594 = vmatpush.msra.mxu0 %v3593
    %v3595 = vand.u32 %v3001, 4294901760
    %3596 = vmatpush.msra.mxu0 %v3595
    %v3597 = vand.u32 %v3000, 4294901760
    %3598 = vmatpush.msra.mxu0 %v3597
    %v3599 = vand.u32 %v3577, 4294901760
    %v3600 = vsub.f32 %v3577, %v3599
    %v3601 = vand.u32 %v3600, 4294901760
    %v3602 = vsub.f32 %v3600, %v3601
    %v3603 = vand.u32 %v3602, 4294901760
    %3604 = vmatmul.f32.gmra.mxu0 %v3603
    %v3605 = vpop.f32.mrf.mxu0
    %v3606 = vadd.f32 0.0, %v3605
    %3607 = vdwg.mxu0
    %3608 = vmatpush.msra.mxu0 0.0
    %3609 = vmatpush.msra.mxu0 0.0
    %3610 = vmatpush.msra.mxu0 0.0
    %3611 = vmatpush.msra.mxu0 0.0
    %3612 = vmatpush.msra.mxu0 0.0
    %3613 = vmatpush.msra.mxu0 0.0
    %3614 = vmatpush.msra.mxu0 0.0
    %3615 = vmatpush.msra.mxu0 0.0
    %3616 = vmatpush.msra.mxu0 0.0
    %3617 = vmatpush.msra.mxu0 0.0
    %3618 = vmatpush.msra.mxu0 0.0
    %3619 = vmatpush.msra.mxu0 0.0
    %v3620 = vand.u32 %v3003, 4294901760
    %v3621 = vsub.f32 %v3003, %v3620
    %v3622 = vand.u32 %v3621, 4294901760
    %v3623 = vsub.f32 %v3621, %v3622
    %v3624 = vand.u32 %v3623, 4294901760
    %3625 = vmatpush.msra.mxu0 %v3624
    %v3626 = vand.u32 %v3002, 4294901760
    %v3627 = vsub.f32 %v3002, %v3626
    %v3628 = vand.u32 %v3627, 4294901760
    %v3629 = vsub.f32 %v3627, %v3628
    %v3630 = vand.u32 %v3629, 4294901760
    %3631 = vmatpush.msra.mxu0 %v3630
    %v3632 = vand.u32 %v3001, 4294901760
    %v3633 = vsub.f32 %v3001, %v3632
    %v3634 = vand.u32 %v3633, 4294901760
    %v3635 = vsub.f32 %v3633, %v3634
    %v3636 = vand.u32 %v3635, 4294901760
    %3637 = vmatpush.msra.mxu0 %v3636
    %v3638 = vand.u32 %v3000, 4294901760
    %v3639 = vsub.f32 %v3000, %v3638
    %v3640 = vand.u32 %v3639, 4294901760
    %v3641 = vsub.f32 %v3639, %v3640
    %v3642 = vand.u32 %v3641, 4294901760
    %3643 = vmatpush.msra.mxu0 %v3642
    %v3644 = vand.u32 %v3577, 4294901760
    %3645 = vmatmul.f32.gmra.mxu0 %v3644
    %v3646 = vpop.f32.mrf.mxu0
    %v3647 = vadd.f32 %v3606, %v3646
    %3648 = vdwg.mxu0
    %3649 = vmatpush.msra.mxu0 0.0
    %3650 = vmatpush.msra.mxu0 0.0
    %3651 = vmatpush.msra.mxu0 0.0
    %3652 = vmatpush.msra.mxu0 0.0
    %3653 = vmatpush.msra.mxu0 0.0
    %3654 = vmatpush.msra.mxu0 0.0
    %3655 = vmatpush.msra.mxu0 0.0
    %3656 = vmatpush.msra.mxu0 0.0
    %3657 = vmatpush.msra.mxu0 0.0
    %3658 = vmatpush.msra.mxu0 0.0
    %3659 = vmatpush.msra.mxu0 0.0
    %3660 = vmatpush.msra.mxu0 0.0
    %v3661 = vand.u32 %v3003, 4294901760
    %v3662 = vsub.f32 %v3003, %v3661
    %3663 = vmatpush.msra.mxu0 %v3662
    %v3664 = vand.u32 %v3002, 4294901760
    %v3665 = vsub.f32 %v3002, %v3664
    %3666 = vmatpush.msra.mxu0 %v3665
    %v3667 = vand.u32 %v3001, 4294901760
    %v3668 = vsub.f32 %v3001, %v3667
    %3669 = vmatpush.msra.mxu0 %v3668
    %v3670 = vand.u32 %v3000, 4294901760
    %v3671 = vsub.f32 %v3000, %v3670
    %3672 = vmatpush.msra.mxu0 %v3671
    %v3673 = vand.u32 %v3577, 4294901760
    %v3674 = vsub.f32 %v3577, %v3673
    %3675 = vmatmul.f32.gmra.mxu0 %v3674
    %v3676 = vpop.f32.mrf.mxu0
    %v3677 = vadd.f32 %v3647, %v3676
    %3678 = vdwg.mxu0
    %3679 = vmatpush.msra.mxu0 0.0
    %3680 = vmatpush.msra.mxu0 0.0
    %3681 = vmatpush.msra.mxu0 0.0
    %3682 = vmatpush.msra.mxu0 0.0
    %3683 = vmatpush.msra.mxu0 0.0
    %3684 = vmatpush.msra.mxu0 0.0
    %3685 = vmatpush.msra.mxu0 0.0
    %3686 = vmatpush.msra.mxu0 0.0
    %3687 = vmatpush.msra.mxu0 0.0
    %3688 = vmatpush.msra.mxu0 0.0
    %3689 = vmatpush.msra.mxu0 0.0
    %3690 = vmatpush.msra.mxu0 0.0
    %v3691 = vand.u32 %v3003, 4294901760
    %3692 = vmatpush.msra.mxu0 %v3691
    %v3693 = vand.u32 %v3002, 4294901760
    %3694 = vmatpush.msra.mxu0 %v3693
    %v3695 = vand.u32 %v3001, 4294901760
    %3696 = vmatpush.msra.mxu0 %v3695
    %v3697 = vand.u32 %v3000, 4294901760
    %3698 = vmatpush.msra.mxu0 %v3697
    %v3699 = vand.u32 %v3577, 4294901760
    %v3700 = vsub.f32 %v3577, %v3699
    %v3701 = vand.u32 %v3700, 4294901760
    %3702 = vmatmul.f32.gmra.mxu0 %v3701
    %v3703 = vpop.f32.mrf.mxu0
    %v3704 = vadd.f32 %v3677, %v3703
    %3705 = vdwg.mxu0
    %3706 = vmatpush.msra.mxu0 0.0
    %3707 = vmatpush.msra.mxu0 0.0
    %3708 = vmatpush.msra.mxu0 0.0
    %3709 = vmatpush.msra.mxu0 0.0
    %3710 = vmatpush.msra.mxu0 0.0
    %3711 = vmatpush.msra.mxu0 0.0
    %3712 = vmatpush.msra.mxu0 0.0
    %3713 = vmatpush.msra.mxu0 0.0
    %3714 = vmatpush.msra.mxu0 0.0
    %3715 = vmatpush.msra.mxu0 0.0
    %3716 = vmatpush.msra.mxu0 0.0
    %3717 = vmatpush.msra.mxu0 0.0
    %v3718 = vand.u32 %v3003, 4294901760
    %v3719 = vsub.f32 %v3003, %v3718
    %v3720 = vand.u32 %v3719, 4294901760
    %3721 = vmatpush.msra.mxu0 %v3720
    %v3722 = vand.u32 %v3002, 4294901760
    %v3723 = vsub.f32 %v3002, %v3722
    %v3724 = vand.u32 %v3723, 4294901760
    %3725 = vmatpush.msra.mxu0 %v3724
    %v3726 = vand.u32 %v3001, 4294901760
    %v3727 = vsub.f32 %v3001, %v3726
    %v3728 = vand.u32 %v3727, 4294901760
    %3729 = vmatpush.msra.mxu0 %v3728
    %v3730 = vand.u32 %v3000, 4294901760
    %v3731 = vsub.f32 %v3000, %v3730
    %v3732 = vand.u32 %v3731, 4294901760
    %3733 = vmatpush.msra.mxu0 %v3732
    %v3734 = vand.u32 %v3577, 4294901760
    %3735 = vmatmul.f32.gmra.mxu0 %v3734
    %v3736 = vpop.f32.mrf.mxu0
    %v3737 = vadd.f32 %v3704, %v3736
    %3738 = vdwg.mxu0
    %3739 = vmatpush.msra.mxu0 0.0
    %3740 = vmatpush.msra.mxu0 0.0
    %3741 = vmatpush.msra.mxu0 0.0
    %3742 = vmatpush.msra.mxu0 0.0
    %3743 = vmatpush.msra.mxu0 0.0
    %3744 = vmatpush.msra.mxu0 0.0
    %3745 = vmatpush.msra.mxu0 0.0
    %3746 = vmatpush.msra.mxu0 0.0
    %3747 = vmatpush.msra.mxu0 0.0
    %3748 = vmatpush.msra.mxu0 0.0
    %3749 = vmatpush.msra.mxu0 0.0
    %3750 = vmatpush.msra.mxu0 0.0
    %v3751 = vand.u32 %v3003, 4294901760
    %3752 = vmatpush.msra.mxu0 %v3751
    %v3753 = vand.u32 %v3002, 4294901760
    %3754 = vmatpush.msra.mxu0 %v3753
    %v3755 = vand.u32 %v3001, 4294901760
    %3756 = vmatpush.msra.mxu0 %v3755
    %v3757 = vand.u32 %v3000, 4294901760
    %3758 = vmatpush.msra.mxu0 %v3757
    %v3759 = vand.u32 %v3577, 4294901760
    %3760 = vmatmul.f32.gmra.mxu0 %v3759
    %v3761 = vpop.f32.mrf.mxu0
    %v3762 = vadd.f32 %v3737, %v3761
    %3763 = vdwg.mxu0
    %v3764 = vadd.f32 %v2981, %v3762
    %v3765 = vtanh.pop %v3764
    %v3767 = vsel %vm595, %v3765, 0
    %3769 = vmatpush.msra.mxu0 0.0
    %3770 = vmatpush.msra.mxu0 0.0
    %3771 = vmatpush.msra.mxu0 0.0
    %3772 = vmatpush.msra.mxu0 0.0
    %3773 = vmatpush.msra.mxu0 0.0
    %3774 = vmatpush.msra.mxu0 0.0
    %3775 = vmatpush.msra.mxu0 0.0
    %3776 = vmatpush.msra.mxu0 0.0
    %3777 = vmatpush.msra.mxu0 0.0
    %3778 = vmatpush.msra.mxu0 0.0
    %3779 = vmatpush.msra.mxu0 0.0
    %3780 = vmatpush.msra.mxu0 0.0
    %v3781 = vand.u32 %v3003, 4294901760
    %3782 = vmatpush.msra.mxu0 %v3781
    %v3783 = vand.u32 %v3002, 4294901760
    %3784 = vmatpush.msra.mxu0 %v3783
    %v3785 = vand.u32 %v3001, 4294901760
    %3786 = vmatpush.msra.mxu0 %v3785
    %v3787 = vand.u32 %v3000, 4294901760
    %3788 = vmatpush.msra.mxu0 %v3787
    %v3789 = vand.u32 %v3767, 4294901760
    %v3790 = vsub.f32 %v3767, %v3789
    %v3791 = vand.u32 %v3790, 4294901760
    %v3792 = vsub.f32 %v3790, %v3791
    %v3793 = vand.u32 %v3792, 4294901760
    %3794 = vmatmul.f32.gmra.mxu0 %v3793
    %v3795 = vpop.f32.mrf.mxu0
    %v3796 = vadd.f32 0.0, %v3795
    %3797 = vdwg.mxu0
    %3798 = vmatpush.msra.mxu0 0.0
    %3799 = vmatpush.msra.mxu0 0.0
    %3800 = vmatpush.msra.mxu0 0.0
    %3801 = vmatpush.msra.mxu0 0.0
    %3802 = vmatpush.msra.mxu0 0.0
    %3803 = vmatpush.msra.mxu0 0.0
    %3804 = vmatpush.msra.mxu0 0.0
    %3805 = vmatpush.msra.mxu0 0.0
    %3806 = vmatpush.msra.mxu0 0.0
    %3807 = vmatpush.msra.mxu0 0.0
    %3808 = vmatpush.msra.mxu0 0.0
    %3809 = vmatpush.msra.mxu0 0.0
    %v3810 = vand.u32 %v3003, 4294901760
    %v3811 = vsub.f32 %v3003, %v3810
    %v3812 = vand.u32 %v3811, 4294901760
    %v3813 = vsub.f32 %v3811, %v3812
    %v3814 = vand.u32 %v3813, 4294901760
    %3815 = vmatpush.msra.mxu0 %v3814
    %v3816 = vand.u32 %v3002, 4294901760
    %v3817 = vsub.f32 %v3002, %v3816
    %v3818 = vand.u32 %v3817, 4294901760
    %v3819 = vsub.f32 %v3817, %v3818
    %v3820 = vand.u32 %v3819, 4294901760
    %3821 = vmatpush.msra.mxu0 %v3820
    %v3822 = vand.u32 %v3001, 4294901760
    %v3823 = vsub.f32 %v3001, %v3822
    %v3824 = vand.u32 %v3823, 4294901760
    %v3825 = vsub.f32 %v3823, %v3824
    %v3826 = vand.u32 %v3825, 4294901760
    %3827 = vmatpush.msra.mxu0 %v3826
    %v3828 = vand.u32 %v3000, 4294901760
    %v3829 = vsub.f32 %v3000, %v3828
    %v3830 = vand.u32 %v3829, 4294901760
    %v3831 = vsub.f32 %v3829, %v3830
    %v3832 = vand.u32 %v3831, 4294901760
    %3833 = vmatpush.msra.mxu0 %v3832
    %v3834 = vand.u32 %v3767, 4294901760
    %3835 = vmatmul.f32.gmra.mxu0 %v3834
    %v3836 = vpop.f32.mrf.mxu0
    %v3837 = vadd.f32 %v3796, %v3836
    %3838 = vdwg.mxu0
    %3839 = vmatpush.msra.mxu0 0.0
    %3840 = vmatpush.msra.mxu0 0.0
    %3841 = vmatpush.msra.mxu0 0.0
    %3842 = vmatpush.msra.mxu0 0.0
    %3843 = vmatpush.msra.mxu0 0.0
    %3844 = vmatpush.msra.mxu0 0.0
    %3845 = vmatpush.msra.mxu0 0.0
    %3846 = vmatpush.msra.mxu0 0.0
    %3847 = vmatpush.msra.mxu0 0.0
    %3848 = vmatpush.msra.mxu0 0.0
    %3849 = vmatpush.msra.mxu0 0.0
    %3850 = vmatpush.msra.mxu0 0.0
    %v3851 = vand.u32 %v3003, 4294901760
    %v3852 = vsub.f32 %v3003, %v3851
    %3853 = vmatpush.msra.mxu0 %v3852
    %v3854 = vand.u32 %v3002, 4294901760
    %v3855 = vsub.f32 %v3002, %v3854
    %3856 = vmatpush.msra.mxu0 %v3855
    %v3857 = vand.u32 %v3001, 4294901760
    %v3858 = vsub.f32 %v3001, %v3857
    %3859 = vmatpush.msra.mxu0 %v3858
    %v3860 = vand.u32 %v3000, 4294901760
    %v3861 = vsub.f32 %v3000, %v3860
    %3862 = vmatpush.msra.mxu0 %v3861
    %v3863 = vand.u32 %v3767, 4294901760
    %v3864 = vsub.f32 %v3767, %v3863
    %3865 = vmatmul.f32.gmra.mxu0 %v3864
    %v3866 = vpop.f32.mrf.mxu0
    %v3867 = vadd.f32 %v3837, %v3866
    %3868 = vdwg.mxu0
    %3869 = vmatpush.msra.mxu0 0.0
    %3870 = vmatpush.msra.mxu0 0.0
    %3871 = vmatpush.msra.mxu0 0.0
    %3872 = vmatpush.msra.mxu0 0.0
    %3873 = vmatpush.msra.mxu0 0.0
    %3874 = vmatpush.msra.mxu0 0.0
    %3875 = vmatpush.msra.mxu0 0.0
    %3876 = vmatpush.msra.mxu0 0.0
    %3877 = vmatpush.msra.mxu0 0.0
    %3878 = vmatpush.msra.mxu0 0.0
    %3879 = vmatpush.msra.mxu0 0.0
    %3880 = vmatpush.msra.mxu0 0.0
    %v3881 = vand.u32 %v3003, 4294901760
    %3882 = vmatpush.msra.mxu0 %v3881
    %v3883 = vand.u32 %v3002, 4294901760
    %3884 = vmatpush.msra.mxu0 %v3883
    %v3885 = vand.u32 %v3001, 4294901760
    %3886 = vmatpush.msra.mxu0 %v3885
    %v3887 = vand.u32 %v3000, 4294901760
    %3888 = vmatpush.msra.mxu0 %v3887
    %v3889 = vand.u32 %v3767, 4294901760
    %v3890 = vsub.f32 %v3767, %v3889
    %v3891 = vand.u32 %v3890, 4294901760
    %3892 = vmatmul.f32.gmra.mxu0 %v3891
    %v3893 = vpop.f32.mrf.mxu0
    %v3894 = vadd.f32 %v3867, %v3893
    %3895 = vdwg.mxu0
    %3896 = vmatpush.msra.mxu0 0.0
    %3897 = vmatpush.msra.mxu0 0.0
    %3898 = vmatpush.msra.mxu0 0.0
    %3899 = vmatpush.msra.mxu0 0.0
    %3900 = vmatpush.msra.mxu0 0.0
    %3901 = vmatpush.msra.mxu0 0.0
    %3902 = vmatpush.msra.mxu0 0.0
    %3903 = vmatpush.msra.mxu0 0.0
    %3904 = vmatpush.msra.mxu0 0.0
    %3905 = vmatpush.msra.mxu0 0.0
    %3906 = vmatpush.msra.mxu0 0.0
    %3907 = vmatpush.msra.mxu0 0.0
    %v3908 = vand.u32 %v3003, 4294901760
    %v3909 = vsub.f32 %v3003, %v3908
    %v3910 = vand.u32 %v3909, 4294901760
    %3911 = vmatpush.msra.mxu0 %v3910
    %v3912 = vand.u32 %v3002, 4294901760
    %v3913 = vsub.f32 %v3002, %v3912
    %v3914 = vand.u32 %v3913, 4294901760
    %3915 = vmatpush.msra.mxu0 %v3914
    %v3916 = vand.u32 %v3001, 4294901760
    %v3917 = vsub.f32 %v3001, %v3916
    %v3918 = vand.u32 %v3917, 4294901760
    %3919 = vmatpush.msra.mxu0 %v3918
    %v3920 = vand.u32 %v3000, 4294901760
    %v3921 = vsub.f32 %v3000, %v3920
    %v3922 = vand.u32 %v3921, 4294901760
    %3923 = vmatpush.msra.mxu0 %v3922
    %v3924 = vand.u32 %v3767, 4294901760
    %3925 = vmatmul.f32.gmra.mxu0 %v3924
    %v3926 = vpop.f32.mrf.mxu0
    %v3927 = vadd.f32 %v3894, %v3926
    %3928 = vdwg.mxu0
    %3929 = vmatpush.msra.mxu0 0.0
    %3930 = vmatpush.msra.mxu0 0.0
    %3931 = vmatpush.msra.mxu0 0.0
    %3932 = vmatpush.msra.mxu0 0.0
    %3933 = vmatpush.msra.mxu0 0.0
    %3934 = vmatpush.msra.mxu0 0.0
    %3935 = vmatpush.msra.mxu0 0.0
    %3936 = vmatpush.msra.mxu0 0.0
    %3937 = vmatpush.msra.mxu0 0.0
    %3938 = vmatpush.msra.mxu0 0.0
    %3939 = vmatpush.msra.mxu0 0.0
    %3940 = vmatpush.msra.mxu0 0.0
    %v3941 = vand.u32 %v3003, 4294901760
    %3942 = vmatpush.msra.mxu0 %v3941
    %v3943 = vand.u32 %v3002, 4294901760
    %3944 = vmatpush.msra.mxu0 %v3943
    %v3945 = vand.u32 %v3001, 4294901760
    %3946 = vmatpush.msra.mxu0 %v3945
    %v3947 = vand.u32 %v3000, 4294901760
    %3948 = vmatpush.msra.mxu0 %v3947
    %v3949 = vand.u32 %v3767, 4294901760
    %3950 = vmatmul.f32.gmra.mxu0 %v3949
    %v3951 = vpop.f32.mrf.mxu0
    %v3952 = vadd.f32 %v3927, %v3951
    %3953 = vdwg.mxu0
    %v3954 = vadd.f32 %v2985, %v3952
    %v3955 = vtanh.pop %v3954
    %v3957 = vsel %vm595, %v3955, 0
    %3959 = vmatpush.msra.mxu0 0.0
    %3960 = vmatpush.msra.mxu0 0.0
    %3961 = vmatpush.msra.mxu0 0.0
    %3962 = vmatpush.msra.mxu0 0.0
    %3963 = vmatpush.msra.mxu0 0.0
    %3964 = vmatpush.msra.mxu0 0.0
    %3965 = vmatpush.msra.mxu0 0.0
    %3966 = vmatpush.msra.mxu0 0.0
    %3967 = vmatpush.msra.mxu0 0.0
    %3968 = vmatpush.msra.mxu0 0.0
    %3969 = vmatpush.msra.mxu0 0.0
    %3970 = vmatpush.msra.mxu0 0.0
    %v3971 = vand.u32 %v3003, 4294901760
    %3972 = vmatpush.msra.mxu0 %v3971
    %v3973 = vand.u32 %v3002, 4294901760
    %3974 = vmatpush.msra.mxu0 %v3973
    %v3975 = vand.u32 %v3001, 4294901760
    %3976 = vmatpush.msra.mxu0 %v3975
    %v3977 = vand.u32 %v3000, 4294901760
    %3978 = vmatpush.msra.mxu0 %v3977
    %v3979 = vand.u32 %v3957, 4294901760
    %v3980 = vsub.f32 %v3957, %v3979
    %v3981 = vand.u32 %v3980, 4294901760
    %v3982 = vsub.f32 %v3980, %v3981
    %v3983 = vand.u32 %v3982, 4294901760
    %3984 = vmatmul.f32.gmra.mxu0 %v3983
    %v3985 = vpop.f32.mrf.mxu0
    %v3986 = vadd.f32 0.0, %v3985
    %3987 = vdwg.mxu0
    %3988 = vmatpush.msra.mxu0 0.0
    %3989 = vmatpush.msra.mxu0 0.0
    %3990 = vmatpush.msra.mxu0 0.0
    %3991 = vmatpush.msra.mxu0 0.0
    %3992 = vmatpush.msra.mxu0 0.0
    %3993 = vmatpush.msra.mxu0 0.0
    %3994 = vmatpush.msra.mxu0 0.0
    %3995 = vmatpush.msra.mxu0 0.0
    %3996 = vmatpush.msra.mxu0 0.0
    %3997 = vmatpush.msra.mxu0 0.0
    %3998 = vmatpush.msra.mxu0 0.0
    %3999 = vmatpush.msra.mxu0 0.0
    %v4000 = vand.u32 %v3003, 4294901760
    %v4001 = vsub.f32 %v3003, %v4000
    %v4002 = vand.u32 %v4001, 4294901760
    %v4003 = vsub.f32 %v4001, %v4002
    %v4004 = vand.u32 %v4003, 4294901760
    %4005 = vmatpush.msra.mxu0 %v4004
    %v4006 = vand.u32 %v3002, 4294901760
    %v4007 = vsub.f32 %v3002, %v4006
    %v4008 = vand.u32 %v4007, 4294901760
    %v4009 = vsub.f32 %v4007, %v4008
    %v4010 = vand.u32 %v4009, 4294901760
    %4011 = vmatpush.msra.mxu0 %v4010
    %v4012 = vand.u32 %v3001, 4294901760
    %v4013 = vsub.f32 %v3001, %v4012
    %v4014 = vand.u32 %v4013, 4294901760
    %v4015 = vsub.f32 %v4013, %v4014
    %v4016 = vand.u32 %v4015, 4294901760
    %4017 = vmatpush.msra.mxu0 %v4016
    %v4018 = vand.u32 %v3000, 4294901760
    %v4019 = vsub.f32 %v3000, %v4018
    %v4020 = vand.u32 %v4019, 4294901760
    %v4021 = vsub.f32 %v4019, %v4020
    %v4022 = vand.u32 %v4021, 4294901760
    %4023 = vmatpush.msra.mxu0 %v4022
    %v4024 = vand.u32 %v3957, 4294901760
    %4025 = vmatmul.f32.gmra.mxu0 %v4024
    %v4026 = vpop.f32.mrf.mxu0
    %v4027 = vadd.f32 %v3986, %v4026
    %4028 = vdwg.mxu0
    %4029 = vmatpush.msra.mxu0 0.0
    %4030 = vmatpush.msra.mxu0 0.0
    %4031 = vmatpush.msra.mxu0 0.0
    %4032 = vmatpush.msra.mxu0 0.0
    %4033 = vmatpush.msra.mxu0 0.0
    %4034 = vmatpush.msra.mxu0 0.0
    %4035 = vmatpush.msra.mxu0 0.0
    %4036 = vmatpush.msra.mxu0 0.0
    %4037 = vmatpush.msra.mxu0 0.0
    %4038 = vmatpush.msra.mxu0 0.0
    %4039 = vmatpush.msra.mxu0 0.0
    %4040 = vmatpush.msra.mxu0 0.0
    %v4041 = vand.u32 %v3003, 4294901760
    %v4042 = vsub.f32 %v3003, %v4041
    %4043 = vmatpush.msra.mxu0 %v4042
    %v4044 = vand.u32 %v3002, 4294901760
    %v4045 = vsub.f32 %v3002, %v4044
    %4046 = vmatpush.msra.mxu0 %v4045
    %v4047 = vand.u32 %v3001, 4294901760
    %v4048 = vsub.f32 %v3001, %v4047
    %4049 = vmatpush.msra.mxu0 %v4048
    %v4050 = vand.u32 %v3000, 4294901760
    %v4051 = vsub.f32 %v3000, %v4050
    %4052 = vmatpush.msra.mxu0 %v4051
    %v4053 = vand.u32 %v3957, 4294901760
    %v4054 = vsub.f32 %v3957, %v4053
    %4055 = vmatmul.f32.gmra.mxu0 %v4054
    %v4056 = vpop.f32.mrf.mxu0
    %v4057 = vadd.f32 %v4027, %v4056
    %4058 = vdwg.mxu0
    %4059 = vmatpush.msra.mxu0 0.0
    %4060 = vmatpush.msra.mxu0 0.0
    %4061 = vmatpush.msra.mxu0 0.0
    %4062 = vmatpush.msra.mxu0 0.0
    %4063 = vmatpush.msra.mxu0 0.0
    %4064 = vmatpush.msra.mxu0 0.0
    %4065 = vmatpush.msra.mxu0 0.0
    %4066 = vmatpush.msra.mxu0 0.0
    %4067 = vmatpush.msra.mxu0 0.0
    %4068 = vmatpush.msra.mxu0 0.0
    %4069 = vmatpush.msra.mxu0 0.0
    %4070 = vmatpush.msra.mxu0 0.0
    %v4071 = vand.u32 %v3003, 4294901760
    %4072 = vmatpush.msra.mxu0 %v4071
    %v4073 = vand.u32 %v3002, 4294901760
    %4074 = vmatpush.msra.mxu0 %v4073
    %v4075 = vand.u32 %v3001, 4294901760
    %4076 = vmatpush.msra.mxu0 %v4075
    %v4077 = vand.u32 %v3000, 4294901760
    %4078 = vmatpush.msra.mxu0 %v4077
    %v4079 = vand.u32 %v3957, 4294901760
    %v4080 = vsub.f32 %v3957, %v4079
    %v4081 = vand.u32 %v4080, 4294901760
    %4082 = vmatmul.f32.gmra.mxu0 %v4081
    %v4083 = vpop.f32.mrf.mxu0
    %v4084 = vadd.f32 %v4057, %v4083
    %4085 = vdwg.mxu0
    %4086 = vmatpush.msra.mxu0 0.0
    %4087 = vmatpush.msra.mxu0 0.0
    %4088 = vmatpush.msra.mxu0 0.0
    %4089 = vmatpush.msra.mxu0 0.0
    %4090 = vmatpush.msra.mxu0 0.0
    %4091 = vmatpush.msra.mxu0 0.0
    %4092 = vmatpush.msra.mxu0 0.0
    %4093 = vmatpush.msra.mxu0 0.0
    %4094 = vmatpush.msra.mxu0 0.0
    %4095 = vmatpush.msra.mxu0 0.0
    %4096 = vmatpush.msra.mxu0 0.0
    %4097 = vmatpush.msra.mxu0 0.0
    %v4098 = vand.u32 %v3003, 4294901760
    %v4099 = vsub.f32 %v3003, %v4098
    %v4100 = vand.u32 %v4099, 4294901760
    %4101 = vmatpush.msra.mxu0 %v4100
    %v4102 = vand.u32 %v3002, 4294901760
    %v4103 = vsub.f32 %v3002, %v4102
    %v4104 = vand.u32 %v4103, 4294901760
    %4105 = vmatpush.msra.mxu0 %v4104
    %v4106 = vand.u32 %v3001, 4294901760
    %v4107 = vsub.f32 %v3001, %v4106
    %v4108 = vand.u32 %v4107, 4294901760
    %4109 = vmatpush.msra.mxu0 %v4108
    %v4110 = vand.u32 %v3000, 4294901760
    %v4111 = vsub.f32 %v3000, %v4110
    %v4112 = vand.u32 %v4111, 4294901760
    %4113 = vmatpush.msra.mxu0 %v4112
    %v4114 = vand.u32 %v3957, 4294901760
    %4115 = vmatmul.f32.gmra.mxu0 %v4114
    %v4116 = vpop.f32.mrf.mxu0
    %v4117 = vadd.f32 %v4084, %v4116
    %4118 = vdwg.mxu0
    %4119 = vmatpush.msra.mxu0 0.0
    %4120 = vmatpush.msra.mxu0 0.0
    %4121 = vmatpush.msra.mxu0 0.0
    %4122 = vmatpush.msra.mxu0 0.0
    %4123 = vmatpush.msra.mxu0 0.0
    %4124 = vmatpush.msra.mxu0 0.0
    %4125 = vmatpush.msra.mxu0 0.0
    %4126 = vmatpush.msra.mxu0 0.0
    %4127 = vmatpush.msra.mxu0 0.0
    %4128 = vmatpush.msra.mxu0 0.0
    %4129 = vmatpush.msra.mxu0 0.0
    %4130 = vmatpush.msra.mxu0 0.0
    %v4131 = vand.u32 %v3003, 4294901760
    %4132 = vmatpush.msra.mxu0 %v4131
    %v4133 = vand.u32 %v3002, 4294901760
    %4134 = vmatpush.msra.mxu0 %v4133
    %v4135 = vand.u32 %v3001, 4294901760
    %4136 = vmatpush.msra.mxu0 %v4135
    %v4137 = vand.u32 %v3000, 4294901760
    %4138 = vmatpush.msra.mxu0 %v4137
    %v4139 = vand.u32 %v3957, 4294901760
    %4140 = vmatmul.f32.gmra.mxu0 %v4139
    %v4141 = vpop.f32.mrf.mxu0
    %v4142 = vadd.f32 %v4117, %v4141
    %4143 = vdwg.mxu0
    %v4144 = vadd.f32 %v2989, %v4142
    %v4145 = vtanh.pop %v4144
    %v4147 = vsel %vm595, %v4145, 0
    %4149 = vmatpush.msra.mxu0 0.0
    %4150 = vmatpush.msra.mxu0 0.0
    %4151 = vmatpush.msra.mxu0 0.0
    %4152 = vmatpush.msra.mxu0 0.0
    %4153 = vmatpush.msra.mxu0 0.0
    %4154 = vmatpush.msra.mxu0 0.0
    %4155 = vmatpush.msra.mxu0 0.0
    %4156 = vmatpush.msra.mxu0 0.0
    %4157 = vmatpush.msra.mxu0 0.0
    %4158 = vmatpush.msra.mxu0 0.0
    %4159 = vmatpush.msra.mxu0 0.0
    %4160 = vmatpush.msra.mxu0 0.0
    %v4161 = vand.u32 %v3003, 4294901760
    %4162 = vmatpush.msra.mxu0 %v4161
    %v4163 = vand.u32 %v3002, 4294901760
    %4164 = vmatpush.msra.mxu0 %v4163
    %v4165 = vand.u32 %v3001, 4294901760
    %4166 = vmatpush.msra.mxu0 %v4165
    %v4167 = vand.u32 %v3000, 4294901760
    %4168 = vmatpush.msra.mxu0 %v4167
    %v4169 = vand.u32 %v4147, 4294901760
    %v4170 = vsub.f32 %v4147, %v4169
    %v4171 = vand.u32 %v4170, 4294901760
    %v4172 = vsub.f32 %v4170, %v4171
    %v4173 = vand.u32 %v4172, 4294901760
    %4174 = vmatmul.f32.gmra.mxu0 %v4173
    %v4175 = vpop.f32.mrf.mxu0
    %v4176 = vadd.f32 0.0, %v4175
    %4177 = vdwg.mxu0
    %4178 = vmatpush.msra.mxu0 0.0
    %4179 = vmatpush.msra.mxu0 0.0
    %4180 = vmatpush.msra.mxu0 0.0
    %4181 = vmatpush.msra.mxu0 0.0
    %4182 = vmatpush.msra.mxu0 0.0
    %4183 = vmatpush.msra.mxu0 0.0
    %4184 = vmatpush.msra.mxu0 0.0
    %4185 = vmatpush.msra.mxu0 0.0
    %4186 = vmatpush.msra.mxu0 0.0
    %4187 = vmatpush.msra.mxu0 0.0
    %4188 = vmatpush.msra.mxu0 0.0
    %4189 = vmatpush.msra.mxu0 0.0
    %v4190 = vand.u32 %v3003, 4294901760
    %v4191 = vsub.f32 %v3003, %v4190
    %v4192 = vand.u32 %v4191, 4294901760
    %v4193 = vsub.f32 %v4191, %v4192
    %v4194 = vand.u32 %v4193, 4294901760
    %4195 = vmatpush.msra.mxu0 %v4194
    %v4196 = vand.u32 %v3002, 4294901760
    %v4197 = vsub.f32 %v3002, %v4196
    %v4198 = vand.u32 %v4197, 4294901760
    %v4199 = vsub.f32 %v4197, %v4198
    %v4200 = vand.u32 %v4199, 4294901760
    %4201 = vmatpush.msra.mxu0 %v4200
    %v4202 = vand.u32 %v3001, 4294901760
    %v4203 = vsub.f32 %v3001, %v4202
    %v4204 = vand.u32 %v4203, 4294901760
    %v4205 = vsub.f32 %v4203, %v4204
    %v4206 = vand.u32 %v4205, 4294901760
    %4207 = vmatpush.msra.mxu0 %v4206
    %v4208 = vand.u32 %v3000, 4294901760
    %v4209 = vsub.f32 %v3000, %v4208
    %v4210 = vand.u32 %v4209, 4294901760
    %v4211 = vsub.f32 %v4209, %v4210
    %v4212 = vand.u32 %v4211, 4294901760
    %4213 = vmatpush.msra.mxu0 %v4212
    %v4214 = vand.u32 %v4147, 4294901760
    %4215 = vmatmul.f32.gmra.mxu0 %v4214
    %v4216 = vpop.f32.mrf.mxu0
    %v4217 = vadd.f32 %v4176, %v4216
    %4218 = vdwg.mxu0
    %4219 = vmatpush.msra.mxu0 0.0
    %4220 = vmatpush.msra.mxu0 0.0
    %4221 = vmatpush.msra.mxu0 0.0
    %4222 = vmatpush.msra.mxu0 0.0
    %4223 = vmatpush.msra.mxu0 0.0
    %4224 = vmatpush.msra.mxu0 0.0
    %4225 = vmatpush.msra.mxu0 0.0
    %4226 = vmatpush.msra.mxu0 0.0
    %4227 = vmatpush.msra.mxu0 0.0
    %4228 = vmatpush.msra.mxu0 0.0
    %4229 = vmatpush.msra.mxu0 0.0
    %4230 = vmatpush.msra.mxu0 0.0
    %v4231 = vand.u32 %v3003, 4294901760
    %v4232 = vsub.f32 %v3003, %v4231
    %4233 = vmatpush.msra.mxu0 %v4232
    %v4234 = vand.u32 %v3002, 4294901760
    %v4235 = vsub.f32 %v3002, %v4234
    %4236 = vmatpush.msra.mxu0 %v4235
    %v4237 = vand.u32 %v3001, 4294901760
    %v4238 = vsub.f32 %v3001, %v4237
    %4239 = vmatpush.msra.mxu0 %v4238
    %v4240 = vand.u32 %v3000, 4294901760
    %v4241 = vsub.f32 %v3000, %v4240
    %4242 = vmatpush.msra.mxu0 %v4241
    %v4243 = vand.u32 %v4147, 4294901760
    %v4244 = vsub.f32 %v4147, %v4243
    %4245 = vmatmul.f32.gmra.mxu0 %v4244
    %v4246 = vpop.f32.mrf.mxu0
    %v4247 = vadd.f32 %v4217, %v4246
    %4248 = vdwg.mxu0
    %4249 = vmatpush.msra.mxu0 0.0
    %4250 = vmatpush.msra.mxu0 0.0
    %4251 = vmatpush.msra.mxu0 0.0
    %4252 = vmatpush.msra.mxu0 0.0
    %4253 = vmatpush.msra.mxu0 0.0
    %4254 = vmatpush.msra.mxu0 0.0
    %4255 = vmatpush.msra.mxu0 0.0
    %4256 = vmatpush.msra.mxu0 0.0
    %4257 = vmatpush.msra.mxu0 0.0
    %4258 = vmatpush.msra.mxu0 0.0
    %4259 = vmatpush.msra.mxu0 0.0
    %4260 = vmatpush.msra.mxu0 0.0
    %v4261 = vand.u32 %v3003, 4294901760
    %4262 = vmatpush.msra.mxu0 %v4261
    %v4263 = vand.u32 %v3002, 4294901760
    %4264 = vmatpush.msra.mxu0 %v4263
    %v4265 = vand.u32 %v3001, 4294901760
    %4266 = vmatpush.msra.mxu0 %v4265
    %v4267 = vand.u32 %v3000, 4294901760
    %4268 = vmatpush.msra.mxu0 %v4267
    %v4269 = vand.u32 %v4147, 4294901760
    %v4270 = vsub.f32 %v4147, %v4269
    %v4271 = vand.u32 %v4270, 4294901760
    %4272 = vmatmul.f32.gmra.mxu0 %v4271
    %v4273 = vpop.f32.mrf.mxu0
    %v4274 = vadd.f32 %v4247, %v4273
    %4275 = vdwg.mxu0
    %4276 = vmatpush.msra.mxu0 0.0
    %4277 = vmatpush.msra.mxu0 0.0
    %4278 = vmatpush.msra.mxu0 0.0
    %4279 = vmatpush.msra.mxu0 0.0
    %4280 = vmatpush.msra.mxu0 0.0
    %4281 = vmatpush.msra.mxu0 0.0
    %4282 = vmatpush.msra.mxu0 0.0
    %4283 = vmatpush.msra.mxu0 0.0
    %4284 = vmatpush.msra.mxu0 0.0
    %4285 = vmatpush.msra.mxu0 0.0
    %4286 = vmatpush.msra.mxu0 0.0
    %4287 = vmatpush.msra.mxu0 0.0
    %v4288 = vand.u32 %v3003, 4294901760
    %v4289 = vsub.f32 %v3003, %v4288
    %v4290 = vand.u32 %v4289, 4294901760
    %4291 = vmatpush.msra.mxu0 %v4290
    %v4292 = vand.u32 %v3002, 4294901760
    %v4293 = vsub.f32 %v3002, %v4292
    %v4294 = vand.u32 %v4293, 4294901760
    %4295 = vmatpush.msra.mxu0 %v4294
    %v4296 = vand.u32 %v3001, 4294901760
    %v4297 = vsub.f32 %v3001, %v4296
    %v4298 = vand.u32 %v4297, 4294901760
    %4299 = vmatpush.msra.mxu0 %v4298
    %v4300 = vand.u32 %v3000, 4294901760
    %v4301 = vsub.f32 %v3000, %v4300
    %v4302 = vand.u32 %v4301, 4294901760
    %4303 = vmatpush.msra.mxu0 %v4302
    %v4304 = vand.u32 %v4147, 4294901760
    %4305 = vmatmul.f32.gmra.mxu0 %v4304
    %v4306 = vpop.f32.mrf.mxu0
    %v4307 = vadd.f32 %v4274, %v4306
    %4308 = vdwg.mxu0
    %4309 = vmatpush.msra.mxu0 0.0
    %4310 = vmatpush.msra.mxu0 0.0
    %4311 = vmatpush.msra.mxu0 0.0
    %4312 = vmatpush.msra.mxu0 0.0
    %4313 = vmatpush.msra.mxu0 0.0
    %4314 = vmatpush.msra.mxu0 0.0
    %4315 = vmatpush.msra.mxu0 0.0
    %4316 = vmatpush.msra.mxu0 0.0
    %4317 = vmatpush.msra.mxu0 0.0
    %4318 = vmatpush.msra.mxu0 0.0
    %4319 = vmatpush.msra.mxu0 0.0
    %4320 = vmatpush.msra.mxu0 0.0
    %v4321 = vand.u32 %v3003, 4294901760
    %4322 = vmatpush.msra.mxu0 %v4321
    %v4323 = vand.u32 %v3002, 4294901760
    %4324 = vmatpush.msra.mxu0 %v4323
    %v4325 = vand.u32 %v3001, 4294901760
    %4326 = vmatpush.msra.mxu0 %v4325
    %v4327 = vand.u32 %v3000, 4294901760
    %4328 = vmatpush.msra.mxu0 %v4327
    %v4329 = vand.u32 %v4147, 4294901760
    %4330 = vmatmul.f32.gmra.mxu0 %v4329
    %v4331 = vpop.f32.mrf.mxu0
    %v4332 = vadd.f32 %v4307, %v4331
    %4333 = vdwg.mxu0
    %v4334 = vadd.f32 %v2993, %v4332
    %v4335 = vtanh.pop %v4334
    %v4337 = vsel %vm595, %v4335, 0
    %4339 = vmatpush.msra.mxu0 0.0
    %4340 = vmatpush.msra.mxu0 0.0
    %4341 = vmatpush.msra.mxu0 0.0
    %4342 = vmatpush.msra.mxu0 0.0
    %4343 = vmatpush.msra.mxu0 0.0
    %4344 = vmatpush.msra.mxu0 0.0
    %4345 = vmatpush.msra.mxu0 0.0
    %4346 = vmatpush.msra.mxu0 0.0
    %4347 = vmatpush.msra.mxu0 0.0
    %4348 = vmatpush.msra.mxu0 0.0
    %4349 = vmatpush.msra.mxu0 0.0
    %4350 = vmatpush.msra.mxu0 0.0
    %v4351 = vand.u32 %v3003, 4294901760
    %4352 = vmatpush.msra.mxu0 %v4351
    %v4353 = vand.u32 %v3002, 4294901760
    %4354 = vmatpush.msra.mxu0 %v4353
    %v4355 = vand.u32 %v3001, 4294901760
    %4356 = vmatpush.msra.mxu0 %v4355
    %v4357 = vand.u32 %v3000, 4294901760
    %4358 = vmatpush.msra.mxu0 %v4357
    %v4359 = vand.u32 %v4337, 4294901760
    %v4360 = vsub.f32 %v4337, %v4359
    %v4361 = vand.u32 %v4360, 4294901760
    %v4362 = vsub.f32 %v4360, %v4361
    %v4363 = vand.u32 %v4362, 4294901760
    %4364 = vmatmul.f32.gmra.mxu0 %v4363
    %v4365 = vpop.f32.mrf.mxu0
    %v4366 = vadd.f32 0.0, %v4365
    %4367 = vdwg.mxu0
    %4368 = vmatpush.msra.mxu0 0.0
    %4369 = vmatpush.msra.mxu0 0.0
    %4370 = vmatpush.msra.mxu0 0.0
    %4371 = vmatpush.msra.mxu0 0.0
    %4372 = vmatpush.msra.mxu0 0.0
    %4373 = vmatpush.msra.mxu0 0.0
    %4374 = vmatpush.msra.mxu0 0.0
    %4375 = vmatpush.msra.mxu0 0.0
    %4376 = vmatpush.msra.mxu0 0.0
    %4377 = vmatpush.msra.mxu0 0.0
    %4378 = vmatpush.msra.mxu0 0.0
    %4379 = vmatpush.msra.mxu0 0.0
    %v4380 = vand.u32 %v3003, 4294901760
    %v4381 = vsub.f32 %v3003, %v4380
    %v4382 = vand.u32 %v4381, 4294901760
    %v4383 = vsub.f32 %v4381, %v4382
    %v4384 = vand.u32 %v4383, 4294901760
    %4385 = vmatpush.msra.mxu0 %v4384
    %v4386 = vand.u32 %v3002, 4294901760
    %v4387 = vsub.f32 %v3002, %v4386
    %v4388 = vand.u32 %v4387, 4294901760
    %v4389 = vsub.f32 %v4387, %v4388
    %v4390 = vand.u32 %v4389, 4294901760
    %4391 = vmatpush.msra.mxu0 %v4390
    %v4392 = vand.u32 %v3001, 4294901760
    %v4393 = vsub.f32 %v3001, %v4392
    %v4394 = vand.u32 %v4393, 4294901760
    %v4395 = vsub.f32 %v4393, %v4394
    %v4396 = vand.u32 %v4395, 4294901760
    %4397 = vmatpush.msra.mxu0 %v4396
    %v4398 = vand.u32 %v3000, 4294901760
    %v4399 = vsub.f32 %v3000, %v4398
    %v4400 = vand.u32 %v4399, 4294901760
    %v4401 = vsub.f32 %v4399, %v4400
    %v4402 = vand.u32 %v4401, 4294901760
    %4403 = vmatpush.msra.mxu0 %v4402
    %v4404 = vand.u32 %v4337, 4294901760
    %4405 = vmatmul.f32.gmra.mxu0 %v4404
    %v4406 = vpop.f32.mrf.mxu0
    %v4407 = vadd.f32 %v4366, %v4406
    %4408 = vdwg.mxu0
    %4409 = vmatpush.msra.mxu0 0.0
    %4410 = vmatpush.msra.mxu0 0.0
    %4411 = vmatpush.msra.mxu0 0.0
    %4412 = vmatpush.msra.mxu0 0.0
    %4413 = vmatpush.msra.mxu0 0.0
    %4414 = vmatpush.msra.mxu0 0.0
    %4415 = vmatpush.msra.mxu0 0.0
    %4416 = vmatpush.msra.mxu0 0.0
    %4417 = vmatpush.msra.mxu0 0.0
    %4418 = vmatpush.msra.mxu0 0.0
    %4419 = vmatpush.msra.mxu0 0.0
    %4420 = vmatpush.msra.mxu0 0.0
    %v4421 = vand.u32 %v3003, 4294901760
    %v4422 = vsub.f32 %v3003, %v4421
    %4423 = vmatpush.msra.mxu0 %v4422
    %v4424 = vand.u32 %v3002, 4294901760
    %v4425 = vsub.f32 %v3002, %v4424
    %4426 = vmatpush.msra.mxu0 %v4425
    %v4427 = vand.u32 %v3001, 4294901760
    %v4428 = vsub.f32 %v3001, %v4427
    %4429 = vmatpush.msra.mxu0 %v4428
    %v4430 = vand.u32 %v3000, 4294901760
    %v4431 = vsub.f32 %v3000, %v4430
    %4432 = vmatpush.msra.mxu0 %v4431
    %v4433 = vand.u32 %v4337, 4294901760
    %v4434 = vsub.f32 %v4337, %v4433
    %4435 = vmatmul.f32.gmra.mxu0 %v4434
    %v4436 = vpop.f32.mrf.mxu0
    %v4437 = vadd.f32 %v4407, %v4436
    %4438 = vdwg.mxu0
    %4439 = vmatpush.msra.mxu0 0.0
    %4440 = vmatpush.msra.mxu0 0.0
    %4441 = vmatpush.msra.mxu0 0.0
    %4442 = vmatpush.msra.mxu0 0.0
    %4443 = vmatpush.msra.mxu0 0.0
    %4444 = vmatpush.msra.mxu0 0.0
    %4445 = vmatpush.msra.mxu0 0.0
    %4446 = vmatpush.msra.mxu0 0.0
    %4447 = vmatpush.msra.mxu0 0.0
    %4448 = vmatpush.msra.mxu0 0.0
    %4449 = vmatpush.msra.mxu0 0.0
    %4450 = vmatpush.msra.mxu0 0.0
    %v4451 = vand.u32 %v3003, 4294901760
    %4452 = vmatpush.msra.mxu0 %v4451
    %v4453 = vand.u32 %v3002, 4294901760
    %4454 = vmatpush.msra.mxu0 %v4453
    %v4455 = vand.u32 %v3001, 4294901760
    %4456 = vmatpush.msra.mxu0 %v4455
    %v4457 = vand.u32 %v3000, 4294901760
    %4458 = vmatpush.msra.mxu0 %v4457
    %v4459 = vand.u32 %v4337, 4294901760
    %v4460 = vsub.f32 %v4337, %v4459
    %v4461 = vand.u32 %v4460, 4294901760
    %4462 = vmatmul.f32.gmra.mxu0 %v4461
    %v4463 = vpop.f32.mrf.mxu0
    %v4464 = vadd.f32 %v4437, %v4463
    %4465 = vdwg.mxu0
    %4466 = vmatpush.msra.mxu0 0.0
    %4467 = vmatpush.msra.mxu0 0.0
    %4468 = vmatpush.msra.mxu0 0.0
    %4469 = vmatpush.msra.mxu0 0.0
    %4470 = vmatpush.msra.mxu0 0.0
    %4471 = vmatpush.msra.mxu0 0.0
    %4472 = vmatpush.msra.mxu0 0.0
    %4473 = vmatpush.msra.mxu0 0.0
    %4474 = vmatpush.msra.mxu0 0.0
    %4475 = vmatpush.msra.mxu0 0.0
    %4476 = vmatpush.msra.mxu0 0.0
    %4477 = vmatpush.msra.mxu0 0.0
    %v4478 = vand.u32 %v3003, 4294901760
    %v4479 = vsub.f32 %v3003, %v4478
    %v4480 = vand.u32 %v4479, 4294901760
    %4481 = vmatpush.msra.mxu0 %v4480
    %v4482 = vand.u32 %v3002, 4294901760
    %v4483 = vsub.f32 %v3002, %v4482
    %v4484 = vand.u32 %v4483, 4294901760
    %4485 = vmatpush.msra.mxu0 %v4484
    %v4486 = vand.u32 %v3001, 4294901760
    %v4487 = vsub.f32 %v3001, %v4486
    %v4488 = vand.u32 %v4487, 4294901760
    %4489 = vmatpush.msra.mxu0 %v4488
    %v4490 = vand.u32 %v3000, 4294901760
    %v4491 = vsub.f32 %v3000, %v4490
    %v4492 = vand.u32 %v4491, 4294901760
    %4493 = vmatpush.msra.mxu0 %v4492
    %v4494 = vand.u32 %v4337, 4294901760
    %4495 = vmatmul.f32.gmra.mxu0 %v4494
    %v4496 = vpop.f32.mrf.mxu0
    %v4497 = vadd.f32 %v4464, %v4496
    %4498 = vdwg.mxu0
    %4499 = vmatpush.msra.mxu0 0.0
    %4500 = vmatpush.msra.mxu0 0.0
    %4501 = vmatpush.msra.mxu0 0.0
    %4502 = vmatpush.msra.mxu0 0.0
    %4503 = vmatpush.msra.mxu0 0.0
    %4504 = vmatpush.msra.mxu0 0.0
    %4505 = vmatpush.msra.mxu0 0.0
    %4506 = vmatpush.msra.mxu0 0.0
    %4507 = vmatpush.msra.mxu0 0.0
    %4508 = vmatpush.msra.mxu0 0.0
    %4509 = vmatpush.msra.mxu0 0.0
    %4510 = vmatpush.msra.mxu0 0.0
    %v4511 = vand.u32 %v3003, 4294901760
    %4512 = vmatpush.msra.mxu0 %v4511
    %v4513 = vand.u32 %v3002, 4294901760
    %4514 = vmatpush.msra.mxu0 %v4513
    %v4515 = vand.u32 %v3001, 4294901760
    %4516 = vmatpush.msra.mxu0 %v4515
    %v4517 = vand.u32 %v3000, 4294901760
    %4518 = vmatpush.msra.mxu0 %v4517
    %v4519 = vand.u32 %v4337, 4294901760
    %4520 = vmatmul.f32.gmra.mxu0 %v4519
    %v4521 = vpop.f32.mrf.mxu0
    %v4522 = vadd.f32 %v4497, %v4521
    %4523 = vdwg.mxu0
    %v4524 = vadd.f32 %v2997, %v4522
    %v4525 = vtanh.pop %v4524
    %v4526 = vld [vmem:[#allocation4] sm:$0xff]
    %v4527 = vld [vmem:[#allocation4 + $0x8] sm:$0xff]
    %v4528 = vld [vmem:[#allocation4 + $0x10] sm:$0xff]
    %v4529 = vld [vmem:[#allocation4 + $0x18] sm:$0xff]
    %v4530 = vld [vmem:[%s7] sm:$0x1]
    %v4532 = vperm.slane %v4530, 0
    %v4535 = vsel %vm595, %v4525, 0
    %4537 = vmatpush.msra.mxu0 0.0
    %4538 = vmatpush.msra.mxu0 0.0
    %4539 = vmatpush.msra.mxu0 0.0
    %4540 = vmatpush.msra.mxu0 0.0
    %4541 = vmatpush.msra.mxu0 0.0
    %4542 = vmatpush.msra.mxu0 0.0
    %4543 = vmatpush.msra.mxu0 0.0
    %4544 = vmatpush.msra.mxu0 0.0
    %4545 = vmatpush.msra.mxu0 0.0
    %4546 = vmatpush.msra.mxu0 0.0
    %4547 = vmatpush.msra.mxu0 0.0
    %4548 = vmatpush.msra.mxu0 0.0
    %v4549 = vand.u32 %v4529, 4294901760
    %4550 = vmatpush.msra.mxu0 %v4549
    %v4551 = vand.u32 %v4528, 4294901760
    %4552 = vmatpush.msra.mxu0 %v4551
    %v4553 = vand.u32 %v4527, 4294901760
    %4554 = vmatpush.msra.mxu0 %v4553
    %v4555 = vand.u32 %v4526, 4294901760
    %4556 = vmatpush.msra.mxu0 %v4555
    %v4557 = vand.u32 %v4535, 4294901760
    %v4558 = vsub.f32 %v4535, %v4557
    %v4559 = vand.u32 %v4558, 4294901760
    %v4560 = vsub.f32 %v4558, %v4559
    %v4561 = vand.u32 %v4560, 4294901760
    %4562 = vmatmul.f32.gmra.mxu0 %v4561
    %v4563 = vpop.f32.mrf.mxu0
    %v4564 = vadd.f32 %v4532, %v4563
    %4565 = vdwg.mxu0
    %4566 = vmatpush.msra.mxu0 0.0
    %4567 = vmatpush.msra.mxu0 0.0
    %4568 = vmatpush.msra.mxu0 0.0
    %4569 = vmatpush.msra.mxu0 0.0
    %4570 = vmatpush.msra.mxu0 0.0
    %4571 = vmatpush.msra.mxu0 0.0
    %4572 = vmatpush.msra.mxu0 0.0
    %4573 = vmatpush.msra.mxu0 0.0
    %4574 = vmatpush.msra.mxu0 0.0
    %4575 = vmatpush.msra.mxu0 0.0
    %4576 = vmatpush.msra.mxu0 0.0
    %4577 = vmatpush.msra.mxu0 0.0
    %v4578 = vand.u32 %v4529, 4294901760
    %v4579 = vsub.f32 %v4529, %v4578
    %v4580 = vand.u32 %v4579, 4294901760
    %v4581 = vsub.f32 %v4579, %v4580
    %v4582 = vand.u32 %v4581, 4294901760
    %4583 = vmatpush.msra.mxu0 %v4582
    %v4584 = vand.u32 %v4528, 4294901760
    %v4585 = vsub.f32 %v4528, %v4584
    %v4586 = vand.u32 %v4585, 4294901760
    %v4587 = vsub.f32 %v4585, %v4586
    %v4588 = vand.u32 %v4587, 4294901760
    %4589 = vmatpush.msra.mxu0 %v4588
    %v4590 = vand.u32 %v4527, 4294901760
    %v4591 = vsub.f32 %v4527, %v4590
    %v4592 = vand.u32 %v4591, 4294901760
    %v4593 = vsub.f32 %v4591, %v4592
    %v4594 = vand.u32 %v4593, 4294901760
    %4595 = vmatpush.msra.mxu0 %v4594
    %v4596 = vand.u32 %v4526, 4294901760
    %v4597 = vsub.f32 %v4526, %v4596
    %v4598 = vand.u32 %v4597, 4294901760
    %v4599 = vsub.f32 %v4597, %v4598
    %v4600 = vand.u32 %v4599, 4294901760
    %4601 = vmatpush.msra.mxu0 %v4600
    %v4602 = vand.u32 %v4535, 4294901760
    %4603 = vmatmul.f32.gmra.mxu0 %v4602
    %v4604 = vpop.f32.mrf.mxu0
    %v4605 = vadd.f32 %v4564, %v4604
    %4606 = vdwg.mxu0
    %4607 = vmatpush.msra.mxu0 0.0
    %4608 = vmatpush.msra.mxu0 0.0
    %4609 = vmatpush.msra.mxu0 0.0
    %4610 = vmatpush.msra.mxu0 0.0
    %4611 = vmatpush.msra.mxu0 0.0
    %4612 = vmatpush.msra.mxu0 0.0
    %4613 = vmatpush.msra.mxu0 0.0
    %4614 = vmatpush.msra.mxu0 0.0
    %4615 = vmatpush.msra.mxu0 0.0
    %4616 = vmatpush.msra.mxu0 0.0
    %4617 = vmatpush.msra.mxu0 0.0
    %4618 = vmatpush.msra.mxu0 0.0
    %v4619 = vand.u32 %v4529, 4294901760
    %v4620 = vsub.f32 %v4529, %v4619
    %4621 = vmatpush.msra.mxu0 %v4620
    %v4622 = vand.u32 %v4528, 4294901760
    %v4623 = vsub.f32 %v4528, %v4622
    %4624 = vmatpush.msra.mxu0 %v4623
    %v4625 = vand.u32 %v4527, 4294901760
    %v4626 = vsub.f32 %v4527, %v4625
    %4627 = vmatpush.msra.mxu0 %v4626
    %v4628 = vand.u32 %v4526, 4294901760
    %v4629 = vsub.f32 %v4526, %v4628
    %4630 = vmatpush.msra.mxu0 %v4629
    %v4631 = vand.u32 %v4535, 4294901760
    %v4632 = vsub.f32 %v4535, %v4631
    %4633 = vmatmul.f32.gmra.mxu0 %v4632
    %v4634 = vpop.f32.mrf.mxu0
    %v4635 = vadd.f32 %v4605, %v4634
    %4636 = vdwg.mxu0
    %4637 = vmatpush.msra.mxu0 0.0
    %4638 = vmatpush.msra.mxu0 0.0
    %4639 = vmatpush.msra.mxu0 0.0
    %4640 = vmatpush.msra.mxu0 0.0
    %4641 = vmatpush.msra.mxu0 0.0
    %4642 = vmatpush.msra.mxu0 0.0
    %4643 = vmatpush.msra.mxu0 0.0
    %4644 = vmatpush.msra.mxu0 0.0
    %4645 = vmatpush.msra.mxu0 0.0
    %4646 = vmatpush.msra.mxu0 0.0
    %4647 = vmatpush.msra.mxu0 0.0
    %4648 = vmatpush.msra.mxu0 0.0
    %v4649 = vand.u32 %v4529, 4294901760
    %4650 = vmatpush.msra.mxu0 %v4649
    %v4651 = vand.u32 %v4528, 4294901760
    %4652 = vmatpush.msra.mxu0 %v4651
    %v4653 = vand.u32 %v4527, 4294901760
    %4654 = vmatpush.msra.mxu0 %v4653
    %v4655 = vand.u32 %v4526, 4294901760
    %4656 = vmatpush.msra.mxu0 %v4655
    %v4657 = vand.u32 %v4535, 4294901760
    %v4658 = vsub.f32 %v4535, %v4657
    %v4659 = vand.u32 %v4658, 4294901760
    %4660 = vmatmul.f32.gmra.mxu0 %v4659
    %v4661 = vpop.f32.mrf.mxu0
    %v4662 = vadd.f32 %v4635, %v4661
    %4663 = vdwg.mxu0
    %4664 = vmatpush.msra.mxu0 0.0
    %4665 = vmatpush.msra.mxu0 0.0
    %4666 = vmatpush.msra.mxu0 0.0
    %4667 = vmatpush.msra.mxu0 0.0
    %4668 = vmatpush.msra.mxu0 0.0
    %4669 = vmatpush.msra.mxu0 0.0
    %4670 = vmatpush.msra.mxu0 0.0
    %4671 = vmatpush.msra.mxu0 0.0
    %4672 = vmatpush.msra.mxu0 0.0
    %4673 = vmatpush.msra.mxu0 0.0
    %4674 = vmatpush.msra.mxu0 0.0
    %4675 = vmatpush.msra.mxu0 0.0
    %v4676 = vand.u32 %v4529, 4294901760
    %v4677 = vsub.f32 %v4529, %v4676
    %v4678 = vand.u32 %v4677, 4294901760
    %4679 = vmatpush.msra.mxu0 %v4678
    %v4680 = vand.u32 %v4528, 4294901760
    %v4681 = vsub.f32 %v4528, %v4680
    %v4682 = vand.u32 %v4681, 4294901760
    %4683 = vmatpush.msra.mxu0 %v4682
    %v4684 = vand.u32 %v4527, 4294901760
    %v4685 = vsub.f32 %v4527, %v4684
    %v4686 = vand.u32 %v4685, 4294901760
    %4687 = vmatpush.msra.mxu0 %v4686
    %v4688 = vand.u32 %v4526, 4294901760
    %v4689 = vsub.f32 %v4526, %v4688
    %v4690 = vand.u32 %v4689, 4294901760
    %4691 = vmatpush.msra.mxu0 %v4690
    %v4692 = vand.u32 %v4535, 4294901760
    %4693 = vmatmul.f32.gmra.mxu0 %v4692
    %v4694 = vpop.f32.mrf.mxu0
    %v4695 = vadd.f32 %v4662, %v4694
    %4696 = vdwg.mxu0
    %4697 = vmatpush.msra.mxu0 0.0
    %4698 = vmatpush.msra.mxu0 0.0
    %4699 = vmatpush.msra.mxu0 0.0
    %4700 = vmatpush.msra.mxu0 0.0
    %4701 = vmatpush.msra.mxu0 0.0
    %4702 = vmatpush.msra.mxu0 0.0
    %4703 = vmatpush.msra.mxu0 0.0
    %4704 = vmatpush.msra.mxu0 0.0
    %4705 = vmatpush.msra.mxu0 0.0
    %4706 = vmatpush.msra.mxu0 0.0
    %4707 = vmatpush.msra.mxu0 0.0
    %4708 = vmatpush.msra.mxu0 0.0
    %v4709 = vand.u32 %v4529, 4294901760
    %4710 = vmatpush.msra.mxu0 %v4709
    %v4711 = vand.u32 %v4528, 4294901760
    %4712 = vmatpush.msra.mxu0 %v4711
    %v4713 = vand.u32 %v4527, 4294901760
    %4714 = vmatpush.msra.mxu0 %v4713
    %v4715 = vand.u32 %v4526, 4294901760
    %4716 = vmatpush.msra.mxu0 %v4715
    %v4717 = vand.u32 %v4535, 4294901760
    %4718 = vmatmul.f32.gmra.mxu0 %v4717
    %v4719 = vpop.f32.mrf.mxu0
    %v4720 = vadd.f32 %v4695, %v4719
    %4721 = vdwg.mxu0
    %v4722 = vmax.f32 %v4720, 0.0
    %v4723 = vld [vmem:[%s8] sm:$0x1]
    %v4725 = vperm.slane %v4723, 0
    %v4727 = vmul.f32 %v4722, %v4725
    %vm4728 = vcmask 523264
    %v4729 = vsel %vm4728, %v4727, 0.0
    %4730 = vadd.xlane.f32.xlu0 %v4729
    %v4731 = vpop.xlane.xlu0 %4730
    %s4732 = sld [smem:[#allocation3]]
    %v4733 = vstv %s4732
    %v4734 = vadd.f32 %v4731, %v4733
    %v4735 = vxor.u32 %v4734, 2147483648
    %v4736 = vmul.f32 %v4735, 1.442695
    %v4737 = vpow.pop %v4736
    %v4738 = vadd.f32 %v4737, 1.0
    %v4739 = vrcp.pop %v4738
    %v4740 = vmul.f32 %v4738, %v4739
    %v4741 = vsub.f32 1.0, %v4740
    %v4742 = vmul.f32 %v4739, %v4741
    %v4743 = vadd.f32 %v4739, %v4742
    %vm4744 = vweird.f32 %v4738
    %vm4745 = vweird.f32 %v4739
    %vm4746 = vmor %vm4744, %vm4745
    %v4747 = vsel %vm4746, %v4739, %v4743
    %v4748 = vand.u32 2147483647, %v4738
    %vm4749 = vcmp.eq.f32.partialorder %v4748, 8.507059e+37
    %v4750 = vand.u32 %v4738, 2147483648
    %v4751 = vor.u32 1.1754944e-38, %v4750
    %v4752 = vsel %vm4749, %v4751, %v4747
    %v4753 = vmul.f32 1.0, %v4752
    %vm4754 = vcmask 7168
    %4755 = vst.msk [vmem:[%s10] sm:$0xff] %vm4754, %v4753
    // Predicated region
    $region46: #{tpu_custom_call.1} parent=1 // pred_check
      _
    $region47: #{tpu_custom_call.1} parent=1 // pred_check_branch
      %4757 = sbr.rel (0) target = $region49
    $region48: #{tpu_custom_call.1} parent=1 // pred_region
      _
    $region49: #{tpu_custom_call.1} parent=1 // pred_fallthru
      _
    // Predicated region
    $region50: #{tpu_custom_call.1} parent=1 // pred_check
      _
    $region51: #{tpu_custom_call.1} parent=1 // pred_check_branch
      %4759 = sbr.rel (0) target = $region53
    $region52: #{tpu_custom_call.1} parent=1 // pred_region
      _
    $region53: #{tpu_custom_call.1} parent=1 // pred_fallthru
      _
    %4760 = vsyncpa [#allocation5], 1

</llo_original>
